<compile_context>
chip_gen: v7x
topology: tpu7x:2x2x1
jax: 0.10.0
libtpu: 0.0.40
codegen_flags: <defaults>
</compile_context>

<pallas_src>
import functools

import jax
import jax.numpy as jnp
import numpy as np
from jax.experimental import pallas as pl
from jax.experimental.pallas import tpu as pltpu

# ----------------------------- configuration -------------------------------
B = 2                # batch
CIN = 4              # input image channels
H = W = 16           # spatial
K = 3                # conv kernel (3x3, pad 1, stride 1)
COUT = 8             # surrogate CNN conv channels
FEATURE_DIM = 32     # args.feature_dim
ATTN_HIDDEN = 64     # nn.Linear(feature_dim, 64)
LSTM_HIDDEN = 32     # args.lstm_hidden_dim
NUM_CLASSES = 3      # args.num_class
T = 3                # visits: v00, v12, v24
HW = H * W
K2C = K * K * CIN

PACK_LANES = 128     # param slab lane width (4*LSTM_HIDDEN == 128 fits)
OUT_LANES = 128      # lane-dense output slab

# --------------------- packed parameter slab layout -------------------------
_PACK_LAYOUT = (
    ("conv_w", (K2C, COUT)),
    ("conv_b", (1, COUT)),
    ("fc_w", (COUT, FEATURE_DIM)),
    ("fc_b", (1, FEATURE_DIM)),
    ("a1_w", (FEATURE_DIM, ATTN_HIDDEN)),
    ("a1_b", (1, ATTN_HIDDEN)),
    ("a2_w", (ATTN_HIDDEN, 1)),
    ("a2_b", (1, 1)),
    ("w_ih_t", (FEATURE_DIM, 4 * LSTM_HIDDEN)),
    ("w_hh_t", (LSTM_HIDDEN, 4 * LSTM_HIDDEN)),
    ("b_sum", (1, 4 * LSTM_HIDDEN)),      # b_ih + b_hh, pre-summed in wrapper
    ("cls_w", (LSTM_HIDDEN, NUM_CLASSES)),
    ("cls_b", (1, NUM_CLASSES)),
)


def _layout_offsets():
    offsets, row = {}, 0
    for name, (rows, _) in _PACK_LAYOUT:
        offsets[name] = row
        row += ((rows + 7) // 8) * 8      # keep every param slice 8-sublane aligned
    return offsets, row


_PACK_OFFSETS, PACK_ROWS = _layout_offsets()   # PACK_ROWS is a multiple of 8
_PACK_SHAPES = dict(_PACK_LAYOUT)


# ------------------------------- kernel ------------------------------------
def _cnn_lstm_attn_kernel(patch_ref, prm_ref, out_ref):
    f32 = jnp.float32

    def getp(name):
        r0 = _PACK_OFFSETS[name]
        rows, cols = _PACK_SHAPES[name]
        return prm_ref[r0:r0 + rows, 0:cols]

    # ---- surrogate CNN: one fused conv matmul over all T*B images ----------
    patches = patch_ref[...]                                     # [T*B*HW, K2C]
    conv = jnp.dot(patches, getp("conv_w"),
                   preferred_element_type=f32) + getp("conv_b")
    conv = jnp.maximum(conv, 0.0)                                # ReLU
    gap = jnp.mean(conv.reshape(T * B, HW, COUT), axis=1)        # [T*B, COUT]
    seq = jnp.dot(gap, getp("fc_w"),
                  preferred_element_type=f32) + getp("fc_b")     # [T*B, F] (t-major)

    # ---- time attention: Linear(F,64) -> Tanh -> Linear(64,1) --------------
    hdn = jnp.tanh(jnp.dot(seq, getp("a1_w"),
                           preferred_element_type=f32) + getp("a1_b"))
    scores = jnp.dot(hdn, getp("a2_w"),
                     preferred_element_type=f32) + getp("a2_b")  # [T*B, 1]

    # softmax over the T visits (per batch element); rows are t-major blocks
    s_t = [scores[t * B:(t + 1) * B, :] for t in range(T)]       # T x [B, 1]
    m = functools.reduce(jnp.maximum, s_t)
    e_t = [jnp.exp(s - m) for s in s_t]
    denom = functools.reduce(jnp.add, e_t)
    w_t = [e / denom for e in e_t]                               # T x [B, 1]
    wts_col = jnp.concatenate(w_t, axis=0)                       # [T*B, 1]
    wts_bt = jnp.concatenate(w_t, axis=-1)                       # [B, T]

    seq_w = seq * wts_col                                        # [T*B, F]

    # ---- single-layer LSTM (batch_first, h0=c0=0), gate order i,f,g,o ------
    # input-side matmul hoisted out of the sequential time loop (review item #4)
    gates_x = jnp.dot(seq_w, getp("w_ih_t"),
                      preferred_element_type=f32) + getp("b_sum")   # [T*B, 4H]
    w_hh = getp("w_hh_t")                                           # [H, 4H]
    h_t = jnp.zeros((B, LSTM_HIDDEN), f32)
    c_t = jnp.zeros((B, LSTM_HIDDEN), f32)
    for t in range(T):
        gates = gates_x[t * B:(t + 1) * B, :] + jnp.dot(
            h_t, w_hh, preferred_element_type=f32)                  # [B, 4H]
        i_g = jax.nn.sigmoid(gates[:, 0 * LSTM_HIDDEN:1 * LSTM_HIDDEN])
        f_g = jax.nn.sigmoid(gates[:, 1 * LSTM_HIDDEN:2 * LSTM_HIDDEN])
        g_g = jnp.tanh(gates[:, 2 * LSTM_HIDDEN:3 * LSTM_HIDDEN])
        o_g = jax.nn.sigmoid(gates[:, 3 * LSTM_HIDDEN:4 * LSTM_HIDDEN])
        c_t = f_g * c_t + i_g * g_g
        h_t = o_g * jnp.tanh(c_t)

    # ---- classifier(hn[-1]) -------------------------------------------------
    logits = jnp.dot(h_t, getp("cls_w"),
                     preferred_element_type=f32) + getp("cls_b")    # [B, C]

    # ---- lane-dense output slab: [:, :C] logits, [:, C:C+T] attn weights ----
    pad = jnp.zeros((B, OUT_LANES - NUM_CLASSES - T), f32)
    out_ref[...] = jnp.concatenate([logits, wts_bt, pad], axis=-1)


# ------------------------------ JAX glue ------------------------------------
def _im2col_all_visits(v00, v12, v24):
    """Stack visits (t-major) and emit im2col patches [T*B*HW, K*K*Cin]."""
    x = jnp.stack([v00, v12, v24], axis=0).reshape(T * B, CIN, H, W)
    x = jnp.transpose(x, (0, 2, 3, 1)).astype(jnp.float32)        # NHWC
    xp = jnp.pad(x, ((0, 0), (1, 1), (1, 1), (0, 0)))
    cols = [xp[:, kh:kh + H, kw:kw + W, :] for kh in range(K) for kw in range(K)]
    patches = jnp.concatenate(cols, axis=-1)                      # [T*B, H, W, K2C]
    return patches.reshape(T * B * HW, K2C)


def _pack_params(params):
    """Pack all parameters into one (8,128)-aligned f32 VMEM slab."""
    p = dict(params)
    p["b_sum"] = p["b_ih"] + p["b_hh"]
    slab = jnp.zeros((PACK_ROWS, PACK_LANES), jnp.float32)
    for name, _ in _PACK_LAYOUT:
        slab = jax.lax.dynamic_update_slice(
            slab, p[name].astype(jnp.float32), (_PACK_OFFSETS[name], 0))
    return slab


_COST = pl.CostEstimate(
    flops=(2 * T * B * HW * K2C * COUT                       # conv
           + 2 * T * B * COUT * FEATURE_DIM                  # fc
           + 2 * T * B * FEATURE_DIM * ATTN_HIDDEN           # attn L1
           + 2 * T * B * ATTN_HIDDEN                         # attn L2
           + 2 * T * B * FEATURE_DIM * 4 * LSTM_HIDDEN       # lstm x-matmul
           + 2 * T * B * LSTM_HIDDEN * 4 * LSTM_HIDDEN       # lstm h-matmuls
           + 2 * B * LSTM_HIDDEN * NUM_CLASSES),             # classifier
    transcendentals=T * B * (ATTN_HIDDEN + 1 + 5 * LSTM_HIDDEN) + 64,
    bytes_accessed=4 * (T * B * HW * K2C + PACK_ROWS * PACK_LANES + B * OUT_LANES),
)


@jax.jit
def cnn_lstm_attention_forward(v00, v12, v24, params):
    patches = _im2col_all_visits(v00, v12, v24)                   # [1536, 36]
    prm_slab = _pack_params(params)                               # [288, 128]

    grid_spec = pltpu.PrefetchScalarGridSpec(
        num_scalar_prefetch=0,
        grid=(1,),                                                # single invocation
        in_specs=[
            pl.BlockSpec((T * B * HW, K2C), lambda i: (0, 0)),
            pl.BlockSpec((PACK_ROWS, PACK_LANES), lambda i: (0, 0)),
        ],
        out_specs=pl.BlockSpec((B, OUT_LANES), lambda i: (0, 0)),
    )

    slab = pl.pallas_call(
        _cnn_lstm_attn_kernel,
        grid_spec=grid_spec,
        out_shape=jax.ShapeDtypeStruct((B, OUT_LANES), jnp.float32),
        compiler_params=pltpu.CompilerParams(
            # do not shard this sub-microsecond kernel across v7x TensorCores
            dimension_semantics=("arbitrary",)),
        cost_estimate=_COST,
    )(patches, prm_slab)

    out = slab[:, :NUM_CLASSES]
    weights = slab[:, NUM_CLASSES:NUM_CLASSES + T].reshape(B, T, 1)
    return out, weights                                           # matches (out, weights)


# --------------------------- pure-JAX reference ------------------------------
def reference_forward(v00, v12, v24, params):
    hp = jax.lax.Precision.HIGHEST

    def cnn(x):
        xn = jnp.transpose(x, (0, 2, 3, 1)).astype(jnp.float32)
        xp = jnp.pad(xn, ((0, 0), (1, 1), (1, 1), (0, 0)))
        cols = [xp[:, kh:kh + H, kw:kw + W, :] for kh in range(K) for kw in range(K)]
        p = jnp.concatenate(cols, axis=-1).reshape(x.shape[0], HW, K2C)
        conv = jnp.einsum("bpk,kc->bpc", p, params["conv_w"],
                          precision=hp) + params["conv_b"]
        conv = jnp.maximum(conv, 0.0)
        gap = jnp.mean(conv, axis=1)
        return jnp.dot(gap, params["fc_w"], precision=hp) + params["fc_b"]

    seq = jnp.stack([cnn(v00), cnn(v12), cnn(v24)], axis=1)       # [B,T,F]
    hdn = jnp.tanh(jnp.dot(seq, params["a1_w"], precision=hp) + params["a1_b"])
    scores = jnp.dot(hdn, params["a2_w"], precision=hp) + params["a2_b"]
    wts = jax.nn.softmax(scores, axis=1)
    seq_w = seq * wts

    h_t = jnp.zeros((B, LSTM_HIDDEN), jnp.float32)
    c_t = jnp.zeros((B, LSTM_HIDDEN), jnp.float32)
    for t in range(T):
        gates = (jnp.dot(seq_w[:, t, :], params["w_ih_t"], precision=hp)
                 + jnp.dot(h_t, params["w_hh_t"], precision=hp)
                 + params["b_ih"] + params["b_hh"])
        i_g = jax.nn.sigmoid(gates[:, 0 * LSTM_HIDDEN:1 * LSTM_HIDDEN])
        f_g = jax.nn.sigmoid(gates[:, 1 * LSTM_HIDDEN:2 * LSTM_HIDDEN])
        g_g = jnp.tanh(gates[:, 2 * LSTM_HIDDEN:3 * LSTM_HIDDEN])
        o_g = jax.nn.sigmoid(gates[:, 3 * LSTM_HIDDEN:4 * LSTM_HIDDEN])
        c_t = f_g * c_t + i_g * g_g
        h_t = o_g * jnp.tanh(c_t)

    out = jnp.dot(h_t, params["cls_w"], precision=hp) + params["cls_b"]
    return out, wts


# ------------------------------- params -------------------------------------
def init_params(key):
    ks = jax.random.split(key, 16)
    n = lambda k, s: (0.1 * jax.random.normal(k, s)).astype(jnp.float32)
    return {
        # surrogate CNN: conv 3x3 (flattened [K*K*Cin, COUT]) + GAP + fc
        "conv_w": n(ks[0], (K2C, COUT)),
        "conv_b": n(ks[1], (1, COUT)),
        "fc_w":   n(ks[2], (COUT, FEATURE_DIM)),
        "fc_b":   n(ks[3], (1, FEATURE_DIM)),
        # time_attn: Linear(F,64) -> Tanh -> Linear(64,1)
        "a1_w":   n(ks[4], (FEATURE_DIM, ATTN_HIDDEN)),
        "a1_b":   n(ks[5], (1, ATTN_HIDDEN)),
        "a2_w":   n(ks[6], (ATTN_HIDDEN, 1)),
        "a2_b":   n(ks[7], (1, 1)),
        # LSTM (weights stored transposed: x @ W_ih^T, h @ W_hh^T), gates i,f,g,o
        "w_ih_t": n(ks[8], (FEATURE_DIM, 4 * LSTM_HIDDEN)),
        "w_hh_t": n(ks[9], (LSTM_HIDDEN, 4 * LSTM_HIDDEN)),
        "b_ih":   n(ks[10], (1, 4 * LSTM_HIDDEN)),
        "b_hh":   n(ks[11], (1, 4 * LSTM_HIDDEN)),
        # classifier
        "cls_w":  n(ks[12], (LSTM_HIDDEN, NUM_CLASSES)),
        "cls_b":  n(ks[13], (1, NUM_CLASSES)),
    }


# -------------------------------- main ---------------------------------------
if __name__ == "__main__":
    key = jax.random.PRNGKey(0)
    k0, k1, k2, kp = jax.random.split(key, 4)
    v00 = jax.random.normal(k0, (B, CIN, H, W), dtype=jnp.float32)  # NCHW (PyTorch)
    v12 = jax.random.normal(k1, (B, CIN, H, W), dtype=jnp.float32)
    v24 = jax.random.normal(k2, (B, CIN, H, W), dtype=jnp.float32)
    params = init_params(kp)

    out, weights = cnn_lstm_attention_forward(v00, v12, v24, params)
    out, weights = jax.block_until_ready((out, weights))

    assert out.shape == (B, NUM_CLASSES) and weights.shape == (B, T, 1)
    assert bool(jnp.all(jnp.isfinite(out))) and bool(jnp.all(jnp.isfinite(weights)))

    ref_out, ref_wts = reference_forward(v00, v12, v24, params)
    np.testing.assert_allclose(np.asarray(out), np.asarray(ref_out),
                               rtol=1e-3, atol=1e-4)
    np.testing.assert_allclose(np.asarray(weights), np.asarray(ref_wts),
                               rtol=1e-3, atol=1e-4)

    print("KERNEL_OK")
</pallas_src>

<mosaic_0001>
module attributes {stable_mosaic.version = 11 : i64} {
  func.func @_cnn_lstm_attn_kernel(%arg0: i32, %arg1: memref<1536x36xf32, #tpu.memory_space<vmem>>, %arg2: memref<288x128xf32, #tpu.memory_space<vmem>>, %arg3: memref<2x128xf32, #tpu.memory_space<vmem>>) attributes {dimension_semantics = [#tpu.dimension_semantics<arbitrary>], iteration_bounds = array<i64: 1>, scalar_prefetch = 0 : i64, scratch_operands = 0 : i64, tpu.core_type = #tpu.core_type<tc>, window_params = [{pipeline_mode = #tpu.pipeline_mode<synchronous>, transform_indices = @transform_0, window_bounds = array<i64: 1536, 36>}, {pipeline_mode = #tpu.pipeline_mode<synchronous>, transform_indices = @transform_1, window_bounds = array<i64: 288, 128>}, {pipeline_mode = #tpu.pipeline_mode<synchronous>, transform_indices = @transform_2, window_bounds = array<i64: 2, 128>}]} {
    %c0 = arith.constant 0 : index
    %c0_0 = arith.constant 0 : index
    %0 = vector.load %arg1[%c0, %c0_0] : memref<1536x36xf32, #tpu.memory_space<vmem>>, vector<1536x36xf32>
    %c0_1 = arith.constant 0 : index
    %c0_2 = arith.constant 0 : index
    %1 = vector.load %arg2[%c0_1, %c0_2] : memref<288x128xf32, #tpu.memory_space<vmem>>, vector<36x8xf32>
    %cst = arith.constant dense<0.000000e+00> : vector<1536x8xf32>
    %2 = tpu.matmul %0, %1, %cst {dimension_numbers = #tpu.dot_dimension_numbers<[1], [0], [0], [1], [0, 0, 1, 1], [], []>} : vector<1536x36xf32>, vector<36x8xf32>, vector<1536x8xf32> -> vector<1536x8xf32>
    %c40 = arith.constant 40 : index
    %c0_3 = arith.constant 0 : index
    %3 = vector.load %arg2[%c40, %c0_3] : memref<288x128xf32, #tpu.memory_space<vmem>>, vector<1x8xf32>
    %4 = vector.broadcast %3 : vector<1x8xf32> to vector<1536x8xf32>
    %5 = arith.addf %2, %4 : vector<1536x8xf32>
    %cst_4 = arith.constant 0.000000e+00 : f32
    %6 = vector.broadcast %cst_4 : f32 to vector<1536x8xf32>
    %7 = arith.maximumf %5, %6 : vector<1536x8xf32>
    %8 = vector.shape_cast %7 : vector<1536x8xf32> to vector<6x256x8xf32>
    %cst_5 = arith.constant dense<0.000000e+00> : vector<6x8xf32>
    %9 = vector.multi_reduction <add>, %8, %cst_5 [1] : vector<6x256x8xf32> to vector<6x8xf32>
    %cst_6 = arith.constant 2.560000e+02 : f32
    %10 = vector.broadcast %cst_6 : f32 to vector<6x8xf32>
    %11 = arith.divf %9, %10 : vector<6x8xf32>
    %c48 = arith.constant 48 : index
    %c0_7 = arith.constant 0 : index
    %12 = vector.load %arg2[%c48, %c0_7] : memref<288x128xf32, #tpu.memory_space<vmem>>, vector<8x32xf32>
    %cst_8 = arith.constant dense<0.000000e+00> : vector<6x32xf32>
    %13 = tpu.matmul %11, %12, %cst_8 {dimension_numbers = #tpu.dot_dimension_numbers<[1], [0], [0], [1], [0, 0, 1, 1], [], []>} : vector<6x8xf32>, vector<8x32xf32>, vector<6x32xf32> -> vector<6x32xf32>
    %c56 = arith.constant 56 : index
    %c0_9 = arith.constant 0 : index
    %14 = vector.load %arg2[%c56, %c0_9] : memref<288x128xf32, #tpu.memory_space<vmem>>, vector<1x32xf32>
    %15 = vector.broadcast %14 : vector<1x32xf32> to vector<6x32xf32>
    %16 = arith.addf %13, %15 : vector<6x32xf32>
    %c64 = arith.constant 64 : index
    %c0_10 = arith.constant 0 : index
    %17 = vector.load %arg2[%c64, %c0_10] : memref<288x128xf32, #tpu.memory_space<vmem>>, vector<32x64xf32>
    %cst_11 = arith.constant dense<0.000000e+00> : vector<6x64xf32>
    %18 = tpu.matmul %16, %17, %cst_11 {dimension_numbers = #tpu.dot_dimension_numbers<[1], [0], [0], [1], [0, 0, 1, 1], [], []>} : vector<6x32xf32>, vector<32x64xf32>, vector<6x64xf32> -> vector<6x64xf32>
    %c96 = arith.constant 96 : index
    %c0_12 = arith.constant 0 : index
    %19 = vector.load %arg2[%c96, %c0_12] : memref<288x128xf32, #tpu.memory_space<vmem>>, vector<1x64xf32>
    %20 = vector.broadcast %19 : vector<1x64xf32> to vector<6x64xf32>
    %21 = arith.addf %18, %20 : vector<6x64xf32>
    %22 = math.tanh %21 : vector<6x64xf32>
    %c104 = arith.constant 104 : index
    %c0_13 = arith.constant 0 : index
    %23 = vector.load %arg2[%c104, %c0_13] : memref<288x128xf32, #tpu.memory_space<vmem>>, vector<64x1xf32>
    %cst_14 = arith.constant dense<0.000000e+00> : vector<6x1xf32>
    %24 = tpu.matmul %22, %23, %cst_14 {dimension_numbers = #tpu.dot_dimension_numbers<[1], [0], [0], [1], [0, 0, 1, 1], [], []>} : vector<6x64xf32>, vector<64x1xf32>, vector<6x1xf32> -> vector<6x1xf32>
    %c168 = arith.constant 168 : index
    %c0_15 = arith.constant 0 : index
    %25 = vector.load %arg2[%c168, %c0_15] : memref<288x128xf32, #tpu.memory_space<vmem>>, vector<1x1xf32>
    %26 = vector.broadcast %25 : vector<1x1xf32> to vector<6x1xf32>
    %27 = arith.addf %24, %26 : vector<6x1xf32>
    %28 = vector.extract_strided_slice %27 {offsets = [0, 0], sizes = [2, 1], strides = [1, 1]} : vector<6x1xf32> to vector<2x1xf32>
    %29 = vector.extract_strided_slice %27 {offsets = [2, 0], sizes = [2, 1], strides = [1, 1]} : vector<6x1xf32> to vector<2x1xf32>
    %30 = vector.extract_strided_slice %27 {offsets = [4, 0], sizes = [2, 1], strides = [1, 1]} : vector<6x1xf32> to vector<2x1xf32>
    %31 = arith.maximumf %28, %29 : vector<2x1xf32>
    %32 = arith.maximumf %31, %30 : vector<2x1xf32>
    %33 = arith.subf %28, %32 : vector<2x1xf32>
    %34 = math.exp %33 : vector<2x1xf32>
    %35 = arith.subf %29, %32 : vector<2x1xf32>
    %36 = math.exp %35 : vector<2x1xf32>
    %37 = arith.subf %30, %32 : vector<2x1xf32>
    %38 = math.exp %37 : vector<2x1xf32>
    %39 = arith.addf %34, %36 : vector<2x1xf32>
    %40 = arith.addf %39, %38 : vector<2x1xf32>
    %41 = arith.divf %34, %40 : vector<2x1xf32>
    %42 = arith.divf %36, %40 : vector<2x1xf32>
    %43 = arith.divf %38, %40 : vector<2x1xf32>
    %44 = tpu.concatenate %41, %42, %43 in 0 : vector<2x1xf32>, vector<2x1xf32>, vector<2x1xf32> -> vector<6x1xf32>
    %45 = tpu.concatenate %41, %42, %43 in 1 : vector<2x1xf32>, vector<2x1xf32>, vector<2x1xf32> -> vector<2x3xf32>
    %46 = vector.broadcast %44 : vector<6x1xf32> to vector<6x32xf32>
    %47 = arith.mulf %16, %46 : vector<6x32xf32>
    %c176 = arith.constant 176 : index
    %c0_16 = arith.constant 0 : index
    %48 = vector.load %arg2[%c176, %c0_16] : memref<288x128xf32, #tpu.memory_space<vmem>>, vector<32x128xf32>
    %cst_17 = arith.constant dense<0.000000e+00> : vector<6x128xf32>
    %49 = tpu.matmul %47, %48, %cst_17 {dimension_numbers = #tpu.dot_dimension_numbers<[1], [0], [0], [1], [0, 0, 1, 1], [], []>} : vector<6x32xf32>, vector<32x128xf32>, vector<6x128xf32> -> vector<6x128xf32>
    %c240 = arith.constant 240 : index
    %c0_18 = arith.constant 0 : index
    %50 = vector.load %arg2[%c240, %c0_18] : memref<288x128xf32, #tpu.memory_space<vmem>>, vector<1x128xf32>
    %51 = vector.broadcast %50 : vector<1x128xf32> to vector<6x128xf32>
    %52 = arith.addf %49, %51 : vector<6x128xf32>
    %c208 = arith.constant 208 : index
    %c0_19 = arith.constant 0 : index
    %53 = vector.load %arg2[%c208, %c0_19] : memref<288x128xf32, #tpu.memory_space<vmem>>, vector<32x128xf32>
    %cst_20 = arith.constant 0.000000e+00 : f32
    %54 = vector.broadcast %cst_20 : f32 to vector<2x32xf32>
    %cst_21 = arith.constant 0.000000e+00 : f32
    %55 = vector.broadcast %cst_21 : f32 to vector<2x32xf32>
    %56 = vector.extract_strided_slice %52 {offsets = [0, 0], sizes = [2, 128], strides = [1, 1]} : vector<6x128xf32> to vector<2x128xf32>
    %cst_22 = arith.constant dense<0.000000e+00> : vector<2x128xf32>
    %57 = tpu.matmul %54, %53, %cst_22 {dimension_numbers = #tpu.dot_dimension_numbers<[1], [0], [0], [1], [0, 0, 1, 1], [], []>} : vector<2x32xf32>, vector<32x128xf32>, vector<2x128xf32> -> vector<2x128xf32>
    %58 = arith.addf %56, %57 : vector<2x128xf32>
    %59 = vector.extract_strided_slice %58 {offsets = [0, 0], sizes = [2, 32], strides = [1, 1]} : vector<2x128xf32> to vector<2x32xf32>
    %60 = arith.negf %59 : vector<2x32xf32>
    %61 = math.exp %60 : vector<2x32xf32>
    %cst_23 = arith.constant 1.000000e+00 : f32
    %62 = vector.broadcast %cst_23 : f32 to vector<2x32xf32>
    %63 = arith.addf %62, %61 : vector<2x32xf32>
    %64 = arith.divf %62, %63 : vector<2x32xf32>
    %65 = vector.extract_strided_slice %58 {offsets = [0, 32], sizes = [2, 32], strides = [1, 1]} : vector<2x128xf32> to vector<2x32xf32>
    %66 = arith.negf %65 : vector<2x32xf32>
    %67 = math.exp %66 : vector<2x32xf32>
    %cst_24 = arith.constant 1.000000e+00 : f32
    %68 = vector.broadcast %cst_24 : f32 to vector<2x32xf32>
    %69 = arith.addf %68, %67 : vector<2x32xf32>
    %70 = arith.divf %68, %69 : vector<2x32xf32>
    %71 = vector.extract_strided_slice %58 {offsets = [0, 64], sizes = [2, 32], strides = [1, 1]} : vector<2x128xf32> to vector<2x32xf32>
    %72 = math.tanh %71 : vector<2x32xf32>
    %73 = vector.extract_strided_slice %58 {offsets = [0, 96], sizes = [2, 32], strides = [1, 1]} : vector<2x128xf32> to vector<2x32xf32>
    %74 = arith.negf %73 : vector<2x32xf32>
    %75 = math.exp %74 : vector<2x32xf32>
    %cst_25 = arith.constant 1.000000e+00 : f32
    %76 = vector.broadcast %cst_25 : f32 to vector<2x32xf32>
    %77 = arith.addf %76, %75 : vector<2x32xf32>
    %78 = arith.divf %76, %77 : vector<2x32xf32>
    %79 = arith.mulf %70, %55 : vector<2x32xf32>
    %80 = arith.mulf %64, %72 : vector<2x32xf32>
    %81 = arith.addf %79, %80 : vector<2x32xf32>
    %82 = math.tanh %81 : vector<2x32xf32>
    %83 = arith.mulf %78, %82 : vector<2x32xf32>
    %84 = vector.extract_strided_slice %52 {offsets = [2, 0], sizes = [2, 128], strides = [1, 1]} : vector<6x128xf32> to vector<2x128xf32>
    %cst_26 = arith.constant dense<0.000000e+00> : vector<2x128xf32>
    %85 = tpu.matmul %83, %53, %cst_26 {dimension_numbers = #tpu.dot_dimension_numbers<[1], [0], [0], [1], [0, 0, 1, 1], [], []>} : vector<2x32xf32>, vector<32x128xf32>, vector<2x128xf32> -> vector<2x128xf32>
    %86 = arith.addf %84, %85 : vector<2x128xf32>
    %87 = vector.extract_strided_slice %86 {offsets = [0, 0], sizes = [2, 32], strides = [1, 1]} : vector<2x128xf32> to vector<2x32xf32>
    %88 = arith.negf %87 : vector<2x32xf32>
    %89 = math.exp %88 : vector<2x32xf32>
    %cst_27 = arith.constant 1.000000e+00 : f32
    %90 = vector.broadcast %cst_27 : f32 to vector<2x32xf32>
    %91 = arith.addf %90, %89 : vector<2x32xf32>
    %92 = arith.divf %90, %91 : vector<2x32xf32>
    %93 = vector.extract_strided_slice %86 {offsets = [0, 32], sizes = [2, 32], strides = [1, 1]} : vector<2x128xf32> to vector<2x32xf32>
    %94 = arith.negf %93 : vector<2x32xf32>
    %95 = math.exp %94 : vector<2x32xf32>
    %cst_28 = arith.constant 1.000000e+00 : f32
    %96 = vector.broadcast %cst_28 : f32 to vector<2x32xf32>
    %97 = arith.addf %96, %95 : vector<2x32xf32>
    %98 = arith.divf %96, %97 : vector<2x32xf32>
    %99 = vector.extract_strided_slice %86 {offsets = [0, 64], sizes = [2, 32], strides = [1, 1]} : vector<2x128xf32> to vector<2x32xf32>
    %100 = math.tanh %99 : vector<2x32xf32>
    %101 = vector.extract_strided_slice %86 {offsets = [0, 96], sizes = [2, 32], strides = [1, 1]} : vector<2x128xf32> to vector<2x32xf32>
    %102 = arith.negf %101 : vector<2x32xf32>
    %103 = math.exp %102 : vector<2x32xf32>
    %cst_29 = arith.constant 1.000000e+00 : f32
    %104 = vector.broadcast %cst_29 : f32 to vector<2x32xf32>
    %105 = arith.addf %104, %103 : vector<2x32xf32>
    %106 = arith.divf %104, %105 : vector<2x32xf32>
    %107 = arith.mulf %98, %81 : vector<2x32xf32>
    %108 = arith.mulf %92, %100 : vector<2x32xf32>
    %109 = arith.addf %107, %108 : vector<2x32xf32>
    %110 = math.tanh %109 : vector<2x32xf32>
    %111 = arith.mulf %106, %110 : vector<2x32xf32>
    %112 = vector.extract_strided_slice %52 {offsets = [4, 0], sizes = [2, 128], strides = [1, 1]} : vector<6x128xf32> to vector<2x128xf32>
    %cst_30 = arith.constant dense<0.000000e+00> : vector<2x128xf32>
    %113 = tpu.matmul %111, %53, %cst_30 {dimension_numbers = #tpu.dot_dimension_numbers<[1], [0], [0], [1], [0, 0, 1, 1], [], []>} : vector<2x32xf32>, vector<32x128xf32>, vector<2x128xf32> -> vector<2x128xf32>
    %114 = arith.addf %112, %113 : vector<2x128xf32>
    %115 = vector.extract_strided_slice %114 {offsets = [0, 0], sizes = [2, 32], strides = [1, 1]} : vector<2x128xf32> to vector<2x32xf32>
    %116 = arith.negf %115 : vector<2x32xf32>
    %117 = math.exp %116 : vector<2x32xf32>
    %cst_31 = arith.constant 1.000000e+00 : f32
    %118 = vector.broadcast %cst_31 : f32 to vector<2x32xf32>
    %119 = arith.addf %118, %117 : vector<2x32xf32>
    %120 = arith.divf %118, %119 : vector<2x32xf32>
    %121 = vector.extract_strided_slice %114 {offsets = [0, 32], sizes = [2, 32], strides = [1, 1]} : vector<2x128xf32> to vector<2x32xf32>
    %122 = arith.negf %121 : vector<2x32xf32>
    %123 = math.exp %122 : vector<2x32xf32>
    %cst_32 = arith.constant 1.000000e+00 : f32
    %124 = vector.broadcast %cst_32 : f32 to vector<2x32xf32>
    %125 = arith.addf %124, %123 : vector<2x32xf32>
    %126 = arith.divf %124, %125 : vector<2x32xf32>
    %127 = vector.extract_strided_slice %114 {offsets = [0, 64], sizes = [2, 32], strides = [1, 1]} : vector<2x128xf32> to vector<2x32xf32>
    %128 = math.tanh %127 : vector<2x32xf32>
    %129 = vector.extract_strided_slice %114 {offsets = [0, 96], sizes = [2, 32], strides = [1, 1]} : vector<2x128xf32> to vector<2x32xf32>
    %130 = arith.negf %129 : vector<2x32xf32>
    %131 = math.exp %130 : vector<2x32xf32>
    %cst_33 = arith.constant 1.000000e+00 : f32
    %132 = vector.broadcast %cst_33 : f32 to vector<2x32xf32>
    %133 = arith.addf %132, %131 : vector<2x32xf32>
    %134 = arith.divf %132, %133 : vector<2x32xf32>
    %135 = arith.mulf %126, %109 : vector<2x32xf32>
    %136 = arith.mulf %120, %128 : vector<2x32xf32>
    %137 = arith.addf %135, %136 : vector<2x32xf32>
    %138 = math.tanh %137 : vector<2x32xf32>
    %139 = arith.mulf %134, %138 : vector<2x32xf32>
    %c248 = arith.constant 248 : index
    %c0_34 = arith.constant 0 : index
    %140 = vector.load %arg2[%c248, %c0_34] : memref<288x128xf32, #tpu.memory_space<vmem>>, vector<32x3xf32>
    %cst_35 = arith.constant dense<0.000000e+00> : vector<2x3xf32>
    %141 = tpu.matmul %139, %140, %cst_35 {dimension_numbers = #tpu.dot_dimension_numbers<[1], [0], [0], [1], [0, 0, 1, 1], [], []>} : vector<2x32xf32>, vector<32x3xf32>, vector<2x3xf32> -> vector<2x3xf32>
    %c280 = arith.constant 280 : index
    %c0_36 = arith.constant 0 : index
    %142 = vector.load %arg2[%c280, %c0_36] : memref<288x128xf32, #tpu.memory_space<vmem>>, vector<1x3xf32>
    %143 = vector.broadcast %142 : vector<1x3xf32> to vector<2x3xf32>
    %144 = arith.addf %141, %143 : vector<2x3xf32>
    %cst_37 = arith.constant 0.000000e+00 : f32
    %145 = vector.broadcast %cst_37 : f32 to vector<2x122xf32>
    %146 = tpu.concatenate %144, %45, %145 in 1 : vector<2x3xf32>, vector<2x3xf32>, vector<2x122xf32> -> vector<2x128xf32>
    %c0_38 = arith.constant 0 : index
    %c0_39 = arith.constant 0 : index
    %147 = vector.load %arg3[%c0_38, %c0_39] : memref<2x128xf32, #tpu.memory_space<vmem>>, vector<2x128xf32>
    tpu.vector_store %arg3[%c0_38, %c0_39], %146 {strides = array<i32>} : memref<2x128xf32, #tpu.memory_space<vmem>>, vector<2x128xf32>,
    return
  }
  func.func @transform_0(%arg0: i32) -> (i32, i32) {
    %c0_i32 = arith.constant 0 : i32
    %c0_i32_0 = arith.constant 0 : i32
    %c0_i32_1 = arith.constant 0 : i32
    return %c0_i32, %c0_i32_0 : i32, i32
  }
  func.func @transform_1(%arg0: i32) -> (i32, i32) {
    %c0_i32 = arith.constant 0 : i32
    %c0_i32_0 = arith.constant 0 : i32
    %c0_i32_1 = arith.constant 0 : i32
    return %c0_i32, %c0_i32_0 : i32, i32
  }
  func.func @transform_2(%arg0: i32) -> (i32, i32) {
    %c0_i32 = arith.constant 0 : i32
    %c0_i32_0 = arith.constant 0 : i32
    %c0_i32_1 = arith.constant 0 : i32
    return %c0_i32, %c0_i32_0 : i32, i32
  }
}

</mosaic_0001>

<llo_original>
// kernel: cnn_lstm_attention_forward.1
$region0: #{cnn_lstm_attention_forward.1}
  #allocation0 [shape = 'u32[]', space=smem, size = 0x4, offset = 0x4, fixed_abs, tag = 'smem constant byte address 0x4 - core index']
  #allocation1 [shape = 'u32[144,128]{1,0:T(1,128)}', space=vmem, size = 0x12000, scoped, tag = 'internal scratch']
  %s0 = inlined_call_operand.vmem [shape: f32[1536,36], index: 0, kind: input, shape index: {}]
  %s1 = inlined_call_operand.vmem [shape: f32[288,128], index: 1, kind: input, shape index: {}]
  %s2 = inlined_call_operand.vmem [shape: f32[2,128], index: 2, kind: output, shape index: {}]
  %s3 = sld [smem:[#allocation0]]
  $region18: #{cnn_lstm_attention_forward.1} parent=0
    _
  %s5 = ssub.s32 1, %s3
  %s6 = scalar_select 0, %s5, %s3
  // Predicated region
  $region2: #{cnn_lstm_attention_forward.1} parent=0 // pred_check
    _
  $region3: #{cnn_lstm_attention_forward.1} parent=0 // pred_check_branch
    %8 = sbr.rel (0) target = $region5
  $region4: #{cnn_lstm_attention_forward.1} parent=0 // pred_region
    _
  $region5: #{cnn_lstm_attention_forward.1} parent=0 // pred_fallthru
    _
  // Predicated region
  $region6: #{cnn_lstm_attention_forward.1} parent=0 // pred_check
    _
  $region7: #{cnn_lstm_attention_forward.1} parent=0 // pred_check_branch
    %10 = sbr.rel (0) target = $region9
  $region8: #{cnn_lstm_attention_forward.1} parent=0 // pred_region
    _
  $region9: #{cnn_lstm_attention_forward.1} parent=0 // pred_fallthru
    _
  %v11 = vld [vmem:[%s0] sm:$0xff]
  %v12 = vld [vmem:[%s0 + $0x8] sm:$0xff]
  %v13 = vld [vmem:[%s0 + $0x10] sm:$0xff]
  %v14 = vld [vmem:[%s0 + $0x18] sm:$0xff]
  %v15 = vld [vmem:[%s0 + $0x20] sm:$0xff]
  %v16 = vld [vmem:[%s0 + $0x28] sm:$0xff]
  %v17 = vld [vmem:[%s0 + $0x30] sm:$0xff]
  %v18 = vld [vmem:[%s0 + $0x38] sm:$0xff]
  %v19 = vld [vmem:[%s0 + $0x40] sm:$0xff]
  %v20 = vld [vmem:[%s0 + $0x48] sm:$0xff]
  %v21 = vld [vmem:[%s0 + $0x50] sm:$0xff]
  %v22 = vld [vmem:[%s0 + $0x58] sm:$0xff]
  %v23 = vld [vmem:[%s0 + $0x60] sm:$0xff]
  %v24 = vld [vmem:[%s0 + $0x68] sm:$0xff]
  %v25 = vld [vmem:[%s0 + $0x70] sm:$0xff]
  %v26 = vld [vmem:[%s0 + $0x78] sm:$0xff]
  %v27 = vld [vmem:[%s0 + $0x80] sm:$0xff]
  %v28 = vld [vmem:[%s0 + $0x88] sm:$0xff]
  %v29 = vld [vmem:[%s0 + $0x90] sm:$0xff]
  %v30 = vld [vmem:[%s0 + $0x98] sm:$0xff]
  %v31 = vld [vmem:[%s0 + $0xa0] sm:$0xff]
  %v32 = vld [vmem:[%s0 + $0xa8] sm:$0xff]
  %v33 = vld [vmem:[%s0 + $0xb0] sm:$0xff]
  %v34 = vld [vmem:[%s0 + $0xb8] sm:$0xff]
  %v35 = vld [vmem:[%s0 + $0xc0] sm:$0xff]
  %v36 = vld [vmem:[%s0 + $0xc8] sm:$0xff]
  %v37 = vld [vmem:[%s0 + $0xd0] sm:$0xff]
  %v38 = vld [vmem:[%s0 + $0xd8] sm:$0xff]
  %v39 = vld [vmem:[%s0 + $0xe0] sm:$0xff]
  %v40 = vld [vmem:[%s0 + $0xe8] sm:$0xff]
  %v41 = vld [vmem:[%s0 + $0xf0] sm:$0xff]
  %v42 = vld [vmem:[%s0 + $0xf8] sm:$0xff]
  %v43 = vld [vmem:[%s0 + $0x100] sm:$0xff]
  %v44 = vld [vmem:[%s0 + $0x108] sm:$0xff]
  %v45 = vld [vmem:[%s0 + $0x110] sm:$0xff]
  %v46 = vld [vmem:[%s0 + $0x118] sm:$0xff]
  %v47 = vld [vmem:[%s0 + $0x120] sm:$0xff]
  %v48 = vld [vmem:[%s0 + $0x128] sm:$0xff]
  %v49 = vld [vmem:[%s0 + $0x130] sm:$0xff]
  %v50 = vld [vmem:[%s0 + $0x138] sm:$0xff]
  %v51 = vld [vmem:[%s0 + $0x140] sm:$0xff]
  %v52 = vld [vmem:[%s0 + $0x148] sm:$0xff]
  %v53 = vld [vmem:[%s0 + $0x150] sm:$0xff]
  %v54 = vld [vmem:[%s0 + $0x158] sm:$0xff]
  %v55 = vld [vmem:[%s0 + $0x160] sm:$0xff]
  %v56 = vld [vmem:[%s0 + $0x168] sm:$0xff]
  %v57 = vld [vmem:[%s0 + $0x170] sm:$0xff]
  %v58 = vld [vmem:[%s0 + $0x178] sm:$0xff]
  %v59 = vld [vmem:[%s0 + $0x180] sm:$0xff]
  %v60 = vld [vmem:[%s0 + $0x188] sm:$0xff]
  %v61 = vld [vmem:[%s0 + $0x190] sm:$0xff]
  %v62 = vld [vmem:[%s0 + $0x198] sm:$0xff]
  %v63 = vld [vmem:[%s0 + $0x1a0] sm:$0xff]
  %v64 = vld [vmem:[%s0 + $0x1a8] sm:$0xff]
  %v65 = vld [vmem:[%s0 + $0x1b0] sm:$0xff]
  %v66 = vld [vmem:[%s0 + $0x1b8] sm:$0xff]
  %v67 = vld [vmem:[%s0 + $0x1c0] sm:$0xff]
  %v68 = vld [vmem:[%s0 + $0x1c8] sm:$0xff]
  %v69 = vld [vmem:[%s0 + $0x1d0] sm:$0xff]
  %v70 = vld [vmem:[%s0 + $0x1d8] sm:$0xff]
  %v71 = vld [vmem:[%s0 + $0x1e0] sm:$0xff]
  %v72 = vld [vmem:[%s0 + $0x1e8] sm:$0xff]
  %v73 = vld [vmem:[%s0 + $0x1f0] sm:$0xff]
  %v74 = vld [vmem:[%s0 + $0x1f8] sm:$0xff]
  %v75 = vld [vmem:[%s0 + $0x200] sm:$0xff]
  %v76 = vld [vmem:[%s0 + $0x208] sm:$0xff]
  %v77 = vld [vmem:[%s0 + $0x210] sm:$0xff]
  %v78 = vld [vmem:[%s0 + $0x218] sm:$0xff]
  %v79 = vld [vmem:[%s0 + $0x220] sm:$0xff]
  %v80 = vld [vmem:[%s0 + $0x228] sm:$0xff]
  %v81 = vld [vmem:[%s0 + $0x230] sm:$0xff]
  %v82 = vld [vmem:[%s0 + $0x238] sm:$0xff]
  %v83 = vld [vmem:[%s0 + $0x240] sm:$0xff]
  %v84 = vld [vmem:[%s0 + $0x248] sm:$0xff]
  %v85 = vld [vmem:[%s0 + $0x250] sm:$0xff]
  %v86 = vld [vmem:[%s0 + $0x258] sm:$0xff]
  %v87 = vld [vmem:[%s0 + $0x260] sm:$0xff]
  %v88 = vld [vmem:[%s0 + $0x268] sm:$0xff]
  %v89 = vld [vmem:[%s0 + $0x270] sm:$0xff]
  %v90 = vld [vmem:[%s0 + $0x278] sm:$0xff]
  %v91 = vld [vmem:[%s0 + $0x280] sm:$0xff]
  %v92 = vld [vmem:[%s0 + $0x288] sm:$0xff]
  %v93 = vld [vmem:[%s0 + $0x290] sm:$0xff]
  %v94 = vld [vmem:[%s0 + $0x298] sm:$0xff]
  %v95 = vld [vmem:[%s0 + $0x2a0] sm:$0xff]
  %v96 = vld [vmem:[%s0 + $0x2a8] sm:$0xff]
  %v97 = vld [vmem:[%s0 + $0x2b0] sm:$0xff]
  %v98 = vld [vmem:[%s0 + $0x2b8] sm:$0xff]
  %v99 = vld [vmem:[%s0 + $0x2c0] sm:$0xff]
  %v100 = vld [vmem:[%s0 + $0x2c8] sm:$0xff]
  %v101 = vld [vmem:[%s0 + $0x2d0] sm:$0xff]
  %v102 = vld [vmem:[%s0 + $0x2d8] sm:$0xff]
  %v103 = vld [vmem:[%s0 + $0x2e0] sm:$0xff]
  %v104 = vld [vmem:[%s0 + $0x2e8] sm:$0xff]
  %v105 = vld [vmem:[%s0 + $0x2f0] sm:$0xff]
  %v106 = vld [vmem:[%s0 + $0x2f8] sm:$0xff]
  %v107 = vld [vmem:[%s0 + $0x300] sm:$0xff]
  %v108 = vld [vmem:[%s0 + $0x308] sm:$0xff]
  %v109 = vld [vmem:[%s0 + $0x310] sm:$0xff]
  %v110 = vld [vmem:[%s0 + $0x318] sm:$0xff]
  %v111 = vld [vmem:[%s0 + $0x320] sm:$0xff]
  %v112 = vld [vmem:[%s0 + $0x328] sm:$0xff]
  %v113 = vld [vmem:[%s0 + $0x330] sm:$0xff]
  %v114 = vld [vmem:[%s0 + $0x338] sm:$0xff]
  %v115 = vld [vmem:[%s0 + $0x340] sm:$0xff]
  %v116 = vld [vmem:[%s0 + $0x348] sm:$0xff]
  %v117 = vld [vmem:[%s0 + $0x350] sm:$0xff]
  %v118 = vld [vmem:[%s0 + $0x358] sm:$0xff]
  %v119 = vld [vmem:[%s0 + $0x360] sm:$0xff]
  %v120 = vld [vmem:[%s0 + $0x368] sm:$0xff]
  %v121 = vld [vmem:[%s0 + $0x370] sm:$0xff]
  %v122 = vld [vmem:[%s0 + $0x378] sm:$0xff]
  %v123 = vld [vmem:[%s0 + $0x380] sm:$0xff]
  %v124 = vld [vmem:[%s0 + $0x388] sm:$0xff]
  %v125 = vld [vmem:[%s0 + $0x390] sm:$0xff]
  %v126 = vld [vmem:[%s0 + $0x398] sm:$0xff]
  %v127 = vld [vmem:[%s0 + $0x3a0] sm:$0xff]
  %v128 = vld [vmem:[%s0 + $0x3a8] sm:$0xff]
  %v129 = vld [vmem:[%s0 + $0x3b0] sm:$0xff]
  %v130 = vld [vmem:[%s0 + $0x3b8] sm:$0xff]
  %v131 = vld [vmem:[%s0 + $0x3c0] sm:$0xff]
  %v132 = vld [vmem:[%s0 + $0x3c8] sm:$0xff]
  %v133 = vld [vmem:[%s0 + $0x3d0] sm:$0xff]
  %v134 = vld [vmem:[%s0 + $0x3d8] sm:$0xff]
  %v135 = vld [vmem:[%s0 + $0x3e0] sm:$0xff]
  %v136 = vld [vmem:[%s0 + $0x3e8] sm:$0xff]
  %v137 = vld [vmem:[%s0 + $0x3f0] sm:$0xff]
  %v138 = vld [vmem:[%s0 + $0x3f8] sm:$0xff]
  %v139 = vld [vmem:[%s0 + $0x400] sm:$0xff]
  %v140 = vld [vmem:[%s0 + $0x408] sm:$0xff]
  %v141 = vld [vmem:[%s0 + $0x410] sm:$0xff]
  %v142 = vld [vmem:[%s0 + $0x418] sm:$0xff]
  %v143 = vld [vmem:[%s0 + $0x420] sm:$0xff]
  %v144 = vld [vmem:[%s0 + $0x428] sm:$0xff]
  %v145 = vld [vmem:[%s0 + $0x430] sm:$0xff]
  %v146 = vld [vmem:[%s0 + $0x438] sm:$0xff]
  %v147 = vld [vmem:[%s0 + $0x440] sm:$0xff]
  %v148 = vld [vmem:[%s0 + $0x448] sm:$0xff]
  %v149 = vld [vmem:[%s0 + $0x450] sm:$0xff]
  %v150 = vld [vmem:[%s0 + $0x458] sm:$0xff]
  %v151 = vld [vmem:[%s0 + $0x460] sm:$0xff]
  %v152 = vld [vmem:[%s0 + $0x468] sm:$0xff]
  %v153 = vld [vmem:[%s0 + $0x470] sm:$0xff]
  %v154 = vld [vmem:[%s0 + $0x478] sm:$0xff]
  %v155 = vld [vmem:[%s0 + $0x480] sm:$0xff]
  %v156 = vld [vmem:[%s0 + $0x488] sm:$0xff]
  %v157 = vld [vmem:[%s0 + $0x490] sm:$0xff]
  %v158 = vld [vmem:[%s0 + $0x498] sm:$0xff]
  %v159 = vld [vmem:[%s0 + $0x4a0] sm:$0xff]
  %v160 = vld [vmem:[%s0 + $0x4a8] sm:$0xff]
  %v161 = vld [vmem:[%s0 + $0x4b0] sm:$0xff]
  %v162 = vld [vmem:[%s0 + $0x4b8] sm:$0xff]
  %v163 = vld [vmem:[%s0 + $0x4c0] sm:$0xff]
  %v164 = vld [vmem:[%s0 + $0x4c8] sm:$0xff]
  %v165 = vld [vmem:[%s0 + $0x4d0] sm:$0xff]
  %v166 = vld [vmem:[%s0 + $0x4d8] sm:$0xff]
  %v167 = vld [vmem:[%s0 + $0x4e0] sm:$0xff]
  %v168 = vld [vmem:[%s0 + $0x4e8] sm:$0xff]
  %v169 = vld [vmem:[%s0 + $0x4f0] sm:$0xff]
  %v170 = vld [vmem:[%s0 + $0x4f8] sm:$0xff]
  %v171 = vld [vmem:[%s0 + $0x500] sm:$0xff]
  %v172 = vld [vmem:[%s0 + $0x508] sm:$0xff]
  %v173 = vld [vmem:[%s0 + $0x510] sm:$0xff]
  %v174 = vld [vmem:[%s0 + $0x518] sm:$0xff]
  %v175 = vld [vmem:[%s0 + $0x520] sm:$0xff]
  %v176 = vld [vmem:[%s0 + $0x528] sm:$0xff]
  %v177 = vld [vmem:[%s0 + $0x530] sm:$0xff]
  %v178 = vld [vmem:[%s0 + $0x538] sm:$0xff]
  %v179 = vld [vmem:[%s0 + $0x540] sm:$0xff]
  %v180 = vld [vmem:[%s0 + $0x548] sm:$0xff]
  %v181 = vld [vmem:[%s0 + $0x550] sm:$0xff]
  %v182 = vld [vmem:[%s0 + $0x558] sm:$0xff]
  %v183 = vld [vmem:[%s0 + $0x560] sm:$0xff]
  %v184 = vld [vmem:[%s0 + $0x568] sm:$0xff]
  %v185 = vld [vmem:[%s0 + $0x570] sm:$0xff]
  %v186 = vld [vmem:[%s0 + $0x578] sm:$0xff]
  %v187 = vld [vmem:[%s0 + $0x580] sm:$0xff]
  %v188 = vld [vmem:[%s0 + $0x588] sm:$0xff]
  %v189 = vld [vmem:[%s0 + $0x590] sm:$0xff]
  %v190 = vld [vmem:[%s0 + $0x598] sm:$0xff]
  %v191 = vld [vmem:[%s0 + $0x5a0] sm:$0xff]
  %v192 = vld [vmem:[%s0 + $0x5a8] sm:$0xff]
  %v193 = vld [vmem:[%s0 + $0x5b0] sm:$0xff]
  %v194 = vld [vmem:[%s0 + $0x5b8] sm:$0xff]
  %v195 = vld [vmem:[%s0 + $0x5c0] sm:$0xff]
  %v196 = vld [vmem:[%s0 + $0x5c8] sm:$0xff]
  %v197 = vld [vmem:[%s0 + $0x5d0] sm:$0xff]
  %v198 = vld [vmem:[%s0 + $0x5d8] sm:$0xff]
  %v199 = vld [vmem:[%s0 + $0x5e0] sm:$0xff]
  %v200 = vld [vmem:[%s0 + $0x5e8] sm:$0xff]
  %v201 = vld [vmem:[%s0 + $0x5f0] sm:$0xff]
  %v202 = vld [vmem:[%s0 + $0x5f8] sm:$0xff]
  %v203 = vld [vmem:[%s1] sm:$0xff]
  %v204 = vld [vmem:[%s1 + $0x8] sm:$0xff]
  %v205 = vld [vmem:[%s1 + $0x10] sm:$0xff]
  %v206 = vld [vmem:[%s1 + $0x18] sm:$0xff]
  %v207 = vld [vmem:[%s1 + $0x20] sm:$0xf]
  %v208 = vld [vmem:[%s1 + $0x28] sm:$0x1]
  %v209 = vlaneseq
  %v210 = vshrl.u32 %v209, 7
  %v211 = vsub.s32 0, %v210
  %v212 = vrot.slane %v208, %v211
  %vm213 = vcmask 293888
  %v215 = vsel %vm213, %v11, 0
  %v218 = vsel %vm213, %v12, 0
  %v221 = vsel %vm213, %v13, 0
  %v224 = vsel %vm213, %v14, 0
  %v227 = vsel %vm213, %v15, 0
  %v230 = vsel %vm213, %v16, 0
  %v233 = vsel %vm213, %v17, 0
  %v236 = vsel %vm213, %v18, 0
  %v239 = vsel %vm213, %v19, 0
  %v242 = vsel %vm213, %v20, 0
  %v245 = vsel %vm213, %v21, 0
  %v248 = vsel %vm213, %v22, 0
  %v251 = vsel %vm213, %v23, 0
  %v254 = vsel %vm213, %v24, 0
  %v257 = vsel %vm213, %v25, 0
  %v260 = vsel %vm213, %v26, 0
  %v263 = vsel %vm213, %v27, 0
  %v266 = vsel %vm213, %v28, 0
  %v269 = vsel %vm213, %v29, 0
  %v272 = vsel %vm213, %v30, 0
  %v275 = vsel %vm213, %v31, 0
  %v278 = vsel %vm213, %v32, 0
  %v281 = vsel %vm213, %v33, 0
  %v284 = vsel %vm213, %v34, 0
  %v287 = vsel %vm213, %v35, 0
  %v290 = vsel %vm213, %v36, 0
  %v293 = vsel %vm213, %v37, 0
  %v296 = vsel %vm213, %v38, 0
  %v299 = vsel %vm213, %v39, 0
  %v302 = vsel %vm213, %v40, 0
  %v305 = vsel %vm213, %v41, 0
  %v308 = vsel %vm213, %v42, 0
  %v311 = vsel %vm213, %v43, 0
  %v314 = vsel %vm213, %v44, 0
  %v317 = vsel %vm213, %v45, 0
  %v320 = vsel %vm213, %v46, 0
  %v323 = vsel %vm213, %v47, 0
  %v326 = vsel %vm213, %v48, 0
  %v329 = vsel %vm213, %v49, 0
  %v332 = vsel %vm213, %v50, 0
  %v335 = vsel %vm213, %v51, 0
  %v338 = vsel %vm213, %v52, 0
  %v341 = vsel %vm213, %v53, 0
  %v344 = vsel %vm213, %v54, 0
  %v347 = vsel %vm213, %v55, 0
  %v350 = vsel %vm213, %v56, 0
  %v353 = vsel %vm213, %v57, 0
  %v356 = vsel %vm213, %v58, 0
  %v359 = vsel %vm213, %v59, 0
  %v362 = vsel %vm213, %v60, 0
  %v365 = vsel %vm213, %v61, 0
  %v368 = vsel %vm213, %v62, 0
  %v371 = vsel %vm213, %v63, 0
  %v374 = vsel %vm213, %v64, 0
  %v377 = vsel %vm213, %v65, 0
  %v380 = vsel %vm213, %v66, 0
  %v383 = vsel %vm213, %v67, 0
  %v386 = vsel %vm213, %v68, 0
  %v389 = vsel %vm213, %v69, 0
  %v392 = vsel %vm213, %v70, 0
  %v395 = vsel %vm213, %v71, 0
  %v398 = vsel %vm213, %v72, 0
  %v401 = vsel %vm213, %v73, 0
  %v404 = vsel %vm213, %v74, 0
  %v407 = vsel %vm213, %v75, 0
  %v410 = vsel %vm213, %v76, 0
  %v413 = vsel %vm213, %v77, 0
  %v416 = vsel %vm213, %v78, 0
  %v419 = vsel %vm213, %v79, 0
  %v422 = vsel %vm213, %v80, 0
  %v425 = vsel %vm213, %v81, 0
  %v428 = vsel %vm213, %v82, 0
  %v431 = vsel %vm213, %v83, 0
  %v434 = vsel %vm213, %v84, 0
  %v437 = vsel %vm213, %v85, 0
  %v440 = vsel %vm213, %v86, 0
  %v443 = vsel %vm213, %v87, 0
  %v446 = vsel %vm213, %v88, 0
  %v449 = vsel %vm213, %v89, 0
  %v452 = vsel %vm213, %v90, 0
  %v455 = vsel %vm213, %v91, 0
  %v458 = vsel %vm213, %v92, 0
  %v461 = vsel %vm213, %v93, 0
  %v464 = vsel %vm213, %v94, 0
  %v467 = vsel %vm213, %v95, 0
  %v470 = vsel %vm213, %v96, 0
  %v473 = vsel %vm213, %v97, 0
  %v476 = vsel %vm213, %v98, 0
  %v479 = vsel %vm213, %v99, 0
  %v482 = vsel %vm213, %v100, 0
  %v485 = vsel %vm213, %v101, 0
  %v488 = vsel %vm213, %v102, 0
  %v491 = vsel %vm213, %v103, 0
  %v494 = vsel %vm213, %v104, 0
  %v497 = vsel %vm213, %v105, 0
  %v500 = vsel %vm213, %v106, 0
  %v503 = vsel %vm213, %v107, 0
  %v506 = vsel %vm213, %v108, 0
  %v509 = vsel %vm213, %v109, 0
  %v512 = vsel %vm213, %v110, 0
  %v515 = vsel %vm213, %v111, 0
  %v518 = vsel %vm213, %v112, 0
  %v521 = vsel %vm213, %v113, 0
  %v524 = vsel %vm213, %v114, 0
  %v527 = vsel %vm213, %v115, 0
  %v530 = vsel %vm213, %v116, 0
  %v533 = vsel %vm213, %v117, 0
  %v536 = vsel %vm213, %v118, 0
  %v539 = vsel %vm213, %v119, 0
  %v542 = vsel %vm213, %v120, 0
  %v545 = vsel %vm213, %v121, 0
  %v548 = vsel %vm213, %v122, 0
  %v551 = vsel %vm213, %v123, 0
  %v554 = vsel %vm213, %v124, 0
  %v557 = vsel %vm213, %v125, 0
  %v560 = vsel %vm213, %v126, 0
  %v563 = vsel %vm213, %v127, 0
  %v566 = vsel %vm213, %v128, 0
  %v569 = vsel %vm213, %v129, 0
  %v572 = vsel %vm213, %v130, 0
  %v575 = vsel %vm213, %v131, 0
  %v578 = vsel %vm213, %v132, 0
  %v581 = vsel %vm213, %v133, 0
  %v584 = vsel %vm213, %v134, 0
  %v587 = vsel %vm213, %v135, 0
  %v590 = vsel %vm213, %v136, 0
  %v593 = vsel %vm213, %v137, 0
  %v596 = vsel %vm213, %v138, 0
  %v599 = vsel %vm213, %v139, 0
  %v602 = vsel %vm213, %v140, 0
  %v605 = vsel %vm213, %v141, 0
  %v608 = vsel %vm213, %v142, 0
  %v611 = vsel %vm213, %v143, 0
  %v614 = vsel %vm213, %v144, 0
  %v617 = vsel %vm213, %v145, 0
  %v620 = vsel %vm213, %v146, 0
  %v623 = vsel %vm213, %v147, 0
  %v626 = vsel %vm213, %v148, 0
  %v629 = vsel %vm213, %v149, 0
  %v632 = vsel %vm213, %v150, 0
  %v635 = vsel %vm213, %v151, 0
  %v638 = vsel %vm213, %v152, 0
  %v641 = vsel %vm213, %v153, 0
  %v644 = vsel %vm213, %v154, 0
  %v647 = vsel %vm213, %v155, 0
  %v650 = vsel %vm213, %v156, 0
  %v653 = vsel %vm213, %v157, 0
  %v656 = vsel %vm213, %v158, 0
  %v659 = vsel %vm213, %v159, 0
  %v662 = vsel %vm213, %v160, 0
  %v665 = vsel %vm213, %v161, 0
  %v668 = vsel %vm213, %v162, 0
  %v671 = vsel %vm213, %v163, 0
  %v674 = vsel %vm213, %v164, 0
  %v677 = vsel %vm213, %v165, 0
  %v680 = vsel %vm213, %v166, 0
  %v683 = vsel %vm213, %v167, 0
  %v686 = vsel %vm213, %v168, 0
  %v689 = vsel %vm213, %v169, 0
  %v692 = vsel %vm213, %v170, 0
  %v695 = vsel %vm213, %v171, 0
  %v698 = vsel %vm213, %v172, 0
  %v701 = vsel %vm213, %v173, 0
  %v704 = vsel %vm213, %v174, 0
  %v707 = vsel %vm213, %v175, 0
  %v710 = vsel %vm213, %v176, 0
  %v713 = vsel %vm213, %v177, 0
  %v716 = vsel %vm213, %v178, 0
  %v719 = vsel %vm213, %v179, 0
  %v722 = vsel %vm213, %v180, 0
  %v725 = vsel %vm213, %v181, 0
  %v728 = vsel %vm213, %v182, 0
  %v731 = vsel %vm213, %v183, 0
  %v734 = vsel %vm213, %v184, 0
  %v737 = vsel %vm213, %v185, 0
  %v740 = vsel %vm213, %v186, 0
  %v743 = vsel %vm213, %v187, 0
  %v746 = vsel %vm213, %v188, 0
  %v749 = vsel %vm213, %v189, 0
  %v752 = vsel %vm213, %v190, 0
  %v755 = vsel %vm213, %v191, 0
  %v758 = vsel %vm213, %v192, 0
  %v761 = vsel %vm213, %v193, 0
  %v764 = vsel %vm213, %v194, 0
  %v767 = vsel %vm213, %v195, 0
  %v770 = vsel %vm213, %v196, 0
  %v773 = vsel %vm213, %v197, 0
  %v776 = vsel %vm213, %v198, 0
  %v779 = vsel %vm213, %v199, 0
  %v782 = vsel %vm213, %v200, 0
  %v785 = vsel %vm213, %v201, 0
  %v788 = vsel %vm213, %v202, 0
  %vm790 = vcmask 1043456
  %v792 = vsel %vm790, %v207, 0
  %794 = vmatprep.subr.mxu0 0.0
  %795 = vmatpush1.msra.mxu0 %v203
  %796 = vmatprep.subr.mxu0 0.0
  %797 = vmatpush1.msra.mxu0 %v204
  %798 = vmatprep.subr.mxu0 0.0
  %799 = vmatpush1.msra.mxu0 %v205
  %800 = vmatprep.subr.mxu0 0.0
  %801 = vmatpush1.msra.mxu0 %v206
  %802 = vmatprep.subr.mxu0 0.0
  %803 = vmatpush1.msra.mxu0 %v792
  %804 = vmatprep.subr.mxu0 0.0
  %805 = vmatpush1.msra.mxu0 0.0
  %806 = vmatprep.subr.mxu0 0.0
  %807 = vmatpush1.msra.mxu0 0.0
  %808 = vmatprep.subr.mxu0 0.0
  %809 = vmatpush1.msra.mxu0 0.0
  %810 = vmatprep.subr.mxu0 0.0
  %811 = vmatpush1.msra.mxu0 0.0
  %812 = vmatprep.subr.mxu0 0.0
  %813 = vmatpush1.msra.mxu0 0.0
  %814 = vmatprep.subr.mxu0 0.0
  %815 = vmatpush1.msra.mxu0 0.0
  %816 = vmatprep.subr.mxu0 0.0
  %817 = vmatpush1.msra.mxu0 0.0
  %818 = vmatprep.subr.mxu0 0.0
  %819 = vmatpush1.msra.mxu0 0.0
  %820 = vmatprep.subr.mxu0 0.0
  %821 = vmatpush1.msra.mxu0 0.0
  %822 = vmatprep.subr.mxu0 0.0
  %823 = vmatpush1.msra.mxu0 0.0
  %824 = vmatprep.subr.mxu0 0.0
  %825 = vmatpush1.msra.mxu0 0.0
  %826 = vmatprep.subr.mxu0 0.0
  %827 = vmatpush1.msra.mxu0 0.0
  %828 = vmatprep.subr.mxu0 0.0
  %829 = vmatpush1.msra.mxu0 0.0
  %830 = vmatprep.subr.mxu0 0.0
  %831 = vmatpush1.msra.mxu0 0.0
  %832 = vmatprep.subr.mxu0 0.0
  %833 = vmatpush1.msra.mxu0 0.0
  %834 = vmatprep.subr.mxu0 0.0
  %835 = vmatpush1.msra.mxu0 0.0
  %836 = vmatprep.subr.mxu0 0.0
  %837 = vmatpush1.msra.mxu0 0.0
  %838 = vmatprep.subr.mxu0 0.0
  %839 = vmatpush1.msra.mxu0 0.0
  %840 = vmatprep.subr.mxu0 0.0
  %841 = vmatpush1.msra.mxu0 0.0
  %842 = vmatprep.subr.mxu0 0.0
  %843 = vmatpush1.msra.mxu0 0.0
  %844 = vmatprep.subr.mxu0 0.0
  %845 = vmatpush1.msra.mxu0 0.0
  %846 = vmatprep.subr.mxu0 0.0
  %847 = vmatpush1.msra.mxu0 0.0
  %848 = vmatprep.subr.mxu0 0.0
  %849 = vmatpush1.msra.mxu0 0.0
  %850 = vmatprep.subr.mxu0 0.0
  %851 = vmatpush1.msra.mxu0 0.0
  %852 = vmatprep.subr.mxu0 0.0
  %853 = vmatpush1.msra.mxu0 0.0
  %854 = vmatprep.subr.mxu0 0.0
  %855 = vmatpush1.msra.mxu0 0.0
  %856 = vmatprep.subr.mxu0 0.0
  %857 = vmatpush1.msra.mxu0 0.0
  %858 = vmatprep.mubr.f32.mxu0 0.0
  %859 = vmatmul.mubr.f32.gmra.mrb[0].mxu0 %v215
  %v860 = vpop.f32.mrb[0].mxu0
  %v861 = vadd.f32 %v212, %v860
  %v862 = vpop.f32.mrb[0].mxu0
  %863 = vmatprep.mubr.f32.mxu0 0.0
  %864 = vmatmul.mubr.f32.gmra.mrb[0].mxu0 %v218
  %v865 = vpop.f32.mrb[0].mxu0
  %v866 = vadd.f32 %v212, %v865
  %v867 = vpop.f32.mrb[0].mxu0
  %868 = vmatprep.mubr.f32.mxu0 0.0
  %869 = vmatmul.mubr.f32.gmra.mrb[0].mxu0 %v221
  %v870 = vpop.f32.mrb[0].mxu0
  %v871 = vadd.f32 %v212, %v870
  %v872 = vpop.f32.mrb[0].mxu0
  %873 = vmatprep.mubr.f32.mxu0 0.0
  %874 = vmatmul.mubr.f32.gmra.mrb[0].mxu0 %v224
  %v875 = vpop.f32.mrb[0].mxu0
  %v876 = vadd.f32 %v212, %v875
  %v877 = vpop.f32.mrb[0].mxu0
  %878 = vmatprep.mubr.f32.mxu0 0.0
  %879 = vmatmul.mubr.f32.gmra.mrb[0].mxu0 %v227
  %v880 = vpop.f32.mrb[0].mxu0
  %v881 = vadd.f32 %v212, %v880
  %v882 = vpop.f32.mrb[0].mxu0
  %883 = vmatprep.mubr.f32.mxu0 0.0
  %884 = vmatmul.mubr.f32.gmra.mrb[0].mxu0 %v230
  %v885 = vpop.f32.mrb[0].mxu0
  %v886 = vadd.f32 %v212, %v885
  %v887 = vpop.f32.mrb[0].mxu0
  %888 = vmatprep.mubr.f32.mxu0 0.0
  %889 = vmatmul.mubr.f32.gmra.mrb[0].mxu0 %v233
  %v890 = vpop.f32.mrb[0].mxu0
  %v891 = vadd.f32 %v212, %v890
  %v892 = vpop.f32.mrb[0].mxu0
  %893 = vmatprep.mubr.f32.mxu0 0.0
  %894 = vmatmul.mubr.f32.gmra.mrb[0].mxu0 %v236
  %v895 = vpop.f32.mrb[0].mxu0
  %v896 = vadd.f32 %v212, %v895
  %v897 = vpop.f32.mrb[0].mxu0
  %898 = vmatprep.mubr.f32.mxu0 0.0
  %899 = vmatmul.mubr.f32.gmra.mrb[0].mxu0 %v239
  %v900 = vpop.f32.mrb[0].mxu0
  %v901 = vadd.f32 %v212, %v900
  %v902 = vpop.f32.mrb[0].mxu0
  %903 = vmatprep.mubr.f32.mxu0 0.0
  %904 = vmatmul.mubr.f32.gmra.mrb[0].mxu0 %v242
  %v905 = vpop.f32.mrb[0].mxu0
  %v906 = vadd.f32 %v212, %v905
  %v907 = vpop.f32.mrb[0].mxu0
  %908 = vmatprep.mubr.f32.mxu0 0.0
  %909 = vmatmul.mubr.f32.gmra.mrb[0].mxu0 %v245
  %v910 = vpop.f32.mrb[0].mxu0
  %v911 = vadd.f32 %v212, %v910
  %v912 = vpop.f32.mrb[0].mxu0
  %913 = vmatprep.mubr.f32.mxu0 0.0
  %914 = vmatmul.mubr.f32.gmra.mrb[0].mxu0 %v248
  %v915 = vpop.f32.mrb[0].mxu0
  %v916 = vadd.f32 %v212, %v915
  %v917 = vpop.f32.mrb[0].mxu0
  %918 = vmatprep.mubr.f32.mxu0 0.0
  %919 = vmatmul.mubr.f32.gmra.mrb[0].mxu0 %v251
  %v920 = vpop.f32.mrb[0].mxu0
  %v921 = vadd.f32 %v212, %v920
  %v922 = vpop.f32.mrb[0].mxu0
  %923 = vmatprep.mubr.f32.mxu0 0.0
  %924 = vmatmul.mubr.f32.gmra.mrb[0].mxu0 %v254
  %v925 = vpop.f32.mrb[0].mxu0
  %v926 = vadd.f32 %v212, %v925
  %v927 = vpop.f32.mrb[0].mxu0
  %928 = vmatprep.mubr.f32.mxu0 0.0
  %929 = vmatmul.mubr.f32.gmra.mrb[0].mxu0 %v257
  %v930 = vpop.f32.mrb[0].mxu0
  %v931 = vadd.f32 %v212, %v930
  %v932 = vpop.f32.mrb[0].mxu0
  %933 = vmatprep.mubr.f32.mxu0 0.0
  %934 = vmatmul.mubr.f32.gmra.mrb[0].mxu0 %v260
  %v935 = vpop.f32.mrb[0].mxu0
  %v936 = vadd.f32 %v212, %v935
  %v937 = vpop.f32.mrb[0].mxu0
  %938 = vmatprep.mubr.f32.mxu0 0.0
  %939 = vmatmul.mubr.f32.gmra.mrb[0].mxu0 %v263
  %v940 = vpop.f32.mrb[0].mxu0
  %v941 = vadd.f32 %v212, %v940
  %v942 = vpop.f32.mrb[0].mxu0
  %943 = vmatprep.mubr.f32.mxu0 0.0
  %944 = vmatmul.mubr.f32.gmra.mrb[0].mxu0 %v266
  %v945 = vpop.f32.mrb[0].mxu0
  %v946 = vadd.f32 %v212, %v945
  %v947 = vpop.f32.mrb[0].mxu0
  %948 = vmatprep.mubr.f32.mxu0 0.0
  %949 = vmatmul.mubr.f32.gmra.mrb[0].mxu0 %v269
  %v950 = vpop.f32.mrb[0].mxu0
  %v951 = vadd.f32 %v212, %v950
  %v952 = vpop.f32.mrb[0].mxu0
  %953 = vmatprep.mubr.f32.mxu0 0.0
  %954 = vmatmul.mubr.f32.gmra.mrb[0].mxu0 %v272
  %v955 = vpop.f32.mrb[0].mxu0
  %v956 = vadd.f32 %v212, %v955
  %v957 = vpop.f32.mrb[0].mxu0
  %958 = vmatprep.mubr.f32.mxu0 0.0
  %959 = vmatmul.mubr.f32.gmra.mrb[0].mxu0 %v275
  %v960 = vpop.f32.mrb[0].mxu0
  %v961 = vadd.f32 %v212, %v960
  %v962 = vpop.f32.mrb[0].mxu0
  %963 = vmatprep.mubr.f32.mxu0 0.0
  %964 = vmatmul.mubr.f32.gmra.mrb[0].mxu0 %v278
  %v965 = vpop.f32.mrb[0].mxu0
  %v966 = vadd.f32 %v212, %v965
  %v967 = vpop.f32.mrb[0].mxu0
  %968 = vmatprep.mubr.f32.mxu0 0.0
  %969 = vmatmul.mubr.f32.gmra.mrb[0].mxu0 %v281
  %v970 = vpop.f32.mrb[0].mxu0
  %v971 = vadd.f32 %v212, %v970
  %v972 = vpop.f32.mrb[0].mxu0
  %973 = vmatprep.mubr.f32.mxu0 0.0
  %974 = vmatmul.mubr.f32.gmra.mrb[0].mxu0 %v284
  %v975 = vpop.f32.mrb[0].mxu0
  %v976 = vadd.f32 %v212, %v975
  %v977 = vpop.f32.mrb[0].mxu0
  %978 = vmatprep.mubr.f32.mxu0 0.0
  %979 = vmatmul.mubr.f32.gmra.mrb[0].mxu0 %v287
  %v980 = vpop.f32.mrb[0].mxu0
  %v981 = vadd.f32 %v212, %v980
  %v982 = vpop.f32.mrb[0].mxu0
  %983 = vmatprep.mubr.f32.mxu0 0.0
  %984 = vmatmul.mubr.f32.gmra.mrb[0].mxu0 %v290
  %v985 = vpop.f32.mrb[0].mxu0
  %v986 = vadd.f32 %v212, %v985
  %v987 = vpop.f32.mrb[0].mxu0
  %988 = vmatprep.mubr.f32.mxu0 0.0
  %989 = vmatmul.mubr.f32.gmra.mrb[0].mxu0 %v293
  %v990 = vpop.f32.mrb[0].mxu0
  %v991 = vadd.f32 %v212, %v990
  %v992 = vpop.f32.mrb[0].mxu0
  %993 = vmatprep.mubr.f32.mxu0 0.0
  %994 = vmatmul.mubr.f32.gmra.mrb[0].mxu0 %v296
  %v995 = vpop.f32.mrb[0].mxu0
  %v996 = vadd.f32 %v212, %v995
  %v997 = vpop.f32.mrb[0].mxu0
  %998 = vmatprep.mubr.f32.mxu0 0.0
  %999 = vmatmul.mubr.f32.gmra.mrb[0].mxu0 %v299
  %v1000 = vpop.f32.mrb[0].mxu0
  %v1001 = vadd.f32 %v212, %v1000
  %v1002 = vpop.f32.mrb[0].mxu0
  %1003 = vmatprep.mubr.f32.mxu0 0.0
  %1004 = vmatmul.mubr.f32.gmra.mrb[0].mxu0 %v302
  %v1005 = vpop.f32.mrb[0].mxu0
  %v1006 = vadd.f32 %v212, %v1005
  %v1007 = vpop.f32.mrb[0].mxu0
  %1008 = vmatprep.mubr.f32.mxu0 0.0
  %1009 = vmatmul.mubr.f32.gmra.mrb[0].mxu0 %v305
  %v1010 = vpop.f32.mrb[0].mxu0
  %v1011 = vadd.f32 %v212, %v1010
  %v1012 = vpop.f32.mrb[0].mxu0
  %1013 = vmatprep.mubr.f32.mxu0 0.0
  %1014 = vmatmul.mubr.f32.gmra.mrb[0].mxu0 %v308
  %v1015 = vpop.f32.mrb[0].mxu0
  %v1016 = vadd.f32 %v212, %v1015
  %v1017 = vpop.f32.mrb[0].mxu0
  %1018 = vmatprep.mubr.f32.mxu0 0.0
  %1019 = vmatmul.mubr.f32.gmra.mrb[0].mxu0 %v311
  %v1020 = vpop.f32.mrb[0].mxu0
  %v1021 = vadd.f32 %v212, %v1020
  %v1022 = vpop.f32.mrb[0].mxu0
  %1023 = vmatprep.mubr.f32.mxu0 0.0
  %1024 = vmatmul.mubr.f32.gmra.mrb[0].mxu0 %v314
  %v1025 = vpop.f32.mrb[0].mxu0
  %v1026 = vadd.f32 %v212, %v1025
  %v1027 = vpop.f32.mrb[0].mxu0
  %1028 = vmatprep.mubr.f32.mxu0 0.0
  %1029 = vmatmul.mubr.f32.gmra.mrb[0].mxu0 %v317
  %v1030 = vpop.f32.mrb[0].mxu0
  %v1031 = vadd.f32 %v212, %v1030
  %v1032 = vpop.f32.mrb[0].mxu0
  %1033 = vmatprep.mubr.f32.mxu0 0.0
  %1034 = vmatmul.mubr.f32.gmra.mrb[0].mxu0 %v320
  %v1035 = vpop.f32.mrb[0].mxu0
  %v1036 = vadd.f32 %v212, %v1035
  %v1037 = vpop.f32.mrb[0].mxu0
  %1038 = vmatprep.mubr.f32.mxu0 0.0
  %1039 = vmatmul.mubr.f32.gmra.mrb[0].mxu0 %v323
  %v1040 = vpop.f32.mrb[0].mxu0
  %v1041 = vadd.f32 %v212, %v1040
  %v1042 = vpop.f32.mrb[0].mxu0
  %1043 = vmatprep.mubr.f32.mxu0 0.0
  %1044 = vmatmul.mubr.f32.gmra.mrb[0].mxu0 %v326
  %v1045 = vpop.f32.mrb[0].mxu0
  %v1046 = vadd.f32 %v212, %v1045
  %v1047 = vpop.f32.mrb[0].mxu0
  %1048 = vmatprep.mubr.f32.mxu0 0.0
  %1049 = vmatmul.mubr.f32.gmra.mrb[0].mxu0 %v329
  %v1050 = vpop.f32.mrb[0].mxu0
  %v1051 = vadd.f32 %v212, %v1050
  %v1052 = vpop.f32.mrb[0].mxu0
  %1053 = vmatprep.mubr.f32.mxu0 0.0
  %1054 = vmatmul.mubr.f32.gmra.mrb[0].mxu0 %v332
  %v1055 = vpop.f32.mrb[0].mxu0
  %v1056 = vadd.f32 %v212, %v1055
  %v1057 = vpop.f32.mrb[0].mxu0
  %1058 = vmatprep.mubr.f32.mxu0 0.0
  %1059 = vmatmul.mubr.f32.gmra.mrb[0].mxu0 %v335
  %v1060 = vpop.f32.mrb[0].mxu0
  %v1061 = vadd.f32 %v212, %v1060
  %v1062 = vpop.f32.mrb[0].mxu0
  %1063 = vmatprep.mubr.f32.mxu0 0.0
  %1064 = vmatmul.mubr.f32.gmra.mrb[0].mxu0 %v338
  %v1065 = vpop.f32.mrb[0].mxu0
  %v1066 = vadd.f32 %v212, %v1065
  %v1067 = vpop.f32.mrb[0].mxu0
  %1068 = vmatprep.mubr.f32.mxu0 0.0
  %1069 = vmatmul.mubr.f32.gmra.mrb[0].mxu0 %v341
  %v1070 = vpop.f32.mrb[0].mxu0
  %v1071 = vadd.f32 %v212, %v1070
  %v1072 = vpop.f32.mrb[0].mxu0
  %1073 = vmatprep.mubr.f32.mxu0 0.0
  %1074 = vmatmul.mubr.f32.gmra.mrb[0].mxu0 %v344
  %v1075 = vpop.f32.mrb[0].mxu0
  %v1076 = vadd.f32 %v212, %v1075
  %v1077 = vpop.f32.mrb[0].mxu0
  %1078 = vmatprep.mubr.f32.mxu0 0.0
  %1079 = vmatmul.mubr.f32.gmra.mrb[0].mxu0 %v347
  %v1080 = vpop.f32.mrb[0].mxu0
  %v1081 = vadd.f32 %v212, %v1080
  %v1082 = vpop.f32.mrb[0].mxu0
  %1083 = vmatprep.mubr.f32.mxu0 0.0
  %1084 = vmatmul.mubr.f32.gmra.mrb[0].mxu0 %v350
  %v1085 = vpop.f32.mrb[0].mxu0
  %v1086 = vadd.f32 %v212, %v1085
  %v1087 = vpop.f32.mrb[0].mxu0
  %1088 = vmatprep.mubr.f32.mxu0 0.0
  %1089 = vmatmul.mubr.f32.gmra.mrb[0].mxu0 %v353
  %v1090 = vpop.f32.mrb[0].mxu0
  %v1091 = vadd.f32 %v212, %v1090
  %v1092 = vpop.f32.mrb[0].mxu0
  %1093 = vmatprep.mubr.f32.mxu0 0.0
  %1094 = vmatmul.mubr.f32.gmra.mrb[0].mxu0 %v356
  %v1095 = vpop.f32.mrb[0].mxu0
  %v1096 = vadd.f32 %v212, %v1095
  %v1097 = vpop.f32.mrb[0].mxu0
  %1098 = vmatprep.mubr.f32.mxu0 0.0
  %1099 = vmatmul.mubr.f32.gmra.mrb[0].mxu0 %v359
  %v1100 = vpop.f32.mrb[0].mxu0
  %v1101 = vadd.f32 %v212, %v1100
  %v1102 = vpop.f32.mrb[0].mxu0
  %1103 = vmatprep.mubr.f32.mxu0 0.0
  %1104 = vmatmul.mubr.f32.gmra.mrb[0].mxu0 %v362
  %v1105 = vpop.f32.mrb[0].mxu0
  %v1106 = vadd.f32 %v212, %v1105
  %v1107 = vpop.f32.mrb[0].mxu0
  %1108 = vmatprep.mubr.f32.mxu0 0.0
  %1109 = vmatmul.mubr.f32.gmra.mrb[0].mxu0 %v365
  %v1110 = vpop.f32.mrb[0].mxu0
  %v1111 = vadd.f32 %v212, %v1110
  %v1112 = vpop.f32.mrb[0].mxu0
  %1113 = vmatprep.mubr.f32.mxu0 0.0
  %1114 = vmatmul.mubr.f32.gmra.mrb[0].mxu0 %v368
  %v1115 = vpop.f32.mrb[0].mxu0
  %v1116 = vadd.f32 %v212, %v1115
  %v1117 = vpop.f32.mrb[0].mxu0
  %1118 = vmatprep.mubr.f32.mxu0 0.0
  %1119 = vmatmul.mubr.f32.gmra.mrb[0].mxu0 %v371
  %v1120 = vpop.f32.mrb[0].mxu0
  %v1121 = vadd.f32 %v212, %v1120
  %v1122 = vpop.f32.mrb[0].mxu0
  %1123 = vmatprep.mubr.f32.mxu0 0.0
  %1124 = vmatmul.mubr.f32.gmra.mrb[0].mxu0 %v374
  %v1125 = vpop.f32.mrb[0].mxu0
  %v1126 = vadd.f32 %v212, %v1125
  %v1127 = vpop.f32.mrb[0].mxu0
  %1128 = vmatprep.mubr.f32.mxu0 0.0
  %1129 = vmatmul.mubr.f32.gmra.mrb[0].mxu0 %v377
  %v1130 = vpop.f32.mrb[0].mxu0
  %v1131 = vadd.f32 %v212, %v1130
  %v1132 = vpop.f32.mrb[0].mxu0
  %1133 = vmatprep.mubr.f32.mxu0 0.0
  %1134 = vmatmul.mubr.f32.gmra.mrb[0].mxu0 %v380
  %v1135 = vpop.f32.mrb[0].mxu0
  %v1136 = vadd.f32 %v212, %v1135
  %v1137 = vpop.f32.mrb[0].mxu0
  %1138 = vmatprep.mubr.f32.mxu0 0.0
  %1139 = vmatmul.mubr.f32.gmra.mrb[0].mxu0 %v383
  %v1140 = vpop.f32.mrb[0].mxu0
  %v1141 = vadd.f32 %v212, %v1140
  %v1142 = vpop.f32.mrb[0].mxu0
  %1143 = vmatprep.mubr.f32.mxu0 0.0
  %1144 = vmatmul.mubr.f32.gmra.mrb[0].mxu0 %v386
  %v1145 = vpop.f32.mrb[0].mxu0
  %v1146 = vadd.f32 %v212, %v1145
  %v1147 = vpop.f32.mrb[0].mxu0
  %1148 = vmatprep.mubr.f32.mxu0 0.0
  %1149 = vmatmul.mubr.f32.gmra.mrb[0].mxu0 %v389
  %v1150 = vpop.f32.mrb[0].mxu0
  %v1151 = vadd.f32 %v212, %v1150
  %v1152 = vpop.f32.mrb[0].mxu0
  %1153 = vmatprep.mubr.f32.mxu0 0.0
  %1154 = vmatmul.mubr.f32.gmra.mrb[0].mxu0 %v392
  %v1155 = vpop.f32.mrb[0].mxu0
  %v1156 = vadd.f32 %v212, %v1155
  %v1157 = vpop.f32.mrb[0].mxu0
  %1158 = vmatprep.mubr.f32.mxu0 0.0
  %1159 = vmatmul.mubr.f32.gmra.mrb[0].mxu0 %v395
  %v1160 = vpop.f32.mrb[0].mxu0
  %v1161 = vadd.f32 %v212, %v1160
  %v1162 = vpop.f32.mrb[0].mxu0
  %1163 = vmatprep.mubr.f32.mxu0 0.0
  %1164 = vmatmul.mubr.f32.gmra.mrb[0].mxu0 %v398
  %v1165 = vpop.f32.mrb[0].mxu0
  %v1166 = vadd.f32 %v212, %v1165
  %v1167 = vpop.f32.mrb[0].mxu0
  %1168 = vmatprep.mubr.f32.mxu0 0.0
  %1169 = vmatmul.mubr.f32.gmra.mrb[0].mxu0 %v401
  %v1170 = vpop.f32.mrb[0].mxu0
  %v1171 = vadd.f32 %v212, %v1170
  %v1172 = vpop.f32.mrb[0].mxu0
  %1173 = vmatprep.mubr.f32.mxu0 0.0
  %1174 = vmatmul.mubr.f32.gmra.mrb[0].mxu0 %v404
  %v1175 = vpop.f32.mrb[0].mxu0
  %v1176 = vadd.f32 %v212, %v1175
  %v1177 = vpop.f32.mrb[0].mxu0
  %1178 = vmatprep.mubr.f32.mxu0 0.0
  %1179 = vmatmul.mubr.f32.gmra.mrb[0].mxu0 %v407
  %v1180 = vpop.f32.mrb[0].mxu0
  %v1181 = vadd.f32 %v212, %v1180
  %v1182 = vpop.f32.mrb[0].mxu0
  %1183 = vmatprep.mubr.f32.mxu0 0.0
  %1184 = vmatmul.mubr.f32.gmra.mrb[0].mxu0 %v410
  %v1185 = vpop.f32.mrb[0].mxu0
  %v1186 = vadd.f32 %v212, %v1185
  %v1187 = vpop.f32.mrb[0].mxu0
  %1188 = vmatprep.mubr.f32.mxu0 0.0
  %1189 = vmatmul.mubr.f32.gmra.mrb[0].mxu0 %v413
  %v1190 = vpop.f32.mrb[0].mxu0
  %v1191 = vadd.f32 %v212, %v1190
  %v1192 = vpop.f32.mrb[0].mxu0
  %1193 = vmatprep.mubr.f32.mxu0 0.0
  %1194 = vmatmul.mubr.f32.gmra.mrb[0].mxu0 %v416
  %v1195 = vpop.f32.mrb[0].mxu0
  %v1196 = vadd.f32 %v212, %v1195
  %v1197 = vpop.f32.mrb[0].mxu0
  %1198 = vmatprep.mubr.f32.mxu0 0.0
  %1199 = vmatmul.mubr.f32.gmra.mrb[0].mxu0 %v419
  %v1200 = vpop.f32.mrb[0].mxu0
  %v1201 = vadd.f32 %v212, %v1200
  %v1202 = vpop.f32.mrb[0].mxu0
  %1203 = vmatprep.mubr.f32.mxu0 0.0
  %1204 = vmatmul.mubr.f32.gmra.mrb[0].mxu0 %v422
  %v1205 = vpop.f32.mrb[0].mxu0
  %v1206 = vadd.f32 %v212, %v1205
  %v1207 = vpop.f32.mrb[0].mxu0
  %1208 = vmatprep.mubr.f32.mxu0 0.0
  %1209 = vmatmul.mubr.f32.gmra.mrb[0].mxu0 %v425
  %v1210 = vpop.f32.mrb[0].mxu0
  %v1211 = vadd.f32 %v212, %v1210
  %v1212 = vpop.f32.mrb[0].mxu0
  %1213 = vmatprep.mubr.f32.mxu0 0.0
  %1214 = vmatmul.mubr.f32.gmra.mrb[0].mxu0 %v428
  %v1215 = vpop.f32.mrb[0].mxu0
  %v1216 = vadd.f32 %v212, %v1215
  %v1217 = vpop.f32.mrb[0].mxu0
  %1218 = vmatprep.mubr.f32.mxu0 0.0
  %1219 = vmatmul.mubr.f32.gmra.mrb[0].mxu0 %v431
  %v1220 = vpop.f32.mrb[0].mxu0
  %v1221 = vadd.f32 %v212, %v1220
  %v1222 = vpop.f32.mrb[0].mxu0
  %1223 = vmatprep.mubr.f32.mxu0 0.0
  %1224 = vmatmul.mubr.f32.gmra.mrb[0].mxu0 %v434
  %v1225 = vpop.f32.mrb[0].mxu0
  %v1226 = vadd.f32 %v212, %v1225
  %v1227 = vpop.f32.mrb[0].mxu0
  %1228 = vmatprep.mubr.f32.mxu0 0.0
  %1229 = vmatmul.mubr.f32.gmra.mrb[0].mxu0 %v437
  %v1230 = vpop.f32.mrb[0].mxu0
  %v1231 = vadd.f32 %v212, %v1230
  %v1232 = vpop.f32.mrb[0].mxu0
  %1233 = vmatprep.mubr.f32.mxu0 0.0
  %1234 = vmatmul.mubr.f32.gmra.mrb[0].mxu0 %v440
  %v1235 = vpop.f32.mrb[0].mxu0
  %v1236 = vadd.f32 %v212, %v1235
  %v1237 = vpop.f32.mrb[0].mxu0
  %1238 = vmatprep.mubr.f32.mxu0 0.0
  %1239 = vmatmul.mubr.f32.gmra.mrb[0].mxu0 %v443
  %v1240 = vpop.f32.mrb[0].mxu0
  %v1241 = vadd.f32 %v212, %v1240
  %v1242 = vpop.f32.mrb[0].mxu0
  %1243 = vmatprep.mubr.f32.mxu0 0.0
  %1244 = vmatmul.mubr.f32.gmra.mrb[0].mxu0 %v446
  %v1245 = vpop.f32.mrb[0].mxu0
  %v1246 = vadd.f32 %v212, %v1245
  %v1247 = vpop.f32.mrb[0].mxu0
  %1248 = vmatprep.mubr.f32.mxu0 0.0
  %1249 = vmatmul.mubr.f32.gmra.mrb[0].mxu0 %v449
  %v1250 = vpop.f32.mrb[0].mxu0
  %v1251 = vadd.f32 %v212, %v1250
  %v1252 = vpop.f32.mrb[0].mxu0
  %1253 = vmatprep.mubr.f32.mxu0 0.0
  %1254 = vmatmul.mubr.f32.gmra.mrb[0].mxu0 %v452
  %v1255 = vpop.f32.mrb[0].mxu0
  %v1256 = vadd.f32 %v212, %v1255
  %v1257 = vpop.f32.mrb[0].mxu0
  %1258 = vmatprep.mubr.f32.mxu0 0.0
  %1259 = vmatmul.mubr.f32.gmra.mrb[0].mxu0 %v455
  %v1260 = vpop.f32.mrb[0].mxu0
  %v1261 = vadd.f32 %v212, %v1260
  %v1262 = vpop.f32.mrb[0].mxu0
  %1263 = vmatprep.mubr.f32.mxu0 0.0
  %1264 = vmatmul.mubr.f32.gmra.mrb[0].mxu0 %v458
  %v1265 = vpop.f32.mrb[0].mxu0
  %v1266 = vadd.f32 %v212, %v1265
  %v1267 = vpop.f32.mrb[0].mxu0
  %1268 = vmatprep.mubr.f32.mxu0 0.0
  %1269 = vmatmul.mubr.f32.gmra.mrb[0].mxu0 %v461
  %v1270 = vpop.f32.mrb[0].mxu0
  %v1271 = vadd.f32 %v212, %v1270
  %v1272 = vpop.f32.mrb[0].mxu0
  %1273 = vmatprep.mubr.f32.mxu0 0.0
  %1274 = vmatmul.mubr.f32.gmra.mrb[0].mxu0 %v464
  %v1275 = vpop.f32.mrb[0].mxu0
  %v1276 = vadd.f32 %v212, %v1275
  %v1277 = vpop.f32.mrb[0].mxu0
  %1278 = vmatprep.mubr.f32.mxu0 0.0
  %1279 = vmatmul.mubr.f32.gmra.mrb[0].mxu0 %v467
  %v1280 = vpop.f32.mrb[0].mxu0
  %v1281 = vadd.f32 %v212, %v1280
  %v1282 = vpop.f32.mrb[0].mxu0
  %1283 = vmatprep.mubr.f32.mxu0 0.0
  %1284 = vmatmul.mubr.f32.gmra.mrb[0].mxu0 %v470
  %v1285 = vpop.f32.mrb[0].mxu0
  %v1286 = vadd.f32 %v212, %v1285
  %v1287 = vpop.f32.mrb[0].mxu0
  %1288 = vmatprep.mubr.f32.mxu0 0.0
  %1289 = vmatmul.mubr.f32.gmra.mrb[0].mxu0 %v473
  %v1290 = vpop.f32.mrb[0].mxu0
  %v1291 = vadd.f32 %v212, %v1290
  %v1292 = vpop.f32.mrb[0].mxu0
  %1293 = vmatprep.mubr.f32.mxu0 0.0
  %1294 = vmatmul.mubr.f32.gmra.mrb[0].mxu0 %v476
  %v1295 = vpop.f32.mrb[0].mxu0
  %v1296 = vadd.f32 %v212, %v1295
  %v1297 = vpop.f32.mrb[0].mxu0
  %1298 = vmatprep.mubr.f32.mxu0 0.0
  %1299 = vmatmul.mubr.f32.gmra.mrb[0].mxu0 %v479
  %v1300 = vpop.f32.mrb[0].mxu0
  %v1301 = vadd.f32 %v212, %v1300
  %v1302 = vpop.f32.mrb[0].mxu0
  %1303 = vmatprep.mubr.f32.mxu0 0.0
  %1304 = vmatmul.mubr.f32.gmra.mrb[0].mxu0 %v482
  %v1305 = vpop.f32.mrb[0].mxu0
  %v1306 = vadd.f32 %v212, %v1305
  %v1307 = vpop.f32.mrb[0].mxu0
  %1308 = vmatprep.mubr.f32.mxu0 0.0
  %1309 = vmatmul.mubr.f32.gmra.mrb[0].mxu0 %v485
  %v1310 = vpop.f32.mrb[0].mxu0
  %v1311 = vadd.f32 %v212, %v1310
  %v1312 = vpop.f32.mrb[0].mxu0
  %1313 = vmatprep.mubr.f32.mxu0 0.0
  %1314 = vmatmul.mubr.f32.gmra.mrb[0].mxu0 %v488
  %v1315 = vpop.f32.mrb[0].mxu0
  %v1316 = vadd.f32 %v212, %v1315
  %v1317 = vpop.f32.mrb[0].mxu0
  %1318 = vmatprep.mubr.f32.mxu0 0.0
  %1319 = vmatmul.mubr.f32.gmra.mrb[0].mxu0 %v491
  %v1320 = vpop.f32.mrb[0].mxu0
  %v1321 = vadd.f32 %v212, %v1320
  %v1322 = vpop.f32.mrb[0].mxu0
  %1323 = vmatprep.mubr.f32.mxu0 0.0
  %1324 = vmatmul.mubr.f32.gmra.mrb[0].mxu0 %v494
  %v1325 = vpop.f32.mrb[0].mxu0
  %v1326 = vadd.f32 %v212, %v1325
  %v1327 = vpop.f32.mrb[0].mxu0
  %1328 = vmatprep.mubr.f32.mxu0 0.0
  %1329 = vmatmul.mubr.f32.gmra.mrb[0].mxu0 %v497
  %v1330 = vpop.f32.mrb[0].mxu0
  %v1331 = vadd.f32 %v212, %v1330
  %v1332 = vpop.f32.mrb[0].mxu0
  %1333 = vmatprep.mubr.f32.mxu0 0.0
  %1334 = vmatmul.mubr.f32.gmra.mrb[0].mxu0 %v500
  %v1335 = vpop.f32.mrb[0].mxu0
  %v1336 = vadd.f32 %v212, %v1335
  %v1337 = vpop.f32.mrb[0].mxu0
  %1338 = vmatprep.mubr.f32.mxu0 0.0
  %1339 = vmatmul.mubr.f32.gmra.mrb[0].mxu0 %v503
  %v1340 = vpop.f32.mrb[0].mxu0
  %v1341 = vadd.f32 %v212, %v1340
  %v1342 = vpop.f32.mrb[0].mxu0
  %1343 = vmatprep.mubr.f32.mxu0 0.0
  %1344 = vmatmul.mubr.f32.gmra.mrb[0].mxu0 %v506
  %v1345 = vpop.f32.mrb[0].mxu0
  %v1346 = vadd.f32 %v212, %v1345
  %v1347 = vpop.f32.mrb[0].mxu0
  %1348 = vmatprep.mubr.f32.mxu0 0.0
  %1349 = vmatmul.mubr.f32.gmra.mrb[0].mxu0 %v509
  %v1350 = vpop.f32.mrb[0].mxu0
  %v1351 = vadd.f32 %v212, %v1350
  %v1352 = vpop.f32.mrb[0].mxu0
  %1353 = vmatprep.mubr.f32.mxu0 0.0
  %1354 = vmatmul.mubr.f32.gmra.mrb[0].mxu0 %v512
  %v1355 = vpop.f32.mrb[0].mxu0
  %v1356 = vadd.f32 %v212, %v1355
  %v1357 = vpop.f32.mrb[0].mxu0
  %1358 = vmatprep.mubr.f32.mxu0 0.0
  %1359 = vmatmul.mubr.f32.gmra.mrb[0].mxu0 %v515
  %v1360 = vpop.f32.mrb[0].mxu0
  %v1361 = vadd.f32 %v212, %v1360
  %v1362 = vpop.f32.mrb[0].mxu0
  %1363 = vmatprep.mubr.f32.mxu0 0.0
  %1364 = vmatmul.mubr.f32.gmra.mrb[0].mxu0 %v518
  %v1365 = vpop.f32.mrb[0].mxu0
  %v1366 = vadd.f32 %v212, %v1365
  %v1367 = vpop.f32.mrb[0].mxu0
  %1368 = vmatprep.mubr.f32.mxu0 0.0
  %1369 = vmatmul.mubr.f32.gmra.mrb[0].mxu0 %v521
  %v1370 = vpop.f32.mrb[0].mxu0
  %v1371 = vadd.f32 %v212, %v1370
  %v1372 = vpop.f32.mrb[0].mxu0
  %1373 = vmatprep.mubr.f32.mxu0 0.0
  %1374 = vmatmul.mubr.f32.gmra.mrb[0].mxu0 %v524
  %v1375 = vpop.f32.mrb[0].mxu0
  %v1376 = vadd.f32 %v212, %v1375
  %v1377 = vpop.f32.mrb[0].mxu0
  %1378 = vmatprep.mubr.f32.mxu0 0.0
  %1379 = vmatmul.mubr.f32.gmra.mrb[0].mxu0 %v527
  %v1380 = vpop.f32.mrb[0].mxu0
  %v1381 = vadd.f32 %v212, %v1380
  %v1382 = vpop.f32.mrb[0].mxu0
  %1383 = vmatprep.mubr.f32.mxu0 0.0
  %1384 = vmatmul.mubr.f32.gmra.mrb[0].mxu0 %v530
  %v1385 = vpop.f32.mrb[0].mxu0
  %v1386 = vadd.f32 %v212, %v1385
  %v1387 = vpop.f32.mrb[0].mxu0
  %1388 = vmatprep.mubr.f32.mxu0 0.0
  %1389 = vmatmul.mubr.f32.gmra.mrb[0].mxu0 %v533
  %v1390 = vpop.f32.mrb[0].mxu0
  %v1391 = vadd.f32 %v212, %v1390
  %v1392 = vpop.f32.mrb[0].mxu0
  %1393 = vmatprep.mubr.f32.mxu0 0.0
  %1394 = vmatmul.mubr.f32.gmra.mrb[0].mxu0 %v536
  %v1395 = vpop.f32.mrb[0].mxu0
  %v1396 = vadd.f32 %v212, %v1395
  %v1397 = vpop.f32.mrb[0].mxu0
  %1398 = vmatprep.mubr.f32.mxu0 0.0
  %1399 = vmatmul.mubr.f32.gmra.mrb[0].mxu0 %v539
  %v1400 = vpop.f32.mrb[0].mxu0
  %v1401 = vadd.f32 %v212, %v1400
  %v1402 = vpop.f32.mrb[0].mxu0
  %1403 = vmatprep.mubr.f32.mxu0 0.0
  %1404 = vmatmul.mubr.f32.gmra.mrb[0].mxu0 %v542
  %v1405 = vpop.f32.mrb[0].mxu0
  %v1406 = vadd.f32 %v212, %v1405
  %v1407 = vpop.f32.mrb[0].mxu0
  %1408 = vmatprep.mubr.f32.mxu0 0.0
  %1409 = vmatmul.mubr.f32.gmra.mrb[0].mxu0 %v545
  %v1410 = vpop.f32.mrb[0].mxu0
  %v1411 = vadd.f32 %v212, %v1410
  %v1412 = vpop.f32.mrb[0].mxu0
  %1413 = vmatprep.mubr.f32.mxu0 0.0
  %1414 = vmatmul.mubr.f32.gmra.mrb[0].mxu0 %v548
  %v1415 = vpop.f32.mrb[0].mxu0
  %v1416 = vadd.f32 %v212, %v1415
  %v1417 = vpop.f32.mrb[0].mxu0
  %1418 = vmatprep.mubr.f32.mxu0 0.0
  %1419 = vmatmul.mubr.f32.gmra.mrb[0].mxu0 %v551
  %v1420 = vpop.f32.mrb[0].mxu0
  %v1421 = vadd.f32 %v212, %v1420
  %v1422 = vpop.f32.mrb[0].mxu0
  %1423 = vmatprep.mubr.f32.mxu0 0.0
  %1424 = vmatmul.mubr.f32.gmra.mrb[0].mxu0 %v554
  %v1425 = vpop.f32.mrb[0].mxu0
  %v1426 = vadd.f32 %v212, %v1425
  %v1427 = vpop.f32.mrb[0].mxu0
  %1428 = vmatprep.mubr.f32.mxu0 0.0
  %1429 = vmatmul.mubr.f32.gmra.mrb[0].mxu0 %v557
  %v1430 = vpop.f32.mrb[0].mxu0
  %v1431 = vadd.f32 %v212, %v1430
  %v1432 = vpop.f32.mrb[0].mxu0
  %1433 = vmatprep.mubr.f32.mxu0 0.0
  %1434 = vmatmul.mubr.f32.gmra.mrb[0].mxu0 %v560
  %v1435 = vpop.f32.mrb[0].mxu0
  %v1436 = vadd.f32 %v212, %v1435
  %v1437 = vpop.f32.mrb[0].mxu0
  %1438 = vmatprep.mubr.f32.mxu0 0.0
  %1439 = vmatmul.mubr.f32.gmra.mrb[0].mxu0 %v563
  %v1440 = vpop.f32.mrb[0].mxu0
  %v1441 = vadd.f32 %v212, %v1440
  %v1442 = vpop.f32.mrb[0].mxu0
  %1443 = vmatprep.mubr.f32.mxu0 0.0
  %1444 = vmatmul.mubr.f32.gmra.mrb[0].mxu0 %v566
  %v1445 = vpop.f32.mrb[0].mxu0
  %v1446 = vadd.f32 %v212, %v1445
  %v1447 = vpop.f32.mrb[0].mxu0
  %1448 = vmatprep.mubr.f32.mxu0 0.0
  %1449 = vmatmul.mubr.f32.gmra.mrb[0].mxu0 %v569
  %v1450 = vpop.f32.mrb[0].mxu0
  %v1451 = vadd.f32 %v212, %v1450
  %v1452 = vpop.f32.mrb[0].mxu0
  %1453 = vmatprep.mubr.f32.mxu0 0.0
  %1454 = vmatmul.mubr.f32.gmra.mrb[0].mxu0 %v572
  %v1455 = vpop.f32.mrb[0].mxu0
  %v1456 = vadd.f32 %v212, %v1455
  %v1457 = vpop.f32.mrb[0].mxu0
  %1458 = vmatprep.mubr.f32.mxu0 0.0
  %1459 = vmatmul.mubr.f32.gmra.mrb[0].mxu0 %v575
  %v1460 = vpop.f32.mrb[0].mxu0
  %v1461 = vadd.f32 %v212, %v1460
  %v1462 = vpop.f32.mrb[0].mxu0
  %1463 = vmatprep.mubr.f32.mxu0 0.0
  %1464 = vmatmul.mubr.f32.gmra.mrb[0].mxu0 %v578
  %v1465 = vpop.f32.mrb[0].mxu0
  %v1466 = vadd.f32 %v212, %v1465
  %v1467 = vpop.f32.mrb[0].mxu0
  %1468 = vmatprep.mubr.f32.mxu0 0.0
  %1469 = vmatmul.mubr.f32.gmra.mrb[0].mxu0 %v581
  %v1470 = vpop.f32.mrb[0].mxu0
  %v1471 = vadd.f32 %v212, %v1470
  %v1472 = vpop.f32.mrb[0].mxu0
  %1473 = vmatprep.mubr.f32.mxu0 0.0
  %1474 = vmatmul.mubr.f32.gmra.mrb[0].mxu0 %v584
  %v1475 = vpop.f32.mrb[0].mxu0
  %v1476 = vadd.f32 %v212, %v1475
  %v1477 = vpop.f32.mrb[0].mxu0
  %1478 = vmatprep.mubr.f32.mxu0 0.0
  %1479 = vmatmul.mubr.f32.gmra.mrb[0].mxu0 %v587
  %v1480 = vpop.f32.mrb[0].mxu0
  %v1481 = vadd.f32 %v212, %v1480
  %v1482 = vpop.f32.mrb[0].mxu0
  %1483 = vmatprep.mubr.f32.mxu0 0.0
  %1484 = vmatmul.mubr.f32.gmra.mrb[0].mxu0 %v590
  %v1485 = vpop.f32.mrb[0].mxu0
  %v1486 = vadd.f32 %v212, %v1485
  %v1487 = vpop.f32.mrb[0].mxu0
  %1488 = vmatprep.mubr.f32.mxu0 0.0
  %1489 = vmatmul.mubr.f32.gmra.mrb[0].mxu0 %v593
  %v1490 = vpop.f32.mrb[0].mxu0
  %v1491 = vadd.f32 %v212, %v1490
  %v1492 = vpop.f32.mrb[0].mxu0
  %1493 = vmatprep.mubr.f32.mxu0 0.0
  %1494 = vmatmul.mubr.f32.gmra.mrb[0].mxu0 %v596
  %v1495 = vpop.f32.mrb[0].mxu0
  %v1496 = vadd.f32 %v212, %v1495
  %v1497 = vpop.f32.mrb[0].mxu0
  %1498 = vmatprep.mubr.f32.mxu0 0.0
  %1499 = vmatmul.mubr.f32.gmra.mrb[0].mxu0 %v599
  %v1500 = vpop.f32.mrb[0].mxu0
  %v1501 = vadd.f32 %v212, %v1500
  %v1502 = vpop.f32.mrb[0].mxu0
  %1503 = vmatprep.mubr.f32.mxu0 0.0
  %1504 = vmatmul.mubr.f32.gmra.mrb[0].mxu0 %v602
  %v1505 = vpop.f32.mrb[0].mxu0
  %v1506 = vadd.f32 %v212, %v1505
  %v1507 = vpop.f32.mrb[0].mxu0
  %1508 = vmatprep.mubr.f32.mxu0 0.0
  %1509 = vmatmul.mubr.f32.gmra.mrb[0].mxu0 %v605
  %v1510 = vpop.f32.mrb[0].mxu0
  %v1511 = vadd.f32 %v212, %v1510
  %v1512 = vpop.f32.mrb[0].mxu0
  %1513 = vmatprep.mubr.f32.mxu0 0.0
  %1514 = vmatmul.mubr.f32.gmra.mrb[0].mxu0 %v608
  %v1515 = vpop.f32.mrb[0].mxu0
  %v1516 = vadd.f32 %v212, %v1515
  %v1517 = vpop.f32.mrb[0].mxu0
  %1518 = vmatprep.mubr.f32.mxu0 0.0
  %1519 = vmatmul.mubr.f32.gmra.mrb[0].mxu0 %v611
  %v1520 = vpop.f32.mrb[0].mxu0
  %v1521 = vadd.f32 %v212, %v1520
  %v1522 = vpop.f32.mrb[0].mxu0
  %1523 = vmatprep.mubr.f32.mxu0 0.0
  %1524 = vmatmul.mubr.f32.gmra.mrb[0].mxu0 %v614
  %v1525 = vpop.f32.mrb[0].mxu0
  %v1526 = vadd.f32 %v212, %v1525
  %v1527 = vpop.f32.mrb[0].mxu0
  %1528 = vmatprep.mubr.f32.mxu0 0.0
  %1529 = vmatmul.mubr.f32.gmra.mrb[0].mxu0 %v617
  %v1530 = vpop.f32.mrb[0].mxu0
  %v1531 = vadd.f32 %v212, %v1530
  %v1532 = vpop.f32.mrb[0].mxu0
  %1533 = vmatprep.mubr.f32.mxu0 0.0
  %1534 = vmatmul.mubr.f32.gmra.mrb[0].mxu0 %v620
  %v1535 = vpop.f32.mrb[0].mxu0
  %v1536 = vadd.f32 %v212, %v1535
  %v1537 = vpop.f32.mrb[0].mxu0
  %1538 = vmatprep.mubr.f32.mxu0 0.0
  %1539 = vmatmul.mubr.f32.gmra.mrb[0].mxu0 %v623
  %v1540 = vpop.f32.mrb[0].mxu0
  %v1541 = vadd.f32 %v212, %v1540
  %v1542 = vpop.f32.mrb[0].mxu0
  %1543 = vmatprep.mubr.f32.mxu0 0.0
  %1544 = vmatmul.mubr.f32.gmra.mrb[0].mxu0 %v626
  %v1545 = vpop.f32.mrb[0].mxu0
  %v1546 = vadd.f32 %v212, %v1545
  %v1547 = vpop.f32.mrb[0].mxu0
  %1548 = vmatprep.mubr.f32.mxu0 0.0
  %1549 = vmatmul.mubr.f32.gmra.mrb[0].mxu0 %v629
  %v1550 = vpop.f32.mrb[0].mxu0
  %v1551 = vadd.f32 %v212, %v1550
  %v1552 = vpop.f32.mrb[0].mxu0
  %1553 = vmatprep.mubr.f32.mxu0 0.0
  %1554 = vmatmul.mubr.f32.gmra.mrb[0].mxu0 %v632
  %v1555 = vpop.f32.mrb[0].mxu0
  %v1556 = vadd.f32 %v212, %v1555
  %v1557 = vpop.f32.mrb[0].mxu0
  %1558 = vmatprep.mubr.f32.mxu0 0.0
  %1559 = vmatmul.mubr.f32.gmra.mrb[0].mxu0 %v635
  %v1560 = vpop.f32.mrb[0].mxu0
  %v1561 = vadd.f32 %v212, %v1560
  %v1562 = vpop.f32.mrb[0].mxu0
  %1563 = vmatprep.mubr.f32.mxu0 0.0
  %1564 = vmatmul.mubr.f32.gmra.mrb[0].mxu0 %v638
  %v1565 = vpop.f32.mrb[0].mxu0
  %v1566 = vadd.f32 %v212, %v1565
  %v1567 = vpop.f32.mrb[0].mxu0
  %1568 = vmatprep.mubr.f32.mxu0 0.0
  %1569 = vmatmul.mubr.f32.gmra.mrb[0].mxu0 %v641
  %v1570 = vpop.f32.mrb[0].mxu0
  %v1571 = vadd.f32 %v212, %v1570
  %v1572 = vpop.f32.mrb[0].mxu0
  %1573 = vmatprep.mubr.f32.mxu0 0.0
  %1574 = vmatmul.mubr.f32.gmra.mrb[0].mxu0 %v644
  %v1575 = vpop.f32.mrb[0].mxu0
  %v1576 = vadd.f32 %v212, %v1575
  %v1577 = vpop.f32.mrb[0].mxu0
  %1578 = vmatprep.mubr.f32.mxu0 0.0
  %1579 = vmatmul.mubr.f32.gmra.mrb[0].mxu0 %v647
  %v1580 = vpop.f32.mrb[0].mxu0
  %v1581 = vadd.f32 %v212, %v1580
  %v1582 = vpop.f32.mrb[0].mxu0
  %1583 = vmatprep.mubr.f32.mxu0 0.0
  %1584 = vmatmul.mubr.f32.gmra.mrb[0].mxu0 %v650
  %v1585 = vpop.f32.mrb[0].mxu0
  %v1586 = vadd.f32 %v212, %v1585
  %v1587 = vpop.f32.mrb[0].mxu0
  %1588 = vmatprep.mubr.f32.mxu0 0.0
  %1589 = vmatmul.mubr.f32.gmra.mrb[0].mxu0 %v653
  %v1590 = vpop.f32.mrb[0].mxu0
  %v1591 = vadd.f32 %v212, %v1590
  %v1592 = vpop.f32.mrb[0].mxu0
  %1593 = vmatprep.mubr.f32.mxu0 0.0
  %1594 = vmatmul.mubr.f32.gmra.mrb[0].mxu0 %v656
  %v1595 = vpop.f32.mrb[0].mxu0
  %v1596 = vadd.f32 %v212, %v1595
  %v1597 = vpop.f32.mrb[0].mxu0
  %1598 = vmatprep.mubr.f32.mxu0 0.0
  %1599 = vmatmul.mubr.f32.gmra.mrb[0].mxu0 %v659
  %v1600 = vpop.f32.mrb[0].mxu0
  %v1601 = vadd.f32 %v212, %v1600
  %v1602 = vpop.f32.mrb[0].mxu0
  %1603 = vmatprep.mubr.f32.mxu0 0.0
  %1604 = vmatmul.mubr.f32.gmra.mrb[0].mxu0 %v662
  %v1605 = vpop.f32.mrb[0].mxu0
  %v1606 = vadd.f32 %v212, %v1605
  %v1607 = vpop.f32.mrb[0].mxu0
  %1608 = vmatprep.mubr.f32.mxu0 0.0
  %1609 = vmatmul.mubr.f32.gmra.mrb[0].mxu0 %v665
  %v1610 = vpop.f32.mrb[0].mxu0
  %v1611 = vadd.f32 %v212, %v1610
  %v1612 = vpop.f32.mrb[0].mxu0
  %1613 = vmatprep.mubr.f32.mxu0 0.0
  %1614 = vmatmul.mubr.f32.gmra.mrb[0].mxu0 %v668
  %v1615 = vpop.f32.mrb[0].mxu0
  %v1616 = vadd.f32 %v212, %v1615
  %v1617 = vpop.f32.mrb[0].mxu0
  %1618 = vmatprep.mubr.f32.mxu0 0.0
  %1619 = vmatmul.mubr.f32.gmra.mrb[0].mxu0 %v671
  %v1620 = vpop.f32.mrb[0].mxu0
  %v1621 = vadd.f32 %v212, %v1620
  %v1622 = vpop.f32.mrb[0].mxu0
  %1623 = vmatprep.mubr.f32.mxu0 0.0
  %1624 = vmatmul.mubr.f32.gmra.mrb[0].mxu0 %v674
  %v1625 = vpop.f32.mrb[0].mxu0
  %v1626 = vadd.f32 %v212, %v1625
  %v1627 = vpop.f32.mrb[0].mxu0
  %1628 = vmatprep.mubr.f32.mxu0 0.0
  %1629 = vmatmul.mubr.f32.gmra.mrb[0].mxu0 %v677
  %v1630 = vpop.f32.mrb[0].mxu0
  %v1631 = vadd.f32 %v212, %v1630
  %v1632 = vpop.f32.mrb[0].mxu0
  %1633 = vmatprep.mubr.f32.mxu0 0.0
  %1634 = vmatmul.mubr.f32.gmra.mrb[0].mxu0 %v680
  %v1635 = vpop.f32.mrb[0].mxu0
  %v1636 = vadd.f32 %v212, %v1635
  %v1637 = vpop.f32.mrb[0].mxu0
  %1638 = vmatprep.mubr.f32.mxu0 0.0
  %1639 = vmatmul.mubr.f32.gmra.mrb[0].mxu0 %v683
  %v1640 = vpop.f32.mrb[0].mxu0
  %v1641 = vadd.f32 %v212, %v1640
  %v1642 = vpop.f32.mrb[0].mxu0
  %1643 = vmatprep.mubr.f32.mxu0 0.0
  %1644 = vmatmul.mubr.f32.gmra.mrb[0].mxu0 %v686
  %v1645 = vpop.f32.mrb[0].mxu0
  %v1646 = vadd.f32 %v212, %v1645
  %v1647 = vpop.f32.mrb[0].mxu0
  %1648 = vmatprep.mubr.f32.mxu0 0.0
  %1649 = vmatmul.mubr.f32.gmra.mrb[0].mxu0 %v689
  %v1650 = vpop.f32.mrb[0].mxu0
  %v1651 = vadd.f32 %v212, %v1650
  %v1652 = vpop.f32.mrb[0].mxu0
  %1653 = vmatprep.mubr.f32.mxu0 0.0
  %1654 = vmatmul.mubr.f32.gmra.mrb[0].mxu0 %v692
  %v1655 = vpop.f32.mrb[0].mxu0
  %v1656 = vadd.f32 %v212, %v1655
  %v1657 = vpop.f32.mrb[0].mxu0
  %1658 = vmatprep.mubr.f32.mxu0 0.0
  %1659 = vmatmul.mubr.f32.gmra.mrb[0].mxu0 %v695
  %v1660 = vpop.f32.mrb[0].mxu0
  %v1661 = vadd.f32 %v212, %v1660
  %v1662 = vpop.f32.mrb[0].mxu0
  %1663 = vmatprep.mubr.f32.mxu0 0.0
  %1664 = vmatmul.mubr.f32.gmra.mrb[0].mxu0 %v698
  %v1665 = vpop.f32.mrb[0].mxu0
  %v1666 = vadd.f32 %v212, %v1665
  %v1667 = vpop.f32.mrb[0].mxu0
  %1668 = vmatprep.mubr.f32.mxu0 0.0
  %1669 = vmatmul.mubr.f32.gmra.mrb[0].mxu0 %v701
  %v1670 = vpop.f32.mrb[0].mxu0
  %v1671 = vadd.f32 %v212, %v1670
  %v1672 = vpop.f32.mrb[0].mxu0
  %1673 = vmatprep.mubr.f32.mxu0 0.0
  %1674 = vmatmul.mubr.f32.gmra.mrb[0].mxu0 %v704
  %v1675 = vpop.f32.mrb[0].mxu0
  %v1676 = vadd.f32 %v212, %v1675
  %v1677 = vpop.f32.mrb[0].mxu0
  %1678 = vmatprep.mubr.f32.mxu0 0.0
  %1679 = vmatmul.mubr.f32.gmra.mrb[0].mxu0 %v707
  %v1680 = vpop.f32.mrb[0].mxu0
  %v1681 = vadd.f32 %v212, %v1680
  %v1682 = vpop.f32.mrb[0].mxu0
  %1683 = vmatprep.mubr.f32.mxu0 0.0
  %1684 = vmatmul.mubr.f32.gmra.mrb[0].mxu0 %v710
  %v1685 = vpop.f32.mrb[0].mxu0
  %v1686 = vadd.f32 %v212, %v1685
  %v1687 = vpop.f32.mrb[0].mxu0
  %1688 = vmatprep.mubr.f32.mxu0 0.0
  %1689 = vmatmul.mubr.f32.gmra.mrb[0].mxu0 %v713
  %v1690 = vpop.f32.mrb[0].mxu0
  %v1691 = vadd.f32 %v212, %v1690
  %v1692 = vpop.f32.mrb[0].mxu0
  %1693 = vmatprep.mubr.f32.mxu0 0.0
  %1694 = vmatmul.mubr.f32.gmra.mrb[0].mxu0 %v716
  %v1695 = vpop.f32.mrb[0].mxu0
  %v1696 = vadd.f32 %v212, %v1695
  %v1697 = vpop.f32.mrb[0].mxu0
  %1698 = vmatprep.mubr.f32.mxu0 0.0
  %1699 = vmatmul.mubr.f32.gmra.mrb[0].mxu0 %v719
  %v1700 = vpop.f32.mrb[0].mxu0
  %v1701 = vadd.f32 %v212, %v1700
  %v1702 = vpop.f32.mrb[0].mxu0
  %1703 = vmatprep.mubr.f32.mxu0 0.0
  %1704 = vmatmul.mubr.f32.gmra.mrb[0].mxu0 %v722
  %v1705 = vpop.f32.mrb[0].mxu0
  %v1706 = vadd.f32 %v212, %v1705
  %v1707 = vpop.f32.mrb[0].mxu0
  %1708 = vmatprep.mubr.f32.mxu0 0.0
  %1709 = vmatmul.mubr.f32.gmra.mrb[0].mxu0 %v725
  %v1710 = vpop.f32.mrb[0].mxu0
  %v1711 = vadd.f32 %v212, %v1710
  %v1712 = vpop.f32.mrb[0].mxu0
  %1713 = vmatprep.mubr.f32.mxu0 0.0
  %1714 = vmatmul.mubr.f32.gmra.mrb[0].mxu0 %v728
  %v1715 = vpop.f32.mrb[0].mxu0
  %v1716 = vadd.f32 %v212, %v1715
  %v1717 = vpop.f32.mrb[0].mxu0
  %1718 = vmatprep.mubr.f32.mxu0 0.0
  %1719 = vmatmul.mubr.f32.gmra.mrb[0].mxu0 %v731
  %v1720 = vpop.f32.mrb[0].mxu0
  %v1721 = vadd.f32 %v212, %v1720
  %v1722 = vpop.f32.mrb[0].mxu0
  %1723 = vmatprep.mubr.f32.mxu0 0.0
  %1724 = vmatmul.mubr.f32.gmra.mrb[0].mxu0 %v734
  %v1725 = vpop.f32.mrb[0].mxu0
  %v1726 = vadd.f32 %v212, %v1725
  %v1727 = vpop.f32.mrb[0].mxu0
  %1728 = vmatprep.mubr.f32.mxu0 0.0
  %1729 = vmatmul.mubr.f32.gmra.mrb[0].mxu0 %v737
  %v1730 = vpop.f32.mrb[0].mxu0
  %v1731 = vadd.f32 %v212, %v1730
  %v1732 = vpop.f32.mrb[0].mxu0
  %1733 = vmatprep.mubr.f32.mxu0 0.0
  %1734 = vmatmul.mubr.f32.gmra.mrb[0].mxu0 %v740
  %v1735 = vpop.f32.mrb[0].mxu0
  %v1736 = vadd.f32 %v212, %v1735
  %v1737 = vpop.f32.mrb[0].mxu0
  %1738 = vmatprep.mubr.f32.mxu0 0.0
  %1739 = vmatmul.mubr.f32.gmra.mrb[0].mxu0 %v743
  %v1740 = vpop.f32.mrb[0].mxu0
  %v1741 = vadd.f32 %v212, %v1740
  %v1742 = vpop.f32.mrb[0].mxu0
  %1743 = vmatprep.mubr.f32.mxu0 0.0
  %1744 = vmatmul.mubr.f32.gmra.mrb[0].mxu0 %v746
  %v1745 = vpop.f32.mrb[0].mxu0
  %v1746 = vadd.f32 %v212, %v1745
  %v1747 = vpop.f32.mrb[0].mxu0
  %1748 = vmatprep.mubr.f32.mxu0 0.0
  %1749 = vmatmul.mubr.f32.gmra.mrb[0].mxu0 %v749
  %v1750 = vpop.f32.mrb[0].mxu0
  %v1751 = vadd.f32 %v212, %v1750
  %v1752 = vpop.f32.mrb[0].mxu0
  %1753 = vmatprep.mubr.f32.mxu0 0.0
  %1754 = vmatmul.mubr.f32.gmra.mrb[0].mxu0 %v752
  %v1755 = vpop.f32.mrb[0].mxu0
  %v1756 = vadd.f32 %v212, %v1755
  %v1757 = vpop.f32.mrb[0].mxu0
  %1758 = vmatprep.mubr.f32.mxu0 0.0
  %1759 = vmatmul.mubr.f32.gmra.mrb[0].mxu0 %v755
  %v1760 = vpop.f32.mrb[0].mxu0
  %v1761 = vadd.f32 %v212, %v1760
  %v1762 = vpop.f32.mrb[0].mxu0
  %1763 = vmatprep.mubr.f32.mxu0 0.0
  %1764 = vmatmul.mubr.f32.gmra.mrb[0].mxu0 %v758
  %v1765 = vpop.f32.mrb[0].mxu0
  %v1766 = vadd.f32 %v212, %v1765
  %v1767 = vpop.f32.mrb[0].mxu0
  %1768 = vmatprep.mubr.f32.mxu0 0.0
  %1769 = vmatmul.mubr.f32.gmra.mrb[0].mxu0 %v761
  %v1770 = vpop.f32.mrb[0].mxu0
  %v1771 = vadd.f32 %v212, %v1770
  %v1772 = vpop.f32.mrb[0].mxu0
  %1773 = vmatprep.mubr.f32.mxu0 0.0
  %1774 = vmatmul.mubr.f32.gmra.mrb[0].mxu0 %v764
  %v1775 = vpop.f32.mrb[0].mxu0
  %v1776 = vadd.f32 %v212, %v1775
  %v1777 = vpop.f32.mrb[0].mxu0
  %1778 = vmatprep.mubr.f32.mxu0 0.0
  %1779 = vmatmul.mubr.f32.gmra.mrb[0].mxu0 %v767
  %v1780 = vpop.f32.mrb[0].mxu0
  %v1781 = vadd.f32 %v212, %v1780
  %v1782 = vpop.f32.mrb[0].mxu0
  %1783 = vmatprep.mubr.f32.mxu0 0.0
  %1784 = vmatmul.mubr.f32.gmra.mrb[0].mxu0 %v770
  %v1785 = vpop.f32.mrb[0].mxu0
  %v1786 = vadd.f32 %v212, %v1785
  %v1787 = vpop.f32.mrb[0].mxu0
  %1788 = vmatprep.mubr.f32.mxu0 0.0
  %1789 = vmatmul.mubr.f32.gmra.mrb[0].mxu0 %v773
  %v1790 = vpop.f32.mrb[0].mxu0
  %v1791 = vadd.f32 %v212, %v1790
  %v1792 = vpop.f32.mrb[0].mxu0
  %1793 = vmatprep.mubr.f32.mxu0 0.0
  %1794 = vmatmul.mubr.f32.gmra.mrb[0].mxu0 %v776
  %v1795 = vpop.f32.mrb[0].mxu0
  %v1796 = vadd.f32 %v212, %v1795
  %v1797 = vpop.f32.mrb[0].mxu0
  %1798 = vmatprep.mubr.f32.mxu0 0.0
  %1799 = vmatmul.mubr.f32.gmra.mrb[0].mxu0 %v779
  %v1800 = vpop.f32.mrb[0].mxu0
  %v1801 = vadd.f32 %v212, %v1800
  %v1802 = vpop.f32.mrb[0].mxu0
  %1803 = vmatprep.mubr.f32.mxu0 0.0
  %1804 = vmatmul.mubr.f32.gmra.mrb[0].mxu0 %v782
  %v1805 = vpop.f32.mrb[0].mxu0
  %v1806 = vadd.f32 %v212, %v1805
  %v1807 = vpop.f32.mrb[0].mxu0
  %1808 = vmatprep.mubr.f32.mxu0 0.0
  %1809 = vmatmul.mubr.f32.gmra.mrb[0].mxu0 %v785
  %v1810 = vpop.f32.mrb[0].mxu0
  %v1811 = vadd.f32 %v212, %v1810
  %v1812 = vpop.f32.mrb[0].mxu0
  %1813 = vmatprep.mubr.f32.mxu0 0.0
  %1814 = vmatmul.mubr.f32.gmra.mrb[0].mxu0 %v788
  %v1815 = vpop.f32.mrb[0].mxu0
  %v1816 = vadd.f32 %v212, %v1815
  %v1817 = vpop.f32.mrb[0].mxu0
  %1818 = vdwg.mxu0
  %v1819 = vmax.f32 %v861, 0.0
  %v1820 = vmax.f32 %v866, 0.0
  %v1821 = vmax.f32 %v871, 0.0
  %v1822 = vmax.f32 %v876, 0.0
  %v1823 = vmax.f32 %v881, 0.0
  %v1824 = vmax.f32 %v886, 0.0
  %v1825 = vmax.f32 %v891, 0.0
  %v1826 = vmax.f32 %v896, 0.0
  %v1827 = vmax.f32 %v901, 0.0
  %v1828 = vmax.f32 %v906, 0.0
  %v1829 = vmax.f32 %v911, 0.0
  %v1830 = vmax.f32 %v916, 0.0
  %v1831 = vmax.f32 %v921, 0.0
  %v1832 = vmax.f32 %v926, 0.0
  %v1833 = vmax.f32 %v931, 0.0
  %v1834 = vmax.f32 %v936, 0.0
  %v1835 = vmax.f32 %v941, 0.0
  %v1836 = vmax.f32 %v946, 0.0
  %v1837 = vmax.f32 %v951, 0.0
  %v1838 = vmax.f32 %v956, 0.0
  %v1839 = vmax.f32 %v961, 0.0
  %v1840 = vmax.f32 %v966, 0.0
  %v1841 = vmax.f32 %v971, 0.0
  %v1842 = vmax.f32 %v976, 0.0
  %v1843 = vmax.f32 %v981, 0.0
  %v1844 = vmax.f32 %v986, 0.0
  %v1845 = vmax.f32 %v991, 0.0
  %v1846 = vmax.f32 %v996, 0.0
  %v1847 = vmax.f32 %v1001, 0.0
  %v1848 = vmax.f32 %v1006, 0.0
  %v1849 = vmax.f32 %v1011, 0.0
  %v1850 = vmax.f32 %v1016, 0.0
  %v1851 = vmax.f32 %v1021, 0.0
  %v1852 = vmax.f32 %v1026, 0.0
  %v1853 = vmax.f32 %v1031, 0.0
  %v1854 = vmax.f32 %v1036, 0.0
  %v1855 = vmax.f32 %v1041, 0.0
  %v1856 = vmax.f32 %v1046, 0.0
  %v1857 = vmax.f32 %v1051, 0.0
  %v1858 = vmax.f32 %v1056, 0.0
  %v1859 = vmax.f32 %v1061, 0.0
  %v1860 = vmax.f32 %v1066, 0.0
  %v1861 = vmax.f32 %v1071, 0.0
  %v1862 = vmax.f32 %v1076, 0.0
  %v1863 = vmax.f32 %v1081, 0.0
  %v1864 = vmax.f32 %v1086, 0.0
  %v1865 = vmax.f32 %v1091, 0.0
  %v1866 = vmax.f32 %v1096, 0.0
  %v1867 = vmax.f32 %v1101, 0.0
  %v1868 = vmax.f32 %v1106, 0.0
  %v1869 = vmax.f32 %v1111, 0.0
  %v1870 = vmax.f32 %v1116, 0.0
  %v1871 = vmax.f32 %v1121, 0.0
  %v1872 = vmax.f32 %v1126, 0.0
  %v1873 = vmax.f32 %v1131, 0.0
  %v1874 = vmax.f32 %v1136, 0.0
  %v1875 = vmax.f32 %v1141, 0.0
  %v1876 = vmax.f32 %v1146, 0.0
  %v1877 = vmax.f32 %v1151, 0.0
  %v1878 = vmax.f32 %v1156, 0.0
  %v1879 = vmax.f32 %v1161, 0.0
  %v1880 = vmax.f32 %v1166, 0.0
  %v1881 = vmax.f32 %v1171, 0.0
  %v1882 = vmax.f32 %v1176, 0.0
  %v1883 = vmax.f32 %v1181, 0.0
  %v1884 = vmax.f32 %v1186, 0.0
  %v1885 = vmax.f32 %v1191, 0.0
  %v1886 = vmax.f32 %v1196, 0.0
  %v1887 = vmax.f32 %v1201, 0.0
  %v1888 = vmax.f32 %v1206, 0.0
  %v1889 = vmax.f32 %v1211, 0.0
  %v1890 = vmax.f32 %v1216, 0.0
  %v1891 = vmax.f32 %v1221, 0.0
  %v1892 = vmax.f32 %v1226, 0.0
  %v1893 = vmax.f32 %v1231, 0.0
  %v1894 = vmax.f32 %v1236, 0.0
  %v1895 = vmax.f32 %v1241, 0.0
  %v1896 = vmax.f32 %v1246, 0.0
  %v1897 = vmax.f32 %v1251, 0.0
  %v1898 = vmax.f32 %v1256, 0.0
  %v1899 = vmax.f32 %v1261, 0.0
  %v1900 = vmax.f32 %v1266, 0.0
  %v1901 = vmax.f32 %v1271, 0.0
  %v1902 = vmax.f32 %v1276, 0.0
  %v1903 = vmax.f32 %v1281, 0.0
  %v1904 = vmax.f32 %v1286, 0.0
  %v1905 = vmax.f32 %v1291, 0.0
  %v1906 = vmax.f32 %v1296, 0.0
  %v1907 = vmax.f32 %v1301, 0.0
  %v1908 = vmax.f32 %v1306, 0.0
  %v1909 = vmax.f32 %v1311, 0.0
  %v1910 = vmax.f32 %v1316, 0.0
  %v1911 = vmax.f32 %v1321, 0.0
  %v1912 = vmax.f32 %v1326, 0.0
  %v1913 = vmax.f32 %v1331, 0.0
  %v1914 = vmax.f32 %v1336, 0.0
  %v1915 = vmax.f32 %v1341, 0.0
  %v1916 = vmax.f32 %v1346, 0.0
  %v1917 = vmax.f32 %v1351, 0.0
  %v1918 = vmax.f32 %v1356, 0.0
  %v1919 = vmax.f32 %v1361, 0.0
  %v1920 = vmax.f32 %v1366, 0.0
  %v1921 = vmax.f32 %v1371, 0.0
  %v1922 = vmax.f32 %v1376, 0.0
  %v1923 = vmax.f32 %v1381, 0.0
  %v1924 = vmax.f32 %v1386, 0.0
  %v1925 = vmax.f32 %v1391, 0.0
  %v1926 = vmax.f32 %v1396, 0.0
  %v1927 = vmax.f32 %v1401, 0.0
  %v1928 = vmax.f32 %v1406, 0.0
  %v1929 = vmax.f32 %v1411, 0.0
  %v1930 = vmax.f32 %v1416, 0.0
  %v1931 = vmax.f32 %v1421, 0.0
  %v1932 = vmax.f32 %v1426, 0.0
  %v1933 = vmax.f32 %v1431, 0.0
  %v1934 = vmax.f32 %v1436, 0.0
  %v1935 = vmax.f32 %v1441, 0.0
  %v1936 = vmax.f32 %v1446, 0.0
  %v1937 = vmax.f32 %v1451, 0.0
  %v1938 = vmax.f32 %v1456, 0.0
  %v1939 = vmax.f32 %v1461, 0.0
  %v1940 = vmax.f32 %v1466, 0.0
  %v1941 = vmax.f32 %v1471, 0.0
  %v1942 = vmax.f32 %v1476, 0.0
  %v1943 = vmax.f32 %v1481, 0.0
  %v1944 = vmax.f32 %v1486, 0.0
  %v1945 = vmax.f32 %v1491, 0.0
  %v1946 = vmax.f32 %v1496, 0.0
  %v1947 = vmax.f32 %v1501, 0.0
  %v1948 = vmax.f32 %v1506, 0.0
  %v1949 = vmax.f32 %v1511, 0.0
  %v1950 = vmax.f32 %v1516, 0.0
  %v1951 = vmax.f32 %v1521, 0.0
  %v1952 = vmax.f32 %v1526, 0.0
  %v1953 = vmax.f32 %v1531, 0.0
  %v1954 = vmax.f32 %v1536, 0.0
  %v1955 = vmax.f32 %v1541, 0.0
  %v1956 = vmax.f32 %v1546, 0.0
  %v1957 = vmax.f32 %v1551, 0.0
  %v1958 = vmax.f32 %v1556, 0.0
  %v1959 = vmax.f32 %v1561, 0.0
  %v1960 = vmax.f32 %v1566, 0.0
  %v1961 = vmax.f32 %v1571, 0.0
  %v1962 = vmax.f32 %v1576, 0.0
  %v1963 = vmax.f32 %v1581, 0.0
  %v1964 = vmax.f32 %v1586, 0.0
  %v1965 = vmax.f32 %v1591, 0.0
  %v1966 = vmax.f32 %v1596, 0.0
  %v1967 = vmax.f32 %v1601, 0.0
  %v1968 = vmax.f32 %v1606, 0.0
  %v1969 = vmax.f32 %v1611, 0.0
  %v1970 = vmax.f32 %v1616, 0.0
  %v1971 = vmax.f32 %v1621, 0.0
  %v1972 = vmax.f32 %v1626, 0.0
  %v1973 = vmax.f32 %v1631, 0.0
  %v1974 = vmax.f32 %v1636, 0.0
  %v1975 = vmax.f32 %v1641, 0.0
  %v1976 = vmax.f32 %v1646, 0.0
  %v1977 = vmax.f32 %v1651, 0.0
  %v1978 = vmax.f32 %v1656, 0.0
  %v1979 = vmax.f32 %v1661, 0.0
  %v1980 = vmax.f32 %v1666, 0.0
  %v1981 = vmax.f32 %v1671, 0.0
  %v1982 = vmax.f32 %v1676, 0.0
  %v1983 = vmax.f32 %v1681, 0.0
  %v1984 = vmax.f32 %v1686, 0.0
  %v1985 = vmax.f32 %v1691, 0.0
  %v1986 = vmax.f32 %v1696, 0.0
  %v1987 = vmax.f32 %v1701, 0.0
  %v1988 = vmax.f32 %v1706, 0.0
  %v1989 = vmax.f32 %v1711, 0.0
  %v1990 = vmax.f32 %v1716, 0.0
  %v1991 = vmax.f32 %v1721, 0.0
  %v1992 = vmax.f32 %v1726, 0.0
  %v1993 = vmax.f32 %v1731, 0.0
  %v1994 = vmax.f32 %v1736, 0.0
  %v1995 = vmax.f32 %v1741, 0.0
  %v1996 = vmax.f32 %v1746, 0.0
  %v1997 = vmax.f32 %v1751, 0.0
  %v1998 = vmax.f32 %v1756, 0.0
  %v1999 = vmax.f32 %v1761, 0.0
  %v2000 = vmax.f32 %v1766, 0.0
  %v2001 = vmax.f32 %v1771, 0.0
  %v2002 = vmax.f32 %v1776, 0.0
  %v2003 = vmax.f32 %v1781, 0.0
  %v2004 = vmax.f32 %v1786, 0.0
  %v2005 = vmax.f32 %v1791, 0.0
  %v2006 = vmax.f32 %v1796, 0.0
  %v2007 = vmax.f32 %v1801, 0.0
  %v2008 = vmax.f32 %v1806, 0.0
  %v2009 = vmax.f32 %v1811, 0.0
  %v2010 = vmax.f32 %v1816, 0.0
  %vm2011 = vcmask 64512
  %v2012 = vsel %vm2011, %v1819, 0.0
  %v2013 = vsel %vm2011, %v1820, 0.0
  %v2014 = vadd.f32 %v2012, %v2013
  %v2015 = vsel %vm2011, %v1821, 0.0
  %v2016 = vadd.f32 %v2014, %v2015
  %v2017 = vsel %vm2011, %v1822, 0.0
  %v2018 = vadd.f32 %v2016, %v2017
  %v2019 = vsel %vm2011, %v1823, 0.0
  %v2020 = vadd.f32 %v2018, %v2019
  %v2021 = vsel %vm2011, %v1824, 0.0
  %v2022 = vadd.f32 %v2020, %v2021
  %v2023 = vsel %vm2011, %v1825, 0.0
  %v2024 = vadd.f32 %v2022, %v2023
  %v2025 = vsel %vm2011, %v1826, 0.0
  %v2026 = vadd.f32 %v2024, %v2025
  %v2027 = vsel %vm2011, %v1827, 0.0
  %v2028 = vadd.f32 %v2026, %v2027
  %v2029 = vsel %vm2011, %v1828, 0.0
  %v2030 = vadd.f32 %v2028, %v2029
  %v2031 = vsel %vm2011, %v1829, 0.0
  %v2032 = vadd.f32 %v2030, %v2031
  %v2033 = vsel %vm2011, %v1830, 0.0
  %v2034 = vadd.f32 %v2032, %v2033
  %v2035 = vsel %vm2011, %v1831, 0.0
  %v2036 = vadd.f32 %v2034, %v2035
  %v2037 = vsel %vm2011, %v1832, 0.0
  %v2038 = vadd.f32 %v2036, %v2037
  %v2039 = vsel %vm2011, %v1833, 0.0
  %v2040 = vadd.f32 %v2038, %v2039
  %v2041 = vsel %vm2011, %v1834, 0.0
  %v2042 = vadd.f32 %v2040, %v2041
  %v2043 = vsel %vm2011, %v1835, 0.0
  %v2044 = vadd.f32 %v2042, %v2043
  %v2045 = vsel %vm2011, %v1836, 0.0
  %v2046 = vadd.f32 %v2044, %v2045
  %v2047 = vsel %vm2011, %v1837, 0.0
  %v2048 = vadd.f32 %v2046, %v2047
  %v2049 = vsel %vm2011, %v1838, 0.0
  %v2050 = vadd.f32 %v2048, %v2049
  %v2051 = vsel %vm2011, %v1839, 0.0
  %v2052 = vadd.f32 %v2050, %v2051
  %v2053 = vsel %vm2011, %v1840, 0.0
  %v2054 = vadd.f32 %v2052, %v2053
  %v2055 = vsel %vm2011, %v1841, 0.0
  %v2056 = vadd.f32 %v2054, %v2055
  %v2057 = vsel %vm2011, %v1842, 0.0
  %v2058 = vadd.f32 %v2056, %v2057
  %v2059 = vsel %vm2011, %v1843, 0.0
  %v2060 = vadd.f32 %v2058, %v2059
  %v2061 = vsel %vm2011, %v1844, 0.0
  %v2062 = vadd.f32 %v2060, %v2061
  %v2063 = vsel %vm2011, %v1845, 0.0
  %v2064 = vadd.f32 %v2062, %v2063
  %v2065 = vsel %vm2011, %v1846, 0.0
  %v2066 = vadd.f32 %v2064, %v2065
  %v2067 = vsel %vm2011, %v1847, 0.0
  %v2068 = vadd.f32 %v2066, %v2067
  %v2069 = vsel %vm2011, %v1848, 0.0
  %v2070 = vadd.f32 %v2068, %v2069
  %v2071 = vsel %vm2011, %v1849, 0.0
  %v2072 = vadd.f32 %v2070, %v2071
  %v2073 = vsel %vm2011, %v1850, 0.0
  %v2074 = vadd.f32 %v2072, %v2073
  %v2075 = vrot.slane %v2074, 4
  %v2076 = vadd.f32 %v2074, %v2075
  %v2077 = vrot.slane %v2076, 2
  %v2078 = vadd.f32 %v2076, %v2077
  %v2079 = vrot.slane %v2078, 1
  %v2080 = vadd.f32 %v2078, %v2079
  %v2081 = vsel %vm2011, %v1851, 0.0
  %v2082 = vsel %vm2011, %v1852, 0.0
  %v2083 = vadd.f32 %v2081, %v2082
  %v2084 = vsel %vm2011, %v1853, 0.0
  %v2085 = vadd.f32 %v2083, %v2084
  %v2086 = vsel %vm2011, %v1854, 0.0
  %v2087 = vadd.f32 %v2085, %v2086
  %v2088 = vsel %vm2011, %v1855, 0.0
  %v2089 = vadd.f32 %v2087, %v2088
  %v2090 = vsel %vm2011, %v1856, 0.0
  %v2091 = vadd.f32 %v2089, %v2090
  %v2092 = vsel %vm2011, %v1857, 0.0
  %v2093 = vadd.f32 %v2091, %v2092
  %v2094 = vsel %vm2011, %v1858, 0.0
  %v2095 = vadd.f32 %v2093, %v2094
  %v2096 = vsel %vm2011, %v1859, 0.0
  %v2097 = vadd.f32 %v2095, %v2096
  %v2098 = vsel %vm2011, %v1860, 0.0
  %v2099 = vadd.f32 %v2097, %v2098
  %v2100 = vsel %vm2011, %v1861, 0.0
  %v2101 = vadd.f32 %v2099, %v2100
  %v2102 = vsel %vm2011, %v1862, 0.0
  %v2103 = vadd.f32 %v2101, %v2102
  %v2104 = vsel %vm2011, %v1863, 0.0
  %v2105 = vadd.f32 %v2103, %v2104
  %v2106 = vsel %vm2011, %v1864, 0.0
  %v2107 = vadd.f32 %v2105, %v2106
  %v2108 = vsel %vm2011, %v1865, 0.0
  %v2109 = vadd.f32 %v2107, %v2108
  %v2110 = vsel %vm2011, %v1866, 0.0
  %v2111 = vadd.f32 %v2109, %v2110
  %v2112 = vsel %vm2011, %v1867, 0.0
  %v2113 = vadd.f32 %v2111, %v2112
  %v2114 = vsel %vm2011, %v1868, 0.0
  %v2115 = vadd.f32 %v2113, %v2114
  %v2116 = vsel %vm2011, %v1869, 0.0
  %v2117 = vadd.f32 %v2115, %v2116
  %v2118 = vsel %vm2011, %v1870, 0.0
  %v2119 = vadd.f32 %v2117, %v2118
  %v2120 = vsel %vm2011, %v1871, 0.0
  %v2121 = vadd.f32 %v2119, %v2120
  %v2122 = vsel %vm2011, %v1872, 0.0
  %v2123 = vadd.f32 %v2121, %v2122
  %v2124 = vsel %vm2011, %v1873, 0.0
  %v2125 = vadd.f32 %v2123, %v2124
  %v2126 = vsel %vm2011, %v1874, 0.0
  %v2127 = vadd.f32 %v2125, %v2126
  %v2128 = vsel %vm2011, %v1875, 0.0
  %v2129 = vadd.f32 %v2127, %v2128
  %v2130 = vsel %vm2011, %v1876, 0.0
  %v2131 = vadd.f32 %v2129, %v2130
  %v2132 = vsel %vm2011, %v1877, 0.0
  %v2133 = vadd.f32 %v2131, %v2132
  %v2134 = vsel %vm2011, %v1878, 0.0
  %v2135 = vadd.f32 %v2133, %v2134
  %v2136 = vsel %vm2011, %v1879, 0.0
  %v2137 = vadd.f32 %v2135, %v2136
  %v2138 = vsel %vm2011, %v1880, 0.0
  %v2139 = vadd.f32 %v2137, %v2138
  %v2140 = vsel %vm2011, %v1881, 0.0
  %v2141 = vadd.f32 %v2139, %v2140
  %v2142 = vsel %vm2011, %v1882, 0.0
  %v2143 = vadd.f32 %v2141, %v2142
  %v2144 = vrot.slane %v2143, 4
  %v2145 = vadd.f32 %v2143, %v2144
  %v2146 = vrot.slane %v2145, 2
  %v2147 = vadd.f32 %v2145, %v2146
  %v2148 = vrot.slane %v2147, 1
  %v2149 = vadd.f32 %v2147, %v2148
  %v2150 = vsel %vm2011, %v1883, 0.0
  %v2151 = vsel %vm2011, %v1884, 0.0
  %v2152 = vadd.f32 %v2150, %v2151
  %v2153 = vsel %vm2011, %v1885, 0.0
  %v2154 = vadd.f32 %v2152, %v2153
  %v2155 = vsel %vm2011, %v1886, 0.0
  %v2156 = vadd.f32 %v2154, %v2155
  %v2157 = vsel %vm2011, %v1887, 0.0
  %v2158 = vadd.f32 %v2156, %v2157
  %v2159 = vsel %vm2011, %v1888, 0.0
  %v2160 = vadd.f32 %v2158, %v2159
  %v2161 = vsel %vm2011, %v1889, 0.0
  %v2162 = vadd.f32 %v2160, %v2161
  %v2163 = vsel %vm2011, %v1890, 0.0
  %v2164 = vadd.f32 %v2162, %v2163
  %v2165 = vsel %vm2011, %v1891, 0.0
  %v2166 = vadd.f32 %v2164, %v2165
  %v2167 = vsel %vm2011, %v1892, 0.0
  %v2168 = vadd.f32 %v2166, %v2167
  %v2169 = vsel %vm2011, %v1893, 0.0
  %v2170 = vadd.f32 %v2168, %v2169
  %v2171 = vsel %vm2011, %v1894, 0.0
  %v2172 = vadd.f32 %v2170, %v2171
  %v2173 = vsel %vm2011, %v1895, 0.0
  %v2174 = vadd.f32 %v2172, %v2173
  %v2175 = vsel %vm2011, %v1896, 0.0
  %v2176 = vadd.f32 %v2174, %v2175
  %v2177 = vsel %vm2011, %v1897, 0.0
  %v2178 = vadd.f32 %v2176, %v2177
  %v2179 = vsel %vm2011, %v1898, 0.0
  %v2180 = vadd.f32 %v2178, %v2179
  %v2181 = vsel %vm2011, %v1899, 0.0
  %v2182 = vadd.f32 %v2180, %v2181
  %v2183 = vsel %vm2011, %v1900, 0.0
  %v2184 = vadd.f32 %v2182, %v2183
  %v2185 = vsel %vm2011, %v1901, 0.0
  %v2186 = vadd.f32 %v2184, %v2185
  %v2187 = vsel %vm2011, %v1902, 0.0
  %v2188 = vadd.f32 %v2186, %v2187
  %v2189 = vsel %vm2011, %v1903, 0.0
  %v2190 = vadd.f32 %v2188, %v2189
  %v2191 = vsel %vm2011, %v1904, 0.0
  %v2192 = vadd.f32 %v2190, %v2191
  %v2193 = vsel %vm2011, %v1905, 0.0
  %v2194 = vadd.f32 %v2192, %v2193
  %v2195 = vsel %vm2011, %v1906, 0.0
  %v2196 = vadd.f32 %v2194, %v2195
  %v2197 = vsel %vm2011, %v1907, 0.0
  %v2198 = vadd.f32 %v2196, %v2197
  %v2199 = vsel %vm2011, %v1908, 0.0
  %v2200 = vadd.f32 %v2198, %v2199
  %v2201 = vsel %vm2011, %v1909, 0.0
  %v2202 = vadd.f32 %v2200, %v2201
  %v2203 = vsel %vm2011, %v1910, 0.0
  %v2204 = vadd.f32 %v2202, %v2203
  %v2205 = vsel %vm2011, %v1911, 0.0
  %v2206 = vadd.f32 %v2204, %v2205
  %v2207 = vsel %vm2011, %v1912, 0.0
  %v2208 = vadd.f32 %v2206, %v2207
  %v2209 = vsel %vm2011, %v1913, 0.0
  %v2210 = vadd.f32 %v2208, %v2209
  %v2211 = vsel %vm2011, %v1914, 0.0
  %v2212 = vadd.f32 %v2210, %v2211
  %v2213 = vrot.slane %v2212, 4
  %v2214 = vadd.f32 %v2212, %v2213
  %v2215 = vrot.slane %v2214, 2
  %v2216 = vadd.f32 %v2214, %v2215
  %v2217 = vrot.slane %v2216, 1
  %v2218 = vadd.f32 %v2216, %v2217
  %v2219 = vsel %vm2011, %v1915, 0.0
  %v2220 = vsel %vm2011, %v1916, 0.0
  %v2221 = vadd.f32 %v2219, %v2220
  %v2222 = vsel %vm2011, %v1917, 0.0
  %v2223 = vadd.f32 %v2221, %v2222
  %v2224 = vsel %vm2011, %v1918, 0.0
  %v2225 = vadd.f32 %v2223, %v2224
  %v2226 = vsel %vm2011, %v1919, 0.0
  %v2227 = vadd.f32 %v2225, %v2226
  %v2228 = vsel %vm2011, %v1920, 0.0
  %v2229 = vadd.f32 %v2227, %v2228
  %v2230 = vsel %vm2011, %v1921, 0.0
  %v2231 = vadd.f32 %v2229, %v2230
  %v2232 = vsel %vm2011, %v1922, 0.0
  %v2233 = vadd.f32 %v2231, %v2232
  %v2234 = vsel %vm2011, %v1923, 0.0
  %v2235 = vadd.f32 %v2233, %v2234
  %v2236 = vsel %vm2011, %v1924, 0.0
  %v2237 = vadd.f32 %v2235, %v2236
  %v2238 = vsel %vm2011, %v1925, 0.0
  %v2239 = vadd.f32 %v2237, %v2238
  %v2240 = vsel %vm2011, %v1926, 0.0
  %v2241 = vadd.f32 %v2239, %v2240
  %v2242 = vsel %vm2011, %v1927, 0.0
  %v2243 = vadd.f32 %v2241, %v2242
  %v2244 = vsel %vm2011, %v1928, 0.0
  %v2245 = vadd.f32 %v2243, %v2244
  %v2246 = vsel %vm2011, %v1929, 0.0
  %v2247 = vadd.f32 %v2245, %v2246
  %v2248 = vsel %vm2011, %v1930, 0.0
  %v2249 = vadd.f32 %v2247, %v2248
  %v2250 = vsel %vm2011, %v1931, 0.0
  %v2251 = vadd.f32 %v2249, %v2250
  %v2252 = vsel %vm2011, %v1932, 0.0
  %v2253 = vadd.f32 %v2251, %v2252
  %v2254 = vsel %vm2011, %v1933, 0.0
  %v2255 = vadd.f32 %v2253, %v2254
  %v2256 = vsel %vm2011, %v1934, 0.0
  %v2257 = vadd.f32 %v2255, %v2256
  %v2258 = vsel %vm2011, %v1935, 0.0
  %v2259 = vadd.f32 %v2257, %v2258
  %v2260 = vsel %vm2011, %v1936, 0.0
  %v2261 = vadd.f32 %v2259, %v2260
  %v2262 = vsel %vm2011, %v1937, 0.0
  %v2263 = vadd.f32 %v2261, %v2262
  %v2264 = vsel %vm2011, %v1938, 0.0
  %v2265 = vadd.f32 %v2263, %v2264
  %v2266 = vsel %vm2011, %v1939, 0.0
  %v2267 = vadd.f32 %v2265, %v2266
  %v2268 = vsel %vm2011, %v1940, 0.0
  %v2269 = vadd.f32 %v2267, %v2268
  %v2270 = vsel %vm2011, %v1941, 0.0
  %v2271 = vadd.f32 %v2269, %v2270
  %v2272 = vsel %vm2011, %v1942, 0.0
  %v2273 = vadd.f32 %v2271, %v2272
  %v2274 = vsel %vm2011, %v1943, 0.0
  %v2275 = vadd.f32 %v2273, %v2274
  %v2276 = vsel %vm2011, %v1944, 0.0
  %v2277 = vadd.f32 %v2275, %v2276
  %v2278 = vsel %vm2011, %v1945, 0.0
  %v2279 = vadd.f32 %v2277, %v2278
  %v2280 = vsel %vm2011, %v1946, 0.0
  %v2281 = vadd.f32 %v2279, %v2280
  %v2282 = vrot.slane %v2281, 4
  %v2283 = vadd.f32 %v2281, %v2282
  %v2284 = vrot.slane %v2283, 2
  %v2285 = vadd.f32 %v2283, %v2284
  %v2286 = vrot.slane %v2285, 1
  %v2287 = vadd.f32 %v2285, %v2286
  %v2288 = vsel %vm2011, %v1947, 0.0
  %v2289 = vsel %vm2011, %v1948, 0.0
  %v2290 = vadd.f32 %v2288, %v2289
  %v2291 = vsel %vm2011, %v1949, 0.0
  %v2292 = vadd.f32 %v2290, %v2291
  %v2293 = vsel %vm2011, %v1950, 0.0
  %v2294 = vadd.f32 %v2292, %v2293
  %v2295 = vsel %vm2011, %v1951, 0.0
  %v2296 = vadd.f32 %v2294, %v2295
  %v2297 = vsel %vm2011, %v1952, 0.0
  %v2298 = vadd.f32 %v2296, %v2297
  %v2299 = vsel %vm2011, %v1953, 0.0
  %v2300 = vadd.f32 %v2298, %v2299
  %v2301 = vsel %vm2011, %v1954, 0.0
  %v2302 = vadd.f32 %v2300, %v2301
  %v2303 = vsel %vm2011, %v1955, 0.0
  %v2304 = vadd.f32 %v2302, %v2303
  %v2305 = vsel %vm2011, %v1956, 0.0
  %v2306 = vadd.f32 %v2304, %v2305
  %v2307 = vsel %vm2011, %v1957, 0.0
  %v2308 = vadd.f32 %v2306, %v2307
  %v2309 = vsel %vm2011, %v1958, 0.0
  %v2310 = vadd.f32 %v2308, %v2309
  %v2311 = vsel %vm2011, %v1959, 0.0
  %v2312 = vadd.f32 %v2310, %v2311
  %v2313 = vsel %vm2011, %v1960, 0.0
  %v2314 = vadd.f32 %v2312, %v2313
  %v2315 = vsel %vm2011, %v1961, 0.0
  %v2316 = vadd.f32 %v2314, %v2315
  %v2317 = vsel %vm2011, %v1962, 0.0
  %v2318 = vadd.f32 %v2316, %v2317
  %v2319 = vsel %vm2011, %v1963, 0.0
  %v2320 = vadd.f32 %v2318, %v2319
  %v2321 = vsel %vm2011, %v1964, 0.0
  %v2322 = vadd.f32 %v2320, %v2321
  %v2323 = vsel %vm2011, %v1965, 0.0
  %v2324 = vadd.f32 %v2322, %v2323
  %v2325 = vsel %vm2011, %v1966, 0.0
  %v2326 = vadd.f32 %v2324, %v2325
  %v2327 = vsel %vm2011, %v1967, 0.0
  %v2328 = vadd.f32 %v2326, %v2327
  %v2329 = vsel %vm2011, %v1968, 0.0
  %v2330 = vadd.f32 %v2328, %v2329
  %v2331 = vsel %vm2011, %v1969, 0.0
  %v2332 = vadd.f32 %v2330, %v2331
  %v2333 = vsel %vm2011, %v1970, 0.0
  %v2334 = vadd.f32 %v2332, %v2333
  %v2335 = vsel %vm2011, %v1971, 0.0
  %v2336 = vadd.f32 %v2334, %v2335
  %v2337 = vsel %vm2011, %v1972, 0.0
  %v2338 = vadd.f32 %v2336, %v2337
  %v2339 = vsel %vm2011, %v1973, 0.0
  %v2340 = vadd.f32 %v2338, %v2339
  %v2341 = vsel %vm2011, %v1974, 0.0
  %v2342 = vadd.f32 %v2340, %v2341
  %v2343 = vsel %vm2011, %v1975, 0.0
  %v2344 = vadd.f32 %v2342, %v2343
  %v2345 = vsel %vm2011, %v1976, 0.0
  %v2346 = vadd.f32 %v2344, %v2345
  %v2347 = vsel %vm2011, %v1977, 0.0
  %v2348 = vadd.f32 %v2346, %v2347
  %v2349 = vsel %vm2011, %v1978, 0.0
  %v2350 = vadd.f32 %v2348, %v2349
  %v2351 = vrot.slane %v2350, 4
  %v2352 = vadd.f32 %v2350, %v2351
  %v2353 = vrot.slane %v2352, 2
  %v2354 = vadd.f32 %v2352, %v2353
  %v2355 = vrot.slane %v2354, 1
  %v2356 = vadd.f32 %v2354, %v2355
  %v2357 = vsel %vm2011, %v1979, 0.0
  %v2358 = vsel %vm2011, %v1980, 0.0
  %v2359 = vadd.f32 %v2357, %v2358
  %v2360 = vsel %vm2011, %v1981, 0.0
  %v2361 = vadd.f32 %v2359, %v2360
  %v2362 = vsel %vm2011, %v1982, 0.0
  %v2363 = vadd.f32 %v2361, %v2362
  %v2364 = vsel %vm2011, %v1983, 0.0
  %v2365 = vadd.f32 %v2363, %v2364
  %v2366 = vsel %vm2011, %v1984, 0.0
  %v2367 = vadd.f32 %v2365, %v2366
  %v2368 = vsel %vm2011, %v1985, 0.0
  %v2369 = vadd.f32 %v2367, %v2368
  %v2370 = vsel %vm2011, %v1986, 0.0
  %v2371 = vadd.f32 %v2369, %v2370
  %v2372 = vsel %vm2011, %v1987, 0.0
  %v2373 = vadd.f32 %v2371, %v2372
  %v2374 = vsel %vm2011, %v1988, 0.0
  %v2375 = vadd.f32 %v2373, %v2374
  %v2376 = vsel %vm2011, %v1989, 0.0
  %v2377 = vadd.f32 %v2375, %v2376
  %v2378 = vsel %vm2011, %v1990, 0.0
  %v2379 = vadd.f32 %v2377, %v2378
  %v2380 = vsel %vm2011, %v1991, 0.0
  %v2381 = vadd.f32 %v2379, %v2380
  %v2382 = vsel %vm2011, %v1992, 0.0
  %v2383 = vadd.f32 %v2381, %v2382
  %v2384 = vsel %vm2011, %v1993, 0.0
  %v2385 = vadd.f32 %v2383, %v2384
  %v2386 = vsel %vm2011, %v1994, 0.0
  %v2387 = vadd.f32 %v2385, %v2386
  %v2388 = vsel %vm2011, %v1995, 0.0
  %v2389 = vadd.f32 %v2387, %v2388
  %v2390 = vsel %vm2011, %v1996, 0.0
  %v2391 = vadd.f32 %v2389, %v2390
  %v2392 = vsel %vm2011, %v1997, 0.0
  %v2393 = vadd.f32 %v2391, %v2392
  %v2394 = vsel %vm2011, %v1998, 0.0
  %v2395 = vadd.f32 %v2393, %v2394
  %v2396 = vsel %vm2011, %v1999, 0.0
  %v2397 = vadd.f32 %v2395, %v2396
  %v2398 = vsel %vm2011, %v2000, 0.0
  %v2399 = vadd.f32 %v2397, %v2398
  %v2400 = vsel %vm2011, %v2001, 0.0
  %v2401 = vadd.f32 %v2399, %v2400
  %v2402 = vsel %vm2011, %v2002, 0.0
  %v2403 = vadd.f32 %v2401, %v2402
  %v2404 = vsel %vm2011, %v2003, 0.0
  %v2405 = vadd.f32 %v2403, %v2404
  %v2406 = vsel %vm2011, %v2004, 0.0
  %v2407 = vadd.f32 %v2405, %v2406
  %v2408 = vsel %vm2011, %v2005, 0.0
  %v2409 = vadd.f32 %v2407, %v2408
  %v2410 = vsel %vm2011, %v2006, 0.0
  %v2411 = vadd.f32 %v2409, %v2410
  %v2412 = vsel %vm2011, %v2007, 0.0
  %v2413 = vadd.f32 %v2411, %v2412
  %v2414 = vsel %vm2011, %v2008, 0.0
  %v2415 = vadd.f32 %v2413, %v2414
  %v2416 = vsel %vm2011, %v2009, 0.0
  %v2417 = vadd.f32 %v2415, %v2416
  %v2418 = vsel %vm2011, %v2010, 0.0
  %v2419 = vadd.f32 %v2417, %v2418
  %v2420 = vrot.slane %v2419, 4
  %v2421 = vadd.f32 %v2419, %v2420
  %v2422 = vrot.slane %v2421, 2
  %v2423 = vadd.f32 %v2421, %v2422
  %v2424 = vrot.slane %v2423, 1
  %v2425 = vadd.f32 %v2423, %v2424
  %v2426 = vrcp.pop 256.0
  %v2427 = vmul.f32 %v2080, %v2426
  %v2428 = vmul.f32 %v2149, %v2426
  %v2429 = vmul.f32 %v2218, %v2426
  %v2430 = vmul.f32 %v2287, %v2426
  %v2431 = vmul.f32 %v2356, %v2426
  %v2432 = vmul.f32 %v2425, %v2426
  %v2433 = vld [vmem:[%s1 + $0x30] sm:$0xff]
  %v2434 = vld [vmem:[%s1 + $0x38] sm:$0x1]
  %v2435 = vlaneseq
  %v2436 = vshrl.u32 %v2435, 7
  %v2437 = vsub.s32 0, %v2436
  %v2438 = vrot.slane %v2434, %v2437
  %vm2445 = vcmask 1041409
  %v2446 = vsel %vm2445, %v2428, %v2427
  %vm2447 = vcmask 1042434
  %v2448 = vsel %vm2447, %v2429, %v2446
  %vm2449 = vcmask 1043459
  %v2450 = vsel %vm2449, %v2430, %v2448
  %vm2451 = vcmask 1044484
  %v2452 = vsel %vm2451, %v2431, %v2450
  %vm2453 = vcmask 1045509
  %v2454 = vsel %vm2453, %v2432, %v2452
  %v2455 = vsel %vm2011, %v2454, 0
  %2457 = vmatprep.subr.mxu0 0.0
  %2458 = vmatpush1.msra.mxu0 %v2433
  %2459 = vmatprep.subr.mxu0 0.0
  %2460 = vmatpush1.msra.mxu0 0.0
  %2461 = vmatprep.subr.mxu0 0.0
  %2462 = vmatpush1.msra.mxu0 0.0
  %2463 = vmatprep.subr.mxu0 0.0
  %2464 = vmatpush1.msra.mxu0 0.0
  %2465 = vmatprep.subr.mxu0 0.0
  %2466 = vmatpush1.msra.mxu0 0.0
  %2467 = vmatprep.subr.mxu0 0.0
  %2468 = vmatpush1.msra.mxu0 0.0
  %2469 = vmatprep.subr.mxu0 0.0
  %2470 = vmatpush1.msra.mxu0 0.0
  %2471 = vmatprep.subr.mxu0 0.0
  %2472 = vmatpush1.msra.mxu0 0.0
  %2473 = vmatprep.subr.mxu0 0.0
  %2474 = vmatpush1.msra.mxu0 0.0
  %2475 = vmatprep.subr.mxu0 0.0
  %2476 = vmatpush1.msra.mxu0 0.0
  %2477 = vmatprep.subr.mxu0 0.0
  %2478 = vmatpush1.msra.mxu0 0.0
  %2479 = vmatprep.subr.mxu0 0.0
  %2480 = vmatpush1.msra.mxu0 0.0
  %2481 = vmatprep.subr.mxu0 0.0
  %2482 = vmatpush1.msra.mxu0 0.0
  %2483 = vmatprep.subr.mxu0 0.0
  %2484 = vmatpush1.msra.mxu0 0.0
  %2485 = vmatprep.subr.mxu0 0.0
  %2486 = vmatpush1.msra.mxu0 0.0
  %2487 = vmatprep.subr.mxu0 0.0
  %2488 = vmatpush1.msra.mxu0 0.0
  %2489 = vmatprep.subr.mxu0 0.0
  %2490 = vmatpush1.msra.mxu0 0.0
  %2491 = vmatprep.subr.mxu0 0.0
  %2492 = vmatpush1.msra.mxu0 0.0
  %2493 = vmatprep.subr.mxu0 0.0
  %2494 = vmatpush1.msra.mxu0 0.0
  %2495 = vmatprep.subr.mxu0 0.0
  %2496 = vmatpush1.msra.mxu0 0.0
  %2497 = vmatprep.subr.mxu0 0.0
  %2498 = vmatpush1.msra.mxu0 0.0
  %2499 = vmatprep.subr.mxu0 0.0
  %2500 = vmatpush1.msra.mxu0 0.0
  %2501 = vmatprep.subr.mxu0 0.0
  %2502 = vmatpush1.msra.mxu0 0.0
  %2503 = vmatprep.subr.mxu0 0.0
  %2504 = vmatpush1.msra.mxu0 0.0
  %2505 = vmatprep.subr.mxu0 0.0
  %2506 = vmatpush1.msra.mxu0 0.0
  %2507 = vmatprep.subr.mxu0 0.0
  %2508 = vmatpush1.msra.mxu0 0.0
  %2509 = vmatprep.subr.mxu0 0.0
  %2510 = vmatpush1.msra.mxu0 0.0
  %2511 = vmatprep.subr.mxu0 0.0
  %2512 = vmatpush1.msra.mxu0 0.0
  %2513 = vmatprep.subr.mxu0 0.0
  %2514 = vmatpush1.msra.mxu0 0.0
  %2515 = vmatprep.subr.mxu0 0.0
  %2516 = vmatpush1.msra.mxu0 0.0
  %2517 = vmatprep.subr.mxu0 0.0
  %2518 = vmatpush1.msra.mxu0 0.0
  %2519 = vmatprep.subr.mxu0 0.0
  %2520 = vmatpush1.msra.mxu0 0.0
  %2521 = vmatprep.mubr.f32.mxu0 0.0
  %2522 = vmatmul.mubr.f32.gmra.mrb[0].mxu0 %v2455
  %v2523 = vpop.f32.mrb[0].mxu0
  %v2524 = vadd.f32 %v2438, %v2523
  %v2525 = vpop.f32.mrb[0].mxu0
  %2526 = vdwg.mxu0
  %v2527 = vld [vmem:[%s1 + $0x40] sm:$0xff]
  %v2528 = vld [vmem:[%s1 + $0x48] sm:$0xff]
  %v2529 = vld [vmem:[%s1 + $0x50] sm:$0xff]
  %v2530 = vld [vmem:[%s1 + $0x58] sm:$0xff]
  %v2531 = vld [vmem:[%s1 + $0x60] sm:$0x1]
  %v2532 = vlaneseq
  %v2533 = vshrl.u32 %v2532, 7
  %v2534 = vsub.s32 0, %v2533
  %v2535 = vrot.slane %v2531, %v2534
  %vm2536 = vcmask 261120
  %v2538 = vsel %vm2536, %v2524, 0
  %2540 = vmatprep.subr.mxu0 0.0
  %2541 = vmatpush1.msra.mxu0 %v2527
  %2542 = vmatprep.subr.mxu0 0.0
  %2543 = vmatpush1.msra.mxu0 %v2528
  %2544 = vmatprep.subr.mxu0 0.0
  %2545 = vmatpush1.msra.mxu0 %v2529
  %2546 = vmatprep.subr.mxu0 0.0
  %2547 = vmatpush1.msra.mxu0 %v2530
  %2548 = vmatprep.subr.mxu0 0.0
  %2549 = vmatpush1.msra.mxu0 0.0
  %2550 = vmatprep.subr.mxu0 0.0
  %2551 = vmatpush1.msra.mxu0 0.0
  %2552 = vmatprep.subr.mxu0 0.0
  %2553 = vmatpush1.msra.mxu0 0.0
  %2554 = vmatprep.subr.mxu0 0.0
  %2555 = vmatpush1.msra.mxu0 0.0
  %2556 = vmatprep.subr.mxu0 0.0
  %2557 = vmatpush1.msra.mxu0 0.0
  %2558 = vmatprep.subr.mxu0 0.0
  %2559 = vmatpush1.msra.mxu0 0.0
  %2560 = vmatprep.subr.mxu0 0.0
  %2561 = vmatpush1.msra.mxu0 0.0
  %2562 = vmatprep.subr.mxu0 0.0
  %2563 = vmatpush1.msra.mxu0 0.0
  %2564 = vmatprep.subr.mxu0 0.0
  %2565 = vmatpush1.msra.mxu0 0.0
  %2566 = vmatprep.subr.mxu0 0.0
  %2567 = vmatpush1.msra.mxu0 0.0
  %2568 = vmatprep.subr.mxu0 0.0
  %2569 = vmatpush1.msra.mxu0 0.0
  %2570 = vmatprep.subr.mxu0 0.0
  %2571 = vmatpush1.msra.mxu0 0.0
  %2572 = vmatprep.subr.mxu0 0.0
  %2573 = vmatpush1.msra.mxu0 0.0
  %2574 = vmatprep.subr.mxu0 0.0
  %2575 = vmatpush1.msra.mxu0 0.0
  %2576 = vmatprep.subr.mxu0 0.0
  %2577 = vmatpush1.msra.mxu0 0.0
  %2578 = vmatprep.subr.mxu0 0.0
  %2579 = vmatpush1.msra.mxu0 0.0
  %2580 = vmatprep.subr.mxu0 0.0
  %2581 = vmatpush1.msra.mxu0 0.0
  %2582 = vmatprep.subr.mxu0 0.0
  %2583 = vmatpush1.msra.mxu0 0.0
  %2584 = vmatprep.subr.mxu0 0.0
  %2585 = vmatpush1.msra.mxu0 0.0
  %2586 = vmatprep.subr.mxu0 0.0
  %2587 = vmatpush1.msra.mxu0 0.0
  %2588 = vmatprep.subr.mxu0 0.0
  %2589 = vmatpush1.msra.mxu0 0.0
  %2590 = vmatprep.subr.mxu0 0.0
  %2591 = vmatpush1.msra.mxu0 0.0
  %2592 = vmatprep.subr.mxu0 0.0
  %2593 = vmatpush1.msra.mxu0 0.0
  %2594 = vmatprep.subr.mxu0 0.0
  %2595 = vmatpush1.msra.mxu0 0.0
  %2596 = vmatprep.subr.mxu0 0.0
  %2597 = vmatpush1.msra.mxu0 0.0
  %2598 = vmatprep.subr.mxu0 0.0
  %2599 = vmatpush1.msra.mxu0 0.0
  %2600 = vmatprep.subr.mxu0 0.0
  %2601 = vmatpush1.msra.mxu0 0.0
  %2602 = vmatprep.subr.mxu0 0.0
  %2603 = vmatpush1.msra.mxu0 0.0
  %2604 = vmatprep.mubr.f32.mxu0 0.0
  %2605 = vmatmul.mubr.f32.gmra.mrb[0].mxu0 %v2538
  %v2606 = vpop.f32.mrb[0].mxu0
  %v2607 = vadd.f32 %v2535, %v2606
  %v2608 = vpop.f32.mrb[0].mxu0
  %2609 = vdwg.mxu0
  %v2610 = vtanh.pop %v2607
  %v2611 = vld [vmem:[%s1 + $0x68] sm:$0xff]
  %v2612 = vld [vmem:[%s1 + $0x70] sm:$0xff]
  %v2613 = vld [vmem:[%s1 + $0x78] sm:$0xff]
  %v2614 = vld [vmem:[%s1 + $0x80] sm:$0xff]
  %v2615 = vld [vmem:[%s1 + $0x88] sm:$0xff]
  %v2616 = vld [vmem:[%s1 + $0x90] sm:$0xff]
  %v2617 = vld [vmem:[%s1 + $0x98] sm:$0xff]
  %v2618 = vld [vmem:[%s1 + $0xa0] sm:$0xff]
  %v2619 = vld [vmem:[%s1 + $0xa8] sm:$0x1]
  %v2620 = vlaneseq
  %v2621 = vshrl.u32 %v2620, 7
  %v2622 = vsub.s32 0, %v2621
  %v2623 = vrot.slane %v2619, %v2622
  %vm2624 = vcmask 523264
  %v2626 = vsel %vm2624, %v2610, 0
  %2628 = vmatprep.subr.mxu0 0.0
  %2629 = vmatpush1.msra.mxu0 %v2611
  %2630 = vmatprep.subr.mxu0 0.0
  %2631 = vmatpush1.msra.mxu0 %v2612
  %2632 = vmatprep.subr.mxu0 0.0
  %2633 = vmatpush1.msra.mxu0 %v2613
  %2634 = vmatprep.subr.mxu0 0.0
  %2635 = vmatpush1.msra.mxu0 %v2614
  %2636 = vmatprep.subr.mxu0 0.0
  %2637 = vmatpush1.msra.mxu0 %v2615
  %2638 = vmatprep.subr.mxu0 0.0
  %2639 = vmatpush1.msra.mxu0 %v2616
  %2640 = vmatprep.subr.mxu0 0.0
  %2641 = vmatpush1.msra.mxu0 %v2617
  %2642 = vmatprep.subr.mxu0 0.0
  %2643 = vmatpush1.msra.mxu0 %v2618
  %2644 = vmatprep.subr.mxu0 0.0
  %2645 = vmatpush1.msra.mxu0 0.0
  %2646 = vmatprep.subr.mxu0 0.0
  %2647 = vmatpush1.msra.mxu0 0.0
  %2648 = vmatprep.subr.mxu0 0.0
  %2649 = vmatpush1.msra.mxu0 0.0
  %2650 = vmatprep.subr.mxu0 0.0
  %2651 = vmatpush1.msra.mxu0 0.0
  %2652 = vmatprep.subr.mxu0 0.0
  %2653 = vmatpush1.msra.mxu0 0.0
  %2654 = vmatprep.subr.mxu0 0.0
  %2655 = vmatpush1.msra.mxu0 0.0
  %2656 = vmatprep.subr.mxu0 0.0
  %2657 = vmatpush1.msra.mxu0 0.0
  %2658 = vmatprep.subr.mxu0 0.0
  %2659 = vmatpush1.msra.mxu0 0.0
  %2660 = vmatprep.subr.mxu0 0.0
  %2661 = vmatpush1.msra.mxu0 0.0
  %2662 = vmatprep.subr.mxu0 0.0
  %2663 = vmatpush1.msra.mxu0 0.0
  %2664 = vmatprep.subr.mxu0 0.0
  %2665 = vmatpush1.msra.mxu0 0.0
  %2666 = vmatprep.subr.mxu0 0.0
  %2667 = vmatpush1.msra.mxu0 0.0
  %2668 = vmatprep.subr.mxu0 0.0
  %2669 = vmatpush1.msra.mxu0 0.0
  %2670 = vmatprep.subr.mxu0 0.0
  %2671 = vmatpush1.msra.mxu0 0.0
  %2672 = vmatprep.subr.mxu0 0.0
  %2673 = vmatpush1.msra.mxu0 0.0
  %2674 = vmatprep.subr.mxu0 0.0
  %2675 = vmatpush1.msra.mxu0 0.0
  %2676 = vmatprep.subr.mxu0 0.0
  %2677 = vmatpush1.msra.mxu0 0.0
  %2678 = vmatprep.subr.mxu0 0.0
  %2679 = vmatpush1.msra.mxu0 0.0
  %2680 = vmatprep.subr.mxu0 0.0
  %2681 = vmatpush1.msra.mxu0 0.0
  %2682 = vmatprep.subr.mxu0 0.0
  %2683 = vmatpush1.msra.mxu0 0.0
  %2684 = vmatprep.subr.mxu0 0.0
  %2685 = vmatpush1.msra.mxu0 0.0
  %2686 = vmatprep.subr.mxu0 0.0
  %2687 = vmatpush1.msra.mxu0 0.0
  %2688 = vmatprep.subr.mxu0 0.0
  %2689 = vmatpush1.msra.mxu0 0.0
  %2690 = vmatprep.subr.mxu0 0.0
  %2691 = vmatpush1.msra.mxu0 0.0
  %2692 = vmatprep.mubr.f32.mxu0 0.0
  %2693 = vmatmul.mubr.f32.gmra.mrb[0].mxu0 %v2626
  %v2694 = vpop.f32.mrb[0].mxu0
  %v2695 = vadd.f32 %v2623, %v2694
  %v2696 = vpop.f32.mrb[0].mxu0
  %2697 = vdwg.mxu0
  %v2699 = vrot.slane %v2695, 2
  %v2701 = vmax.f32 %v2695, %v2699
  %v2702 = vrot.slane %v2695, 4
  %v2704 = vmax.f32 %v2701, %v2702
  %v2705 = vsub.f32 %v2695, %v2704
  %v2706 = vmul.f32 %v2705, 1.442695
  %v2707 = vpow.pop %v2706
  %v2709 = vrot.slane %v2704, 6
  %v2711 = vsub.f32 %v2695, %v2709
  %v2712 = vmul.f32 %v2711, 1.442695
  %v2713 = vpow.pop %v2712
  %v2714 = vrot.slane %v2704, 4
  %v2716 = vsub.f32 %v2695, %v2714
  %v2717 = vmul.f32 %v2716, 1.442695
  %v2718 = vpow.pop %v2717
  %v2720 = vrot.slane %v2713, 2
  %v2722 = vadd.f32 %v2707, %v2720
  %v2724 = vrot.slane %v2718, 4
  %v2726 = vadd.f32 %v2722, %v2724
  %v2727 = vrcp.pop %v2726
  %v2728 = vmul.f32 %v2707, %v2727
  %v2730 = vrot.slane %v2726, 6
  %v2732 = vrcp.pop %v2730
  %v2733 = vmul.f32 %v2713, %v2732
  %v2734 = vrot.slane %v2726, 4
  %v2736 = vrcp.pop %v2734
  %v2737 = vmul.f32 %v2718, %v2736
  %vm2738 = vcmask 1041408
  %v2739 = vsel %vm2738, %v2728, %v2733
  %v2740 = vsel %vm790, %v2739, %v2737
  %v2742 = vrot.slane %v2733, 2
  %2743 = vrot.lane.b32.xlu0 %v2742, 1
  %v2744 = vpop.permute.xlu0 %2743
  %v2747 = vrot.slane %v2737, 4
  %2748 = vrot.lane.b32.xlu0 %v2747, 2
  %v2749 = vpop.permute.xlu0 %2748
  %vm2751 = vcmask 7168
  %v2752 = vsel %vm2751, %v2728, %v2744
  %vm2753 = vcmask 15360
  %v2754 = vsel %vm2753, %v2752, %v2749
  %2756 = vset.pattern.permute.xlu0 0
  %2757 = vperm.xlu0 %2756, %v2740
  %v2758 = vpop.permute.xlu0 %2757
  %v2760 = vmul.f32 %v2524, %v2758
  %v2761 = vld [vmem:[%s1 + $0xb0] sm:$0xff]
  %v2762 = vld [vmem:[%s1 + $0xb8] sm:$0xff]
  %v2763 = vld [vmem:[%s1 + $0xc0] sm:$0xff]
  %v2764 = vld [vmem:[%s1 + $0xc8] sm:$0xff]
  %v2765 = vld [vmem:[%s1 + $0xf0] sm:$0x1]
  %v2766 = vlaneseq
  %v2767 = vshrl.u32 %v2766, 7
  %v2768 = vsub.s32 0, %v2767
  %v2769 = vrot.slane %v2765, %v2768
  %v2771 = vsel %vm2536, %v2760, 0
  %2773 = vmatprep.subr.mxu0 0.0
  %2774 = vmatpush1.msra.mxu0 %v2761
  %2775 = vmatprep.subr.mxu0 0.0
  %2776 = vmatpush1.msra.mxu0 %v2762
  %2777 = vmatprep.subr.mxu0 0.0
  %2778 = vmatpush1.msra.mxu0 %v2763
  %2779 = vmatprep.subr.mxu0 0.0
  %2780 = vmatpush1.msra.mxu0 %v2764
  %2781 = vmatprep.subr.mxu0 0.0
  %2782 = vmatpush1.msra.mxu0 0.0
  %2783 = vmatprep.subr.mxu0 0.0
  %2784 = vmatpush1.msra.mxu0 0.0
  %2785 = vmatprep.subr.mxu0 0.0
  %2786 = vmatpush1.msra.mxu0 0.0
  %2787 = vmatprep.subr.mxu0 0.0
  %2788 = vmatpush1.msra.mxu0 0.0
  %2789 = vmatprep.subr.mxu0 0.0
  %2790 = vmatpush1.msra.mxu0 0.0
  %2791 = vmatprep.subr.mxu0 0.0
  %2792 = vmatpush1.msra.mxu0 0.0
  %2793 = vmatprep.subr.mxu0 0.0
  %2794 = vmatpush1.msra.mxu0 0.0
  %2795 = vmatprep.subr.mxu0 0.0
  %2796 = vmatpush1.msra.mxu0 0.0
  %2797 = vmatprep.subr.mxu0 0.0
  %2798 = vmatpush1.msra.mxu0 0.0
  %2799 = vmatprep.subr.mxu0 0.0
  %2800 = vmatpush1.msra.mxu0 0.0
  %2801 = vmatprep.subr.mxu0 0.0
  %2802 = vmatpush1.msra.mxu0 0.0
  %2803 = vmatprep.subr.mxu0 0.0
  %2804 = vmatpush1.msra.mxu0 0.0
  %2805 = vmatprep.subr.mxu0 0.0
  %2806 = vmatpush1.msra.mxu0 0.0
  %2807 = vmatprep.subr.mxu0 0.0
  %2808 = vmatpush1.msra.mxu0 0.0
  %2809 = vmatprep.subr.mxu0 0.0
  %2810 = vmatpush1.msra.mxu0 0.0
  %2811 = vmatprep.subr.mxu0 0.0
  %2812 = vmatpush1.msra.mxu0 0.0
  %2813 = vmatprep.subr.mxu0 0.0
  %2814 = vmatpush1.msra.mxu0 0.0
  %2815 = vmatprep.subr.mxu0 0.0
  %2816 = vmatpush1.msra.mxu0 0.0
  %2817 = vmatprep.subr.mxu0 0.0
  %2818 = vmatpush1.msra.mxu0 0.0
  %2819 = vmatprep.subr.mxu0 0.0
  %2820 = vmatpush1.msra.mxu0 0.0
  %2821 = vmatprep.subr.mxu0 0.0
  %2822 = vmatpush1.msra.mxu0 0.0
  %2823 = vmatprep.subr.mxu0 0.0
  %2824 = vmatpush1.msra.mxu0 0.0
  %2825 = vmatprep.subr.mxu0 0.0
  %2826 = vmatpush1.msra.mxu0 0.0
  %2827 = vmatprep.subr.mxu0 0.0
  %2828 = vmatpush1.msra.mxu0 0.0
  %2829 = vmatprep.subr.mxu0 0.0
  %2830 = vmatpush1.msra.mxu0 0.0
  %2831 = vmatprep.subr.mxu0 0.0
  %2832 = vmatpush1.msra.mxu0 0.0
  %2833 = vmatprep.subr.mxu0 0.0
  %2834 = vmatpush1.msra.mxu0 0.0
  %2835 = vmatprep.subr.mxu0 0.0
  %2836 = vmatpush1.msra.mxu0 0.0
  %2837 = vmatprep.mubr.f32.mxu0 0.0
  %2838 = vmatmul.mubr.f32.gmra.mrb[0].mxu0 %v2771
  %v2839 = vpop.f32.mrb[0].mxu0
  %v2840 = vadd.f32 %v2769, %v2839
  %v2841 = vpop.f32.mrb[0].mxu0
  %2842 = vdwg.mxu0
  %v2843 = vld [vmem:[%s1 + $0xd0] sm:$0xff]
  %v2844 = vld [vmem:[%s1 + $0xd8] sm:$0xff]
  %v2845 = vld [vmem:[%s1 + $0xe0] sm:$0xff]
  %v2846 = vld [vmem:[%s1 + $0xe8] sm:$0xff]
  %v2848 = vsel %vm2536, 0.0, 0
  %2850 = vmatprep.subr.mxu0 0.0
  %2851 = vmatpush1.msra.mxu0 %v2843
  %2852 = vmatprep.subr.mxu0 0.0
  %2853 = vmatpush1.msra.mxu0 %v2844
  %2854 = vmatprep.subr.mxu0 0.0
  %2855 = vmatpush1.msra.mxu0 %v2845
  %2856 = vmatprep.subr.mxu0 0.0
  %2857 = vmatpush1.msra.mxu0 %v2846
  %2858 = vmatprep.subr.mxu0 0.0
  %2859 = vmatpush1.msra.mxu0 0.0
  %2860 = vmatprep.subr.mxu0 0.0
  %2861 = vmatpush1.msra.mxu0 0.0
  %2862 = vmatprep.subr.mxu0 0.0
  %2863 = vmatpush1.msra.mxu0 0.0
  %2864 = vmatprep.subr.mxu0 0.0
  %2865 = vmatpush1.msra.mxu0 0.0
  %2866 = vmatprep.subr.mxu0 0.0
  %2867 = vmatpush1.msra.mxu0 0.0
  %2868 = vmatprep.subr.mxu0 0.0
  %2869 = vmatpush1.msra.mxu0 0.0
  %2870 = vmatprep.subr.mxu0 0.0
  %2871 = vmatpush1.msra.mxu0 0.0
  %2872 = vmatprep.subr.mxu0 0.0
  %2873 = vmatpush1.msra.mxu0 0.0
  %2874 = vmatprep.subr.mxu0 0.0
  %2875 = vmatpush1.msra.mxu0 0.0
  %2876 = vmatprep.subr.mxu0 0.0
  %2877 = vmatpush1.msra.mxu0 0.0
  %2878 = vmatprep.subr.mxu0 0.0
  %2879 = vmatpush1.msra.mxu0 0.0
  %2880 = vmatprep.subr.mxu0 0.0
  %2881 = vmatpush1.msra.mxu0 0.0
  %2882 = vmatprep.subr.mxu0 0.0
  %2883 = vmatpush1.msra.mxu0 0.0
  %2884 = vmatprep.subr.mxu0 0.0
  %2885 = vmatpush1.msra.mxu0 0.0
  %2886 = vmatprep.subr.mxu0 0.0
  %2887 = vmatpush1.msra.mxu0 0.0
  %2888 = vmatprep.subr.mxu0 0.0
  %2889 = vmatpush1.msra.mxu0 0.0
  %2890 = vmatprep.subr.mxu0 0.0
  %2891 = vmatpush1.msra.mxu0 0.0
  %2892 = vmatprep.subr.mxu0 0.0
  %2893 = vmatpush1.msra.mxu0 0.0
  %2894 = vmatprep.subr.mxu0 0.0
  %2895 = vmatpush1.msra.mxu0 0.0
  %2896 = vmatprep.subr.mxu0 0.0
  %2897 = vmatpush1.msra.mxu0 0.0
  %2898 = vmatprep.subr.mxu0 0.0
  %2899 = vmatpush1.msra.mxu0 0.0
  %2900 = vmatprep.subr.mxu0 0.0
  %2901 = vmatpush1.msra.mxu0 0.0
  %2902 = vmatprep.subr.mxu0 0.0
  %2903 = vmatpush1.msra.mxu0 0.0
  %2904 = vmatprep.subr.mxu0 0.0
  %2905 = vmatpush1.msra.mxu0 0.0
  %2906 = vmatprep.subr.mxu0 0.0
  %2907 = vmatpush1.msra.mxu0 0.0
  %2908 = vmatprep.subr.mxu0 0.0
  %2909 = vmatpush1.msra.mxu0 0.0
  %2910 = vmatprep.subr.mxu0 0.0
  %2911 = vmatpush1.msra.mxu0 0.0
  %2912 = vmatprep.subr.mxu0 0.0
  %2913 = vmatpush1.msra.mxu0 0.0
  %2914 = vmatprep.mubr.f32.mxu0 0.0
  %2915 = vmatmul.mubr.f32.gmra.mrb[0].mxu0 %v2848
  %v2916 = vpop.f32.mrb[0].mxu0
  %v2917 = vadd.f32 0.0, %v2916
  %v2918 = vpop.f32.mrb[0].mxu0
  %2919 = vdwg.mxu0
  %v2920 = vadd.f32 %v2840, %v2917
  %v2921 = vxor.u32 %v2920, 2147483648
  %v2922 = vmul.f32 %v2921, 1.442695
  %v2923 = vpow.pop %v2922
  %v2924 = vadd.f32 %v2923, 1.0
  %v2925 = vrcp.pop %v2924
  %v2926 = vmul.f32 1.0, %v2925
  %v2927 = vtanh.pop %v2920
  %v2928 = vmul.f32 %v2926, 0.0
  %2930 = vrot.lane.b32.xlu0 %v2927, 64
  %v2931 = vpop.permute.xlu0 %2930
  %v2933 = vmul.f32 %v2926, %v2931
  %2935 = vrot.lane.b32.xlu0 %v2933, 32
  %v2936 = vpop.permute.xlu0 %2935
  %v2938 = vadd.f32 %v2928, %v2936
  %v2939 = vtanh.pop %v2938
  %2941 = vrot.lane.b32.xlu0 %v2939, 64
  %v2942 = vpop.permute.xlu0 %2941
  %v2944 = vmul.f32 %v2926, %v2942
  %2946 = vrot.lane.b32.xlu0 %v2944, 32
  %v2947 = vpop.permute.xlu0 %2946
  %v2948 = vsel %vm2536, %v2947, 0
  %2950 = vmatprep.subr.mxu0 0.0
  %2951 = vmatpush1.msra.mxu0 %v2843
  %2952 = vmatprep.subr.mxu0 0.0
  %2953 = vmatpush1.msra.mxu0 %v2844
  %2954 = vmatprep.subr.mxu0 0.0
  %2955 = vmatpush1.msra.mxu0 %v2845
  %2956 = vmatprep.subr.mxu0 0.0
  %2957 = vmatpush1.msra.mxu0 %v2846
  %2958 = vmatprep.subr.mxu0 0.0
  %2959 = vmatpush1.msra.mxu0 0.0
  %2960 = vmatprep.subr.mxu0 0.0
  %2961 = vmatpush1.msra.mxu0 0.0
  %2962 = vmatprep.subr.mxu0 0.0
  %2963 = vmatpush1.msra.mxu0 0.0
  %2964 = vmatprep.subr.mxu0 0.0
  %2965 = vmatpush1.msra.mxu0 0.0
  %2966 = vmatprep.subr.mxu0 0.0
  %2967 = vmatpush1.msra.mxu0 0.0
  %2968 = vmatprep.subr.mxu0 0.0
  %2969 = vmatpush1.msra.mxu0 0.0
  %2970 = vmatprep.subr.mxu0 0.0
  %2971 = vmatpush1.msra.mxu0 0.0
  %2972 = vmatprep.subr.mxu0 0.0
  %2973 = vmatpush1.msra.mxu0 0.0
  %2974 = vmatprep.subr.mxu0 0.0
  %2975 = vmatpush1.msra.mxu0 0.0
  %2976 = vmatprep.subr.mxu0 0.0
  %2977 = vmatpush1.msra.mxu0 0.0
  %2978 = vmatprep.subr.mxu0 0.0
  %2979 = vmatpush1.msra.mxu0 0.0
  %2980 = vmatprep.subr.mxu0 0.0
  %2981 = vmatpush1.msra.mxu0 0.0
  %2982 = vmatprep.subr.mxu0 0.0
  %2983 = vmatpush1.msra.mxu0 0.0
  %2984 = vmatprep.subr.mxu0 0.0
  %2985 = vmatpush1.msra.mxu0 0.0
  %2986 = vmatprep.subr.mxu0 0.0
  %2987 = vmatpush1.msra.mxu0 0.0
  %2988 = vmatprep.subr.mxu0 0.0
  %2989 = vmatpush1.msra.mxu0 0.0
  %2990 = vmatprep.subr.mxu0 0.0
  %2991 = vmatpush1.msra.mxu0 0.0
  %2992 = vmatprep.subr.mxu0 0.0
  %2993 = vmatpush1.msra.mxu0 0.0
  %2994 = vmatprep.subr.mxu0 0.0
  %2995 = vmatpush1.msra.mxu0 0.0
  %2996 = vmatprep.subr.mxu0 0.0
  %2997 = vmatpush1.msra.mxu0 0.0
  %2998 = vmatprep.subr.mxu0 0.0
  %2999 = vmatpush1.msra.mxu0 0.0
  %3000 = vmatprep.subr.mxu0 0.0
  %3001 = vmatpush1.msra.mxu0 0.0
  %3002 = vmatprep.subr.mxu0 0.0
  %3003 = vmatpush1.msra.mxu0 0.0
  %3004 = vmatprep.subr.mxu0 0.0
  %3005 = vmatpush1.msra.mxu0 0.0
  %3006 = vmatprep.subr.mxu0 0.0
  %3007 = vmatpush1.msra.mxu0 0.0
  %3008 = vmatprep.subr.mxu0 0.0
  %3009 = vmatpush1.msra.mxu0 0.0
  %3010 = vmatprep.subr.mxu0 0.0
  %3011 = vmatpush1.msra.mxu0 0.0
  %3012 = vmatprep.subr.mxu0 0.0
  %3013 = vmatpush1.msra.mxu0 0.0
  %3014 = vmatprep.mubr.f32.mxu0 0.0
  %3015 = vmatmul.mubr.f32.gmra.mrb[0].mxu0 %v2948
  %v3016 = vpop.f32.mrb[0].mxu0
  %v3017 = vadd.f32 0.0, %v3016
  %v3018 = vpop.f32.mrb[0].mxu0
  %3019 = vdwg.mxu0
  %v3021 = vrot.slane %v3017, 6
  %v3023 = vadd.f32 %v2840, %v3021
  %v3024 = vxor.u32 %v3023, 2147483648
  %v3025 = vmul.f32 %v3024, 1.442695
  %v3026 = vpow.pop %v3025
  %v3027 = vadd.f32 %v3026, 1.0
  %v3028 = vrcp.pop %v3027
  %v3029 = vmul.f32 1.0, %v3028
  %v3030 = vtanh.pop %v3023
  %v3032 = vrot.slane %v2938, 6
  %v3034 = vmul.f32 %v3029, %v3032
  %3036 = vrot.lane.b32.xlu0 %v3030, 64
  %v3037 = vpop.permute.xlu0 %3036
  %v3039 = vmul.f32 %v3029, %v3037
  %3041 = vrot.lane.b32.xlu0 %v3039, 32
  %v3042 = vpop.permute.xlu0 %3041
  %v3044 = vadd.f32 %v3034, %v3042
  %v3045 = vtanh.pop %v3044
  %3047 = vrot.lane.b32.xlu0 %v3045, 64
  %v3048 = vpop.permute.xlu0 %3047
  %v3050 = vmul.f32 %v3029, %v3048
  %v3052 = vrot.slane %v3050, 2
  %3053 = vrot.lane.b32.xlu0 %v3052, 32
  %v3054 = vpop.permute.xlu0 %3053
  %v3055 = vsel %vm2536, %v3054, 0
  %3057 = vmatprep.subr.mxu0 0.0
  %3058 = vmatpush1.msra.mxu0 %v2843
  %3059 = vmatprep.subr.mxu0 0.0
  %3060 = vmatpush1.msra.mxu0 %v2844
  %3061 = vmatprep.subr.mxu0 0.0
  %3062 = vmatpush1.msra.mxu0 %v2845
  %3063 = vmatprep.subr.mxu0 0.0
  %3064 = vmatpush1.msra.mxu0 %v2846
  %3065 = vmatprep.subr.mxu0 0.0
  %3066 = vmatpush1.msra.mxu0 0.0
  %3067 = vmatprep.subr.mxu0 0.0
  %3068 = vmatpush1.msra.mxu0 0.0
  %3069 = vmatprep.subr.mxu0 0.0
  %3070 = vmatpush1.msra.mxu0 0.0
  %3071 = vmatprep.subr.mxu0 0.0
  %3072 = vmatpush1.msra.mxu0 0.0
  %3073 = vmatprep.subr.mxu0 0.0
  %3074 = vmatpush1.msra.mxu0 0.0
  %3075 = vmatprep.subr.mxu0 0.0
  %3076 = vmatpush1.msra.mxu0 0.0
  %3077 = vmatprep.subr.mxu0 0.0
  %3078 = vmatpush1.msra.mxu0 0.0
  %3079 = vmatprep.subr.mxu0 0.0
  %3080 = vmatpush1.msra.mxu0 0.0
  %3081 = vmatprep.subr.mxu0 0.0
  %3082 = vmatpush1.msra.mxu0 0.0
  %3083 = vmatprep.subr.mxu0 0.0
  %3084 = vmatpush1.msra.mxu0 0.0
  %3085 = vmatprep.subr.mxu0 0.0
  %3086 = vmatpush1.msra.mxu0 0.0
  %3087 = vmatprep.subr.mxu0 0.0
  %3088 = vmatpush1.msra.mxu0 0.0
  %3089 = vmatprep.subr.mxu0 0.0
  %3090 = vmatpush1.msra.mxu0 0.0
  %3091 = vmatprep.subr.mxu0 0.0
  %3092 = vmatpush1.msra.mxu0 0.0
  %3093 = vmatprep.subr.mxu0 0.0
  %3094 = vmatpush1.msra.mxu0 0.0
  %3095 = vmatprep.subr.mxu0 0.0
  %3096 = vmatpush1.msra.mxu0 0.0
  %3097 = vmatprep.subr.mxu0 0.0
  %3098 = vmatpush1.msra.mxu0 0.0
  %3099 = vmatprep.subr.mxu0 0.0
  %3100 = vmatpush1.msra.mxu0 0.0
  %3101 = vmatprep.subr.mxu0 0.0
  %3102 = vmatpush1.msra.mxu0 0.0
  %3103 = vmatprep.subr.mxu0 0.0
  %3104 = vmatpush1.msra.mxu0 0.0
  %3105 = vmatprep.subr.mxu0 0.0
  %3106 = vmatpush1.msra.mxu0 0.0
  %3107 = vmatprep.subr.mxu0 0.0
  %3108 = vmatpush1.msra.mxu0 0.0
  %3109 = vmatprep.subr.mxu0 0.0
  %3110 = vmatpush1.msra.mxu0 0.0
  %3111 = vmatprep.subr.mxu0 0.0
  %3112 = vmatpush1.msra.mxu0 0.0
  %3113 = vmatprep.subr.mxu0 0.0
  %3114 = vmatpush1.msra.mxu0 0.0
  %3115 = vmatprep.subr.mxu0 0.0
  %3116 = vmatpush1.msra.mxu0 0.0
  %3117 = vmatprep.subr.mxu0 0.0
  %3118 = vmatpush1.msra.mxu0 0.0
  %3119 = vmatprep.subr.mxu0 0.0
  %3120 = vmatpush1.msra.mxu0 0.0
  %3121 = vmatprep.mubr.f32.mxu0 0.0
  %3122 = vmatmul.mubr.f32.gmra.mrb[0].mxu0 %v3055
  %v3123 = vpop.f32.mrb[0].mxu0
  %v3124 = vadd.f32 0.0, %v3123
  %v3125 = vpop.f32.mrb[0].mxu0
  %3126 = vdwg.mxu0
  %v3128 = vrot.slane %v3124, 4
  %v3130 = vadd.f32 %v2840, %v3128
  %v3131 = vxor.u32 %v3130, 2147483648
  %v3132 = vmul.f32 %v3131, 1.442695
  %v3133 = vpow.pop %v3132
  %v3134 = vadd.f32 %v3133, 1.0
  %v3135 = vrcp.pop %v3134
  %v3136 = vmul.f32 1.0, %v3135
  %v3137 = vtanh.pop %v3130
  %v3139 = vrot.slane %v3044, 6
  %v3141 = vmul.f32 %v3136, %v3139
  %3143 = vrot.lane.b32.xlu0 %v3137, 64
  %v3144 = vpop.permute.xlu0 %3143
  %v3146 = vmul.f32 %v3136, %v3144
  %3148 = vrot.lane.b32.xlu0 %v3146, 32
  %v3149 = vpop.permute.xlu0 %3148
  %v3151 = vadd.f32 %v3141, %v3149
  %v3152 = vtanh.pop %v3151
  %3154 = vrot.lane.b32.xlu0 %v3152, 64
  %v3155 = vpop.permute.xlu0 %3154
  %v3157 = vmul.f32 %v3136, %v3155
  %v3158 = vld [vmem:[%s1 + $0xf8] sm:$0xff]
  %v3159 = vld [vmem:[%s1 + $0x100] sm:$0xff]
  %v3160 = vld [vmem:[%s1 + $0x108] sm:$0xff]
  %v3161 = vld [vmem:[%s1 + $0x110] sm:$0xff]
  %v3162 = vld [vmem:[%s1 + $0x118] sm:$0x1]
  %v3163 = vlaneseq
  %v3164 = vshrl.u32 %v3163, 7
  %v3165 = vsub.s32 0, %v3164
  %v3166 = vrot.slane %v3162, %v3165
  %v3168 = vrot.slane %v3157, 4
  %3169 = vrot.lane.b32.xlu0 %v3168, 32
  %v3170 = vpop.permute.xlu0 %3169
  %v3171 = vsel %vm2536, %v3170, 0
  %3173 = vmatprep.subr.mxu0 0.0
  %3174 = vmatpush1.msra.mxu0 %v3158
  %3175 = vmatprep.subr.mxu0 0.0
  %3176 = vmatpush1.msra.mxu0 %v3159
  %3177 = vmatprep.subr.mxu0 0.0
  %3178 = vmatpush1.msra.mxu0 %v3160
  %3179 = vmatprep.subr.mxu0 0.0
  %3180 = vmatpush1.msra.mxu0 %v3161
  %3181 = vmatprep.subr.mxu0 0.0
  %3182 = vmatpush1.msra.mxu0 0.0
  %3183 = vmatprep.subr.mxu0 0.0
  %3184 = vmatpush1.msra.mxu0 0.0
  %3185 = vmatprep.subr.mxu0 0.0
  %3186 = vmatpush1.msra.mxu0 0.0
  %3187 = vmatprep.subr.mxu0 0.0
  %3188 = vmatpush1.msra.mxu0 0.0
  %3189 = vmatprep.subr.mxu0 0.0
  %3190 = vmatpush1.msra.mxu0 0.0
  %3191 = vmatprep.subr.mxu0 0.0
  %3192 = vmatpush1.msra.mxu0 0.0
  %3193 = vmatprep.subr.mxu0 0.0
  %3194 = vmatpush1.msra.mxu0 0.0
  %3195 = vmatprep.subr.mxu0 0.0
  %3196 = vmatpush1.msra.mxu0 0.0
  %3197 = vmatprep.subr.mxu0 0.0
  %3198 = vmatpush1.msra.mxu0 0.0
  %3199 = vmatprep.subr.mxu0 0.0
  %3200 = vmatpush1.msra.mxu0 0.0
  %3201 = vmatprep.subr.mxu0 0.0
  %3202 = vmatpush1.msra.mxu0 0.0
  %3203 = vmatprep.subr.mxu0 0.0
  %3204 = vmatpush1.msra.mxu0 0.0
  %3205 = vmatprep.subr.mxu0 0.0
  %3206 = vmatpush1.msra.mxu0 0.0
  %3207 = vmatprep.subr.mxu0 0.0
  %3208 = vmatpush1.msra.mxu0 0.0
  %3209 = vmatprep.subr.mxu0 0.0
  %3210 = vmatpush1.msra.mxu0 0.0
  %3211 = vmatprep.subr.mxu0 0.0
  %3212 = vmatpush1.msra.mxu0 0.0
  %3213 = vmatprep.subr.mxu0 0.0
  %3214 = vmatpush1.msra.mxu0 0.0
  %3215 = vmatprep.subr.mxu0 0.0
  %3216 = vmatpush1.msra.mxu0 0.0
  %3217 = vmatprep.subr.mxu0 0.0
  %3218 = vmatpush1.msra.mxu0 0.0
  %3219 = vmatprep.subr.mxu0 0.0
  %3220 = vmatpush1.msra.mxu0 0.0
  %3221 = vmatprep.subr.mxu0 0.0
  %3222 = vmatpush1.msra.mxu0 0.0
  %3223 = vmatprep.subr.mxu0 0.0
  %3224 = vmatpush1.msra.mxu0 0.0
  %3225 = vmatprep.subr.mxu0 0.0
  %3226 = vmatpush1.msra.mxu0 0.0
  %3227 = vmatprep.subr.mxu0 0.0
  %3228 = vmatpush1.msra.mxu0 0.0
  %3229 = vmatprep.subr.mxu0 0.0
  %3230 = vmatpush1.msra.mxu0 0.0
  %3231 = vmatprep.subr.mxu0 0.0
  %3232 = vmatpush1.msra.mxu0 0.0
  %3233 = vmatprep.subr.mxu0 0.0
  %3234 = vmatpush1.msra.mxu0 0.0
  %3235 = vmatprep.subr.mxu0 0.0
  %3236 = vmatpush1.msra.mxu0 0.0
  %3237 = vmatprep.mubr.f32.mxu0 0.0
  %3238 = vmatmul.mubr.f32.gmra.mrb[0].mxu0 %v3171
  %v3239 = vpop.f32.mrb[0].mxu0
  %v3240 = vadd.f32 %v3166, %v3239
  %v3241 = vpop.f32.mrb[0].mxu0
  %3242 = vdwg.mxu0
  %3244 = vrot.lane.b32.xlu0 %v2754, 3
  %v3245 = vpop.permute.xlu0 %3244
  %vm3247 = vcmask 23552
  %v3248 = vsel %vm3247, %v3240, %v3245
  %vm3249 = vcmask 48128
  %v3250 = vsel %vm3249, %v3248, 0.0
  %3251 = vst [vmem:[%s2] sm:$0x3] %v3250
  // Predicated region
  $region10: #{cnn_lstm_attention_forward.1} parent=0 // pred_check
    _
  $region11: #{cnn_lstm_attention_forward.1} parent=0 // pred_check_branch
    %3253 = sbr.rel (0) target = $region13
  $region12: #{cnn_lstm_attention_forward.1} parent=0 // pred_region
    _
  $region13: #{cnn_lstm_attention_forward.1} parent=0 // pred_fallthru
    _
  // Predicated region
  $region14: #{cnn_lstm_attention_forward.1} parent=0 // pred_check
    _
  $region15: #{cnn_lstm_attention_forward.1} parent=0 // pred_check_branch
    %3255 = sbr.rel (0) target = $region17
  $region16: #{cnn_lstm_attention_forward.1} parent=0 // pred_region
    _
  $region17: #{cnn_lstm_attention_forward.1} parent=0 // pred_fallthru
    _

</llo_original>
